<compile_context>
chip_gen: v7x
topology: tpu7x:2x2x1
jax: 0.10.0
libtpu: 0.0.40
codegen_flags: <defaults>
</compile_context>

<pallas_src>
import functools
import math

import numpy as np
import jax
import jax.numpy as jnp
from jax.experimental import pallas as pl
from jax.experimental.pallas import tpu as pltpu


# ----------------------------------------------------------------------------
# Small helpers
# ----------------------------------------------------------------------------
def _round_up(x, m):
    return ((x + m - 1) // m) * m


def _permute_pad_gate_cols(w_t, H, Hp):
    """w_t: (rows, 4H), PyTorch gate order [i, f, g, o] along columns.
    Returns (rows, 4*Hp) with gate order [i, f, o, g]; each gate block is
    zero-padded from H to Hp lanes (padded units stay inert)."""
    i, f, g, o = (w_t[:, k * H:(k + 1) * H] for k in range(4))
    pad = ((0, 0), (0, Hp - H))
    return jnp.concatenate([jnp.pad(blk, pad) for blk in (i, f, o, g)], axis=1)


def _choose_time_chunk(S, Bp, din_max, Hp, ninp, w_bytes, x_bytes,
                       budget_bytes=40 * 1024 * 1024):
    """Derive the time-chunk T from a VMEM budget (fits v7x's 64 MiB)."""
    # Fixed VMEM: weights/biases/x0 (default double-buffered) + h/c carries.
    fixed = (2 * w_bytes * (din_max * 4 * Hp + Hp * 4 * Hp + ninp * 2 * Hp)
             + 2 * 4 * (4 * Hp + 2 * Hp)
             + 2 * x_bytes * Bp * ninp
             + 2 * 4 * Bp * Hp)
    # Per-timestep VMEM: f32 gx scratch + double-buffered x and y chunk blocks.
    per_t = Bp * (4 * Hp * 4 + 2 * din_max * x_bytes + 2 * Hp * x_bytes)
    avail = max(budget_bytes - fixed, per_t)
    return int(max(1, min(S, 32, avail // per_t)))


# ----------------------------------------------------------------------------
# One LSTM layer over the full (padded) sequence, processed in time chunks.
# Grid axis iterates sequentially over chunks ("arbitrary"); h/c live in VMEM
# scratch and persist across grid iterations (the recurrent carry).
# Prepared gate order along lanes: [i, f, o, g], each padded to Hp.
# ----------------------------------------------------------------------------
def _lstm_layer_kernel(x_ref, wih_ref, whh_ref, b_ref, x0_ref, w12_ref, b12_ref,
                       y_ref, h_scr, c_scr, gx_scr):
    TB, _ = x_ref.shape
    Bp, Hp = h_scr.shape
    T = TB // Bp

    # Fused h0/c0 init linears: one matmul with stacked [W1 | W2], only on the
    # first time chunk.
    @pl.when(pl.program_id(0) == 0)
    def _init():
        hc0 = (jnp.dot(x0_ref[...], w12_ref[...],
                       preferred_element_type=jnp.float32) + b12_ref[...])
        h_scr[...] = hc0[:, :Hp]
        c_scr[...] = hc0[:, Hp:]

    # Hoisted input projection for the whole chunk (M = T*Bp rows on the MXU),
    # off the serial recurrence path.
    gx_scr[...] = (jnp.dot(x_ref[...], wih_ref[...],
                           preferred_element_type=jnp.float32) + b_ref[...])

    whh = whh_ref[...]  # (Hp, 4Hp), hoisted load

    def step(t, carry):
        h, c = carry  # f32 carries
        base = pl.multiple_of(t * Bp, Bp)
        gates = gx_scr[pl.ds(base, Bp), :] + jnp.dot(
            h.astype(whh.dtype), whh, preferred_element_type=jnp.float32)
        # Gate layout [i | f | o | g]: one sigmoid launch over 3*Hp lanes,
        # one tanh launch over Hp lanes (EUP is a single VLIW slot).
        sig = jax.nn.sigmoid(gates[:, :3 * Hp])
        i_g = sig[:, 0 * Hp:1 * Hp]
        f_g = sig[:, 1 * Hp:2 * Hp]
        o_g = sig[:, 2 * Hp:3 * Hp]
        g_g = jnp.tanh(gates[:, 3 * Hp:4 * Hp])
        c_new = f_g * c + i_g * g_g
        h_new = o_g * jnp.tanh(c_new)
        # (Bp, Hp) store: sublane-aligned, lane-dense, unmasked.
        y_ref[pl.ds(base, Bp), :] = h_new.astype(y_ref.dtype)
        return h_new, c_new

    h, c = jax.lax.fori_loop(0, T, step, (h_scr[...], c_scr[...]),
                             unroll=min(T, 8))
    h_scr[...] = h
    c_scr[...] = c


def lstm_layer(x, lp, x0, *, T, Bp, compute_dtype):
    """x: (Sp*Bp, Din) flat lane-dense activations -> y: (Sp*Bp, Hp)."""
    SBp, Din = x.shape
    Hp = lp["w_hh_t"].shape[0]
    ninp = x0.shape[-1]
    n_chunks = SBp // (T * Bp)

    return pl.pallas_call(
        _lstm_layer_kernel,
        out_shape=jax.ShapeDtypeStruct((SBp, Hp), compute_dtype),
        grid_spec=pltpu.PrefetchScalarGridSpec(
            num_scalar_prefetch=0,
            grid=(n_chunks,),
            in_specs=[
                pl.BlockSpec((T * Bp, Din), lambda c: (c, 0)),    # x chunk
                pl.BlockSpec((Din, 4 * Hp), lambda c: (0, 0)),    # W_ih^T
                pl.BlockSpec((Hp, 4 * Hp), lambda c: (0, 0)),     # W_hh^T
                pl.BlockSpec((1, 4 * Hp), lambda c: (0, 0)),      # b_ih+b_hh
                pl.BlockSpec((Bp, ninp), lambda c: (0, 0)),       # input_init
                pl.BlockSpec((ninp, 2 * Hp), lambda c: (0, 0)),   # [W1|W2]^T
                pl.BlockSpec((1, 2 * Hp), lambda c: (0, 0)),      # [b1;b2]
            ],
            out_specs=pl.BlockSpec((T * Bp, Hp), lambda c: (c, 0)),
            scratch_shapes=[
                pltpu.VMEM((Bp, Hp), jnp.float32),            # h carry
                pltpu.VMEM((Bp, Hp), jnp.float32),            # c carry
                pltpu.VMEM((T * Bp, 4 * Hp), jnp.float32),    # hoisted x proj
            ],
        ),
        compiler_params=pltpu.CompilerParams(
            dimension_semantics=("arbitrary",),
            vmem_limit_bytes=48 * 1024 * 1024),
    )(x, lp["w_ih_t"], lp["w_hh_t"], lp["bias"], x0, lp["w12_t"], lp["b12"])


# ----------------------------------------------------------------------------
# Parameter layout prep (done ONCE, outside the forward): transpose, permute
# gates to [i,f,o,g], pad H->Hp (128-lane multiple), pre-sum biases, stack the
# two init linears, and cast weights to compute_dtype.
# ----------------------------------------------------------------------------
def prepare_params(params, *, compute_dtype=jnp.float32, lane=128):
    prepared = []
    for l in range(len(params["lstm"])):
        w1, b1 = params["init1"][l]
        w2, b2 = params["init2"][l]
        w_ih, w_hh, b_ih, b_hh = params["lstm"][l]
        H = w_hh.shape[1]
        Hp = _round_up(H, lane)

        w_ih_t = jnp.asarray(w_ih).T                       # (Din, 4H)
        if l > 0:                                          # layer input is padded Hp wide
            w_ih_t = jnp.pad(w_ih_t, ((0, Hp - H), (0, 0)))
        w_ih_t = _permute_pad_gate_cols(w_ih_t, H, Hp)     # (Din_p, 4Hp)

        w_hh_t = _permute_pad_gate_cols(
            jnp.pad(jnp.asarray(w_hh).T, ((0, Hp - H), (0, 0))), H, Hp)  # (Hp, 4Hp)

        bias = _permute_pad_gate_cols(
            (jnp.asarray(b_ih) + jnp.asarray(b_hh)).reshape(1, -1), H, Hp)  # (1, 4Hp)

        w12_t = jnp.concatenate(
            [jnp.pad(jnp.asarray(w1).T, ((0, 0), (0, Hp - H))),
             jnp.pad(jnp.asarray(w2).T, ((0, 0), (0, Hp - H)))], axis=1)   # (ninp, 2Hp)
        b12 = jnp.concatenate(
            [jnp.pad(jnp.asarray(b1), (0, Hp - H)),
             jnp.pad(jnp.asarray(b2), (0, Hp - H))]).reshape(1, -1)        # (1, 2Hp)

        prepared.append(dict(
            w_ih_t=w_ih_t.astype(compute_dtype),
            w_hh_t=w_hh_t.astype(compute_dtype),
            bias=bias.astype(jnp.float32),
            w12_t=w12_t.astype(compute_dtype),
            b12=b12.astype(jnp.float32),
        ))
    return prepared


@functools.partial(jax.jit, static_argnames=("nhid", "compute_dtype"))
def rnn_decoder_forward(prepared, input_init, emb, *, nhid,
                        compute_dtype=jnp.float32):
    S, B, E = emb.shape
    ninp = input_init.shape[-1]
    Hp = prepared[0]["w_hh_t"].shape[0]
    Bp = _round_up(B, 8)

    w_bytes = jnp.dtype(compute_dtype).itemsize
    din_max = max(E, Hp)
    T = _choose_time_chunk(S, Bp, din_max, Hp, ninp, w_bytes, w_bytes)
    Sp = _round_up(S, T)

    # Pad batch to a sublane multiple and seq to a chunk multiple, flatten to
    # the lane-dense (Sp*Bp, Din) layout the kernel consumes directly.
    x0 = jnp.pad(input_init, ((0, Bp - B), (0, 0))).astype(compute_dtype)
    x = jnp.pad(emb, ((0, Sp - S), (0, Bp - B), (0, 0))).astype(compute_dtype)
    x = x.reshape(Sp * Bp, E)

    for lp in prepared:
        x = lstm_layer(x, lp, x0, T=T, Bp=Bp, compute_dtype=compute_dtype)

    y = x.reshape(Sp, Bp, Hp)[:S, :B, :nhid]
    return y.astype(jnp.float32)  # == `output` of the PyTorch module


# ----------------------------------------------------------------------------
# Pure-JAX reference (for correctness check; PyTorch gate order [i, f, g, o])
# ----------------------------------------------------------------------------
def reference_forward(params, input_init, emb):
    nlayers = len(params["lstm"])
    x = emb
    for l in range(nlayers):
        w1, b1 = params["init1"][l]
        w2, b2 = params["init2"][l]
        h = input_init @ w1.T + b1
        c = input_init @ w2.T + b2
        w_ih, w_hh, b_ih, b_hh = params["lstm"][l]
        H = h.shape[-1]
        ys = []
        for t in range(x.shape[0]):
            gates = x[t] @ w_ih.T + h @ w_hh.T + b_ih + b_hh
            i = jax.nn.sigmoid(gates[:, 0 * H:1 * H])
            f = jax.nn.sigmoid(gates[:, 1 * H:2 * H])
            g = jnp.tanh(gates[:, 2 * H:3 * H])
            o = jax.nn.sigmoid(gates[:, 3 * H:4 * H])
            c = f * c + i * g
            h = o * jnp.tanh(c)
            ys.append(h)
        x = jnp.stack(ys, axis=0)
    return x


# ----------------------------------------------------------------------------
# Deterministic parameter construction (matches PyTorch __init__ shapes/ranges)
# ----------------------------------------------------------------------------
def make_params(key, emb_dim, ninp, nhid, nlayers):
    k = 1.0 / math.sqrt(nhid)
    params = {"init1": [], "init2": [], "lstm": []}
    for l in range(nlayers):
        key, *ks = jax.random.split(key, 9)
        params["init1"].append((
            jax.random.uniform(ks[0], (nhid, ninp), jnp.float32, -0.1, 0.1),
            jax.random.uniform(ks[1], (nhid,), jnp.float32, -0.5, 0.5),
        ))
        params["init2"].append((
            jax.random.uniform(ks[2], (nhid, ninp), jnp.float32, -0.1, 0.1),
            jax.random.uniform(ks[3], (nhid,), jnp.float32, -0.5, 0.5),
        ))
        din = emb_dim if l == 0 else nhid
        params["lstm"].append((
            jax.random.uniform(ks[4], (4 * nhid, din), jnp.float32, -k, k),
            jax.random.uniform(ks[5], (4 * nhid, nhid), jnp.float32, -k, k),
            jax.random.uniform(ks[6], (4 * nhid,), jnp.float32, -k, k),
            jax.random.uniform(ks[7], (4 * nhid,), jnp.float32, -k, k),
        ))
    return params


if __name__ == "__main__":
    SEQ, BATCH = 8, 2
    EMB_DIM, NINP, NHID, NLAYERS = 32, 16, 32, 2

    key = jax.random.PRNGKey(0)
    kp, ki, ke = jax.random.split(key, 3)

    params = make_params(kp, EMB_DIM, NINP, NHID, NLAYERS)
    input_init = jax.random.normal(ki, (BATCH, NINP), jnp.float32)
    emb = jax.random.normal(ke, (SEQ, BATCH, EMB_DIM), jnp.float32)

    ref = jax.block_until_ready(reference_forward(params, input_init, emb))

    # f32 compute path: tight check against the f32 reference.
    prepared32 = prepare_params(params, compute_dtype=jnp.float32)
    out32 = jax.block_until_ready(
        rnn_decoder_forward(prepared32, input_init, emb,
                            nhid=NHID, compute_dtype=jnp.float32))
    assert out32.shape == (SEQ, BATCH, NHID)
    np.testing.assert_allclose(np.asarray(out32), np.asarray(ref),
                               rtol=1e-2, atol=1e-2)

    # bf16 compute path (v6e/v7x MXU rate, half weight/activation HBM traffic):
    # loose-tolerance validation as requested by the review.
    prepared16 = prepare_params(params, compute_dtype=jnp.bfloat16)
    out16 = jax.block_until_ready(
        rnn_decoder_forward(prepared16, input_init, emb,
                            nhid=NHID, compute_dtype=jnp.bfloat16))
    assert out16.shape == (SEQ, BATCH, NHID)
    np.testing.assert_allclose(np.asarray(out16), np.asarray(ref),
                               rtol=5e-2, atol=5e-2)

    print("KERNEL_OK")
</pallas_src>

<mosaic_0001>
module attributes {stable_mosaic.version = 11 : i64} {
  func.func @_lstm_layer_kernel(%arg0: i32, %arg1: memref<64x128xf32, #tpu.memory_space<vmem>>, %arg2: memref<128x512xf32, #tpu.memory_space<vmem>>, %arg3: memref<128x512xf32, #tpu.memory_space<vmem>>, %arg4: memref<1x512xf32, #tpu.memory_space<vmem>>, %arg5: memref<8x16xf32, #tpu.memory_space<vmem>>, %arg6: memref<16x256xf32, #tpu.memory_space<vmem>>, %arg7: memref<1x256xf32, #tpu.memory_space<vmem>>, %arg8: memref<64x128xf32, #tpu.memory_space<vmem>>, %arg9: memref<8x128xf32, #tpu.memory_space<vmem>>, %arg10: memref<8x128xf32, #tpu.memory_space<vmem>>, %arg11: memref<64x512xf32, #tpu.memory_space<vmem>>) attributes {dimension_semantics = [#tpu.dimension_semantics<arbitrary>], iteration_bounds = array<i64: 1>, scalar_prefetch = 0 : i64, scratch_operands = 3 : i64, tpu.core_type = #tpu.core_type<tc>, window_params = [{transform_indices = @transform_0, window_bounds = array<i64: 64, 128>}, {pipeline_mode = #tpu.pipeline_mode<synchronous>, transform_indices = @transform_1, window_bounds = array<i64: 128, 512>}, {pipeline_mode = #tpu.pipeline_mode<synchronous>, transform_indices = @transform_2, window_bounds = array<i64: 128, 512>}, {pipeline_mode = #tpu.pipeline_mode<synchronous>, transform_indices = @transform_3, window_bounds = array<i64: 1, 512>}, {pipeline_mode = #tpu.pipeline_mode<synchronous>, transform_indices = @transform_4, window_bounds = array<i64: 8, 16>}, {pipeline_mode = #tpu.pipeline_mode<synchronous>, transform_indices = @transform_5, window_bounds = array<i64: 16, 256>}, {pipeline_mode = #tpu.pipeline_mode<synchronous>, transform_indices = @transform_6, window_bounds = array<i64: 1, 256>}, {transform_indices = @transform_7, window_bounds = array<i64: 64, 128>}]} {
    %c0_i32 = arith.constant 0 : i32
    %0 = arith.cmpi eq, %arg0, %c0_i32 : i32
    %1 = arith.extui %0 : i1 to i32
    %c0_i32_0 = arith.constant 0 : i32
    %2 = arith.cmpi ne, %1, %c0_i32_0 : i32
    scf.if %2 {
      %c0_59 = arith.constant 0 : index
      %c0_60 = arith.constant 0 : index
      %207 = vector.load %arg5[%c0_59, %c0_60] : memref<8x16xf32, #tpu.memory_space<vmem>>, vector<8x16xf32>
      %c0_61 = arith.constant 0 : index
      %c0_62 = arith.constant 0 : index
      %208 = vector.load %arg6[%c0_61, %c0_62] : memref<16x256xf32, #tpu.memory_space<vmem>>, vector<16x256xf32>
      %cst_63 = arith.constant dense<0.000000e+00> : vector<8x256xf32>
      %209 = tpu.matmul %207, %208, %cst_63 {dimension_numbers = #tpu.dot_dimension_numbers<[1], [0], [0], [1], [0, 0, 1, 1], [], []>} : vector<8x16xf32>, vector<16x256xf32>, vector<8x256xf32> -> vector<8x256xf32>
      %c0_64 = arith.constant 0 : index
      %c0_65 = arith.constant 0 : index
      %210 = vector.load %arg7[%c0_64, %c0_65] : memref<1x256xf32, #tpu.memory_space<vmem>>, vector<1x256xf32>
      %211 = vector.broadcast %210 : vector<1x256xf32> to vector<8x256xf32>
      %212 = arith.addf %209, %211 : vector<8x256xf32>
      %213 = vector.extract_strided_slice %212 {offsets = [0, 0], sizes = [8, 128], strides = [1, 1]} : vector<8x256xf32> to vector<8x128xf32>
      %c0_66 = arith.constant 0 : index
      %c0_67 = arith.constant 0 : index
      %214 = vector.load %arg9[%c0_66, %c0_67] : memref<8x128xf32, #tpu.memory_space<vmem>>, vector<8x128xf32>
      tpu.vector_store %arg9[%c0_66, %c0_67], %213 {strides = array<i32>} : memref<8x128xf32, #tpu.memory_space<vmem>>, vector<8x128xf32>,
      %215 = vector.extract_strided_slice %212 {offsets = [0, 128], sizes = [8, 128], strides = [1, 1]} : vector<8x256xf32> to vector<8x128xf32>
      %c0_68 = arith.constant 0 : index
      %c0_69 = arith.constant 0 : index
      %216 = vector.load %arg10[%c0_68, %c0_69] : memref<8x128xf32, #tpu.memory_space<vmem>>, vector<8x128xf32>
      tpu.vector_store %arg10[%c0_68, %c0_69], %215 {strides = array<i32>} : memref<8x128xf32, #tpu.memory_space<vmem>>, vector<8x128xf32>,
    } else {
    }
    %c0 = arith.constant 0 : index
    %c0_1 = arith.constant 0 : index
    %3 = vector.load %arg1[%c0, %c0_1] : memref<64x128xf32, #tpu.memory_space<vmem>>, vector<64x128xf32>
    %c0_2 = arith.constant 0 : index
    %c0_3 = arith.constant 0 : index
    %4 = vector.load %arg2[%c0_2, %c0_3] : memref<128x512xf32, #tpu.memory_space<vmem>>, vector<128x512xf32>
    %cst = arith.constant dense<0.000000e+00> : vector<64x512xf32>
    %5 = tpu.matmul %3, %4, %cst {dimension_numbers = #tpu.dot_dimension_numbers<[1], [0], [0], [1], [0, 0, 1, 1], [], []>} : vector<64x128xf32>, vector<128x512xf32>, vector<64x512xf32> -> vector<64x512xf32>
    %c0_4 = arith.constant 0 : index
    %c0_5 = arith.constant 0 : index
    %6 = vector.load %arg4[%c0_4, %c0_5] : memref<1x512xf32, #tpu.memory_space<vmem>>, vector<1x512xf32>
    %7 = vector.broadcast %6 : vector<1x512xf32> to vector<64x512xf32>
    %8 = arith.addf %5, %7 : vector<64x512xf32>
    %c0_6 = arith.constant 0 : index
    %c0_7 = arith.constant 0 : index
    %9 = vector.load %arg11[%c0_6, %c0_7] : memref<64x512xf32, #tpu.memory_space<vmem>>, vector<64x512xf32>
    tpu.vector_store %arg11[%c0_6, %c0_7], %8 {strides = array<i32>} : memref<64x512xf32, #tpu.memory_space<vmem>>, vector<64x512xf32>,
    %c0_8 = arith.constant 0 : index
    %c0_9 = arith.constant 0 : index
    %10 = vector.load %arg3[%c0_8, %c0_9] : memref<128x512xf32, #tpu.memory_space<vmem>>, vector<128x512xf32>
    %c0_10 = arith.constant 0 : index
    %c0_11 = arith.constant 0 : index
    %11 = vector.load %arg9[%c0_10, %c0_11] : memref<8x128xf32, #tpu.memory_space<vmem>>, vector<8x128xf32>
    %c0_12 = arith.constant 0 : index
    %c0_13 = arith.constant 0 : index
    %12 = vector.load %arg10[%c0_12, %c0_13] : memref<8x128xf32, #tpu.memory_space<vmem>>, vector<8x128xf32>
    %c0_i32_14 = arith.constant 0 : i32
    %c8_i32 = arith.constant 8 : i32
    %13 = arith.muli %c0_i32_14, %c8_i32 : i32
    %14 = tpu.assume_multiple %13, 8 : i32
    %15 = arith.index_cast %14 : i32 to index
    %c0_15 = arith.constant 0 : index
    %16 = vector.load %arg11[%15, %c0_15] : memref<64x512xf32, #tpu.memory_space<vmem>>, vector<8x512xf32>
    %cst_16 = arith.constant dense<0.000000e+00> : vector<8x512xf32>
    %17 = tpu.matmul %11, %10, %cst_16 {dimension_numbers = #tpu.dot_dimension_numbers<[1], [0], [0], [1], [0, 0, 1, 1], [], []>} : vector<8x128xf32>, vector<128x512xf32>, vector<8x512xf32> -> vector<8x512xf32>
    %18 = arith.addf %16, %17 : vector<8x512xf32>
    %19 = vector.extract_strided_slice %18 {offsets = [0, 0], sizes = [8, 384], strides = [1, 1]} : vector<8x512xf32> to vector<8x384xf32>
    %20 = arith.negf %19 : vector<8x384xf32>
    %21 = math.exp %20 : vector<8x384xf32>
    %cst_17 = arith.constant 1.000000e+00 : f32
    %22 = vector.broadcast %cst_17 : f32 to vector<8x384xf32>
    %23 = arith.addf %22, %21 : vector<8x384xf32>
    %24 = arith.divf %22, %23 : vector<8x384xf32>
    %25 = vector.extract_strided_slice %24 {offsets = [0, 0], sizes = [8, 128], strides = [1, 1]} : vector<8x384xf32> to vector<8x128xf32>
    %26 = vector.extract_strided_slice %24 {offsets = [0, 128], sizes = [8, 128], strides = [1, 1]} : vector<8x384xf32> to vector<8x128xf32>
    %27 = vector.extract_strided_slice %24 {offsets = [0, 256], sizes = [8, 128], strides = [1, 1]} : vector<8x384xf32> to vector<8x128xf32>
    %28 = vector.extract_strided_slice %18 {offsets = [0, 384], sizes = [8, 128], strides = [1, 1]} : vector<8x512xf32> to vector<8x128xf32>
    %29 = math.tanh %28 : vector<8x128xf32>
    %30 = arith.mulf %26, %12 : vector<8x128xf32>
    %31 = arith.mulf %25, %29 : vector<8x128xf32>
    %32 = arith.addf %30, %31 : vector<8x128xf32>
    %33 = math.tanh %32 : vector<8x128xf32>
    %34 = arith.mulf %27, %33 : vector<8x128xf32>
    %35 = arith.index_cast %14 : i32 to index
    %c0_18 = arith.constant 0 : index
    %36 = vector.load %arg8[%35, %c0_18] : memref<64x128xf32, #tpu.memory_space<vmem>>, vector<8x128xf32>
    tpu.vector_store %arg8[%35, %c0_18], %34 {strides = array<i32>} : memref<64x128xf32, #tpu.memory_space<vmem>>, vector<8x128xf32>,
    %c1_i32 = arith.constant 1 : i32
    %c8_i32_19 = arith.constant 8 : i32
    %37 = arith.muli %c1_i32, %c8_i32_19 : i32
    %38 = tpu.assume_multiple %37, 8 : i32
    %39 = arith.index_cast %38 : i32 to index
    %c0_20 = arith.constant 0 : index
    %40 = vector.load %arg11[%39, %c0_20] : memref<64x512xf32, #tpu.memory_space<vmem>>, vector<8x512xf32>
    %cst_21 = arith.constant dense<0.000000e+00> : vector<8x512xf32>
    %41 = tpu.matmul %34, %10, %cst_21 {dimension_numbers = #tpu.dot_dimension_numbers<[1], [0], [0], [1], [0, 0, 1, 1], [], []>} : vector<8x128xf32>, vector<128x512xf32>, vector<8x512xf32> -> vector<8x512xf32>
    %42 = arith.addf %40, %41 : vector<8x512xf32>
    %43 = vector.extract_strided_slice %42 {offsets = [0, 0], sizes = [8, 384], strides = [1, 1]} : vector<8x512xf32> to vector<8x384xf32>
    %44 = arith.negf %43 : vector<8x384xf32>
    %45 = math.exp %44 : vector<8x384xf32>
    %cst_22 = arith.constant 1.000000e+00 : f32
    %46 = vector.broadcast %cst_22 : f32 to vector<8x384xf32>
    %47 = arith.addf %46, %45 : vector<8x384xf32>
    %48 = arith.divf %46, %47 : vector<8x384xf32>
    %49 = vector.extract_strided_slice %48 {offsets = [0, 0], sizes = [8, 128], strides = [1, 1]} : vector<8x384xf32> to vector<8x128xf32>
    %50 = vector.extract_strided_slice %48 {offsets = [0, 128], sizes = [8, 128], strides = [1, 1]} : vector<8x384xf32> to vector<8x128xf32>
    %51 = vector.extract_strided_slice %48 {offsets = [0, 256], sizes = [8, 128], strides = [1, 1]} : vector<8x384xf32> to vector<8x128xf32>
    %52 = vector.extract_strided_slice %42 {offsets = [0, 384], sizes = [8, 128], strides = [1, 1]} : vector<8x512xf32> to vector<8x128xf32>
    %53 = math.tanh %52 : vector<8x128xf32>
    %54 = arith.mulf %50, %32 : vector<8x128xf32>
    %55 = arith.mulf %49, %53 : vector<8x128xf32>
    %56 = arith.addf %54, %55 : vector<8x128xf32>
    %57 = math.tanh %56 : vector<8x128xf32>
    %58 = arith.mulf %51, %57 : vector<8x128xf32>
    %59 = arith.index_cast %38 : i32 to index
    %c0_23 = arith.constant 0 : index
    %60 = vector.load %arg8[%59, %c0_23] : memref<64x128xf32, #tpu.memory_space<vmem>>, vector<8x128xf32>
    tpu.vector_store %arg8[%59, %c0_23], %58 {strides = array<i32>} : memref<64x128xf32, #tpu.memory_space<vmem>>, vector<8x128xf32>,
    %c2_i32 = arith.constant 2 : i32
    %c8_i32_24 = arith.constant 8 : i32
    %61 = arith.muli %c2_i32, %c8_i32_24 : i32
    %62 = tpu.assume_multiple %61, 8 : i32
    %63 = arith.index_cast %62 : i32 to index
    %c0_25 = arith.constant 0 : index
    %64 = vector.load %arg11[%63, %c0_25] : memref<64x512xf32, #tpu.memory_space<vmem>>, vector<8x512xf32>
    %cst_26 = arith.constant dense<0.000000e+00> : vector<8x512xf32>
    %65 = tpu.matmul %58, %10, %cst_26 {dimension_numbers = #tpu.dot_dimension_numbers<[1], [0], [0], [1], [0, 0, 1, 1], [], []>} : vector<8x128xf32>, vector<128x512xf32>, vector<8x512xf32> -> vector<8x512xf32>
    %66 = arith.addf %64, %65 : vector<8x512xf32>
    %67 = vector.extract_strided_slice %66 {offsets = [0, 0], sizes = [8, 384], strides = [1, 1]} : vector<8x512xf32> to vector<8x384xf32>
    %68 = arith.negf %67 : vector<8x384xf32>
    %69 = math.exp %68 : vector<8x384xf32>
    %cst_27 = arith.constant 1.000000e+00 : f32
    %70 = vector.broadcast %cst_27 : f32 to vector<8x384xf32>
    %71 = arith.addf %70, %69 : vector<8x384xf32>
    %72 = arith.divf %70, %71 : vector<8x384xf32>
    %73 = vector.extract_strided_slice %72 {offsets = [0, 0], sizes = [8, 128], strides = [1, 1]} : vector<8x384xf32> to vector<8x128xf32>
    %74 = vector.extract_strided_slice %72 {offsets = [0, 128], sizes = [8, 128], strides = [1, 1]} : vector<8x384xf32> to vector<8x128xf32>
    %75 = vector.extract_strided_slice %72 {offsets = [0, 256], sizes = [8, 128], strides = [1, 1]} : vector<8x384xf32> to vector<8x128xf32>
    %76 = vector.extract_strided_slice %66 {offsets = [0, 384], sizes = [8, 128], strides = [1, 1]} : vector<8x512xf32> to vector<8x128xf32>
    %77 = math.tanh %76 : vector<8x128xf32>
    %78 = arith.mulf %74, %56 : vector<8x128xf32>
    %79 = arith.mulf %73, %77 : vector<8x128xf32>
    %80 = arith.addf %78, %79 : vector<8x128xf32>
    %81 = math.tanh %80 : vector<8x128xf32>
    %82 = arith.mulf %75, %81 : vector<8x128xf32>
    %83 = arith.index_cast %62 : i32 to index
    %c0_28 = arith.constant 0 : index
    %84 = vector.load %arg8[%83, %c0_28] : memref<64x128xf32, #tpu.memory_space<vmem>>, vector<8x128xf32>
    tpu.vector_store %arg8[%83, %c0_28], %82 {strides = array<i32>} : memref<64x128xf32, #tpu.memory_space<vmem>>, vector<8x128xf32>,
    %c3_i32 = arith.constant 3 : i32
    %c8_i32_29 = arith.constant 8 : i32
    %85 = arith.muli %c3_i32, %c8_i32_29 : i32
    %86 = tpu.assume_multiple %85, 8 : i32
    %87 = arith.index_cast %86 : i32 to index
    %c0_30 = arith.constant 0 : index
    %88 = vector.load %arg11[%87, %c0_30] : memref<64x512xf32, #tpu.memory_space<vmem>>, vector<8x512xf32>
    %cst_31 = arith.constant dense<0.000000e+00> : vector<8x512xf32>
    %89 = tpu.matmul %82, %10, %cst_31 {dimension_numbers = #tpu.dot_dimension_numbers<[1], [0], [0], [1], [0, 0, 1, 1], [], []>} : vector<8x128xf32>, vector<128x512xf32>, vector<8x512xf32> -> vector<8x512xf32>
    %90 = arith.addf %88, %89 : vector<8x512xf32>
    %91 = vector.extract_strided_slice %90 {offsets = [0, 0], sizes = [8, 384], strides = [1, 1]} : vector<8x512xf32> to vector<8x384xf32>
    %92 = arith.negf %91 : vector<8x384xf32>
    %93 = math.exp %92 : vector<8x384xf32>
    %cst_32 = arith.constant 1.000000e+00 : f32
    %94 = vector.broadcast %cst_32 : f32 to vector<8x384xf32>
    %95 = arith.addf %94, %93 : vector<8x384xf32>
    %96 = arith.divf %94, %95 : vector<8x384xf32>
    %97 = vector.extract_strided_slice %96 {offsets = [0, 0], sizes = [8, 128], strides = [1, 1]} : vector<8x384xf32> to vector<8x128xf32>
    %98 = vector.extract_strided_slice %96 {offsets = [0, 128], sizes = [8, 128], strides = [1, 1]} : vector<8x384xf32> to vector<8x128xf32>
    %99 = vector.extract_strided_slice %96 {offsets = [0, 256], sizes = [8, 128], strides = [1, 1]} : vector<8x384xf32> to vector<8x128xf32>
    %100 = vector.extract_strided_slice %90 {offsets = [0, 384], sizes = [8, 128], strides = [1, 1]} : vector<8x512xf32> to vector<8x128xf32>
    %101 = math.tanh %100 : vector<8x128xf32>
    %102 = arith.mulf %98, %80 : vector<8x128xf32>
    %103 = arith.mulf %97, %101 : vector<8x128xf32>
    %104 = arith.addf %102, %103 : vector<8x128xf32>
    %105 = math.tanh %104 : vector<8x128xf32>
    %106 = arith.mulf %99, %105 : vector<8x128xf32>
    %107 = arith.index_cast %86 : i32 to index
    %c0_33 = arith.constant 0 : index
    %108 = vector.load %arg8[%107, %c0_33] : memref<64x128xf32, #tpu.memory_space<vmem>>, vector<8x128xf32>
    tpu.vector_store %arg8[%107, %c0_33], %106 {strides = array<i32>} : memref<64x128xf32, #tpu.memory_space<vmem>>, vector<8x128xf32>,
    %c4_i32 = arith.constant 4 : i32
    %c8_i32_34 = arith.constant 8 : i32
    %109 = arith.muli %c4_i32, %c8_i32_34 : i32
    %110 = tpu.assume_multiple %109, 8 : i32
    %111 = arith.index_cast %110 : i32 to index
    %c0_35 = arith.constant 0 : index
    %112 = vector.load %arg11[%111, %c0_35] : memref<64x512xf32, #tpu.memory_space<vmem>>, vector<8x512xf32>
    %cst_36 = arith.constant dense<0.000000e+00> : vector<8x512xf32>
    %113 = tpu.matmul %106, %10, %cst_36 {dimension_numbers = #tpu.dot_dimension_numbers<[1], [0], [0], [1], [0, 0, 1, 1], [], []>} : vector<8x128xf32>, vector<128x512xf32>, vector<8x512xf32> -> vector<8x512xf32>
    %114 = arith.addf %112, %113 : vector<8x512xf32>
    %115 = vector.extract_strided_slice %114 {offsets = [0, 0], sizes = [8, 384], strides = [1, 1]} : vector<8x512xf32> to vector<8x384xf32>
    %116 = arith.negf %115 : vector<8x384xf32>
    %117 = math.exp %116 : vector<8x384xf32>
    %cst_37 = arith.constant 1.000000e+00 : f32
    %118 = vector.broadcast %cst_37 : f32 to vector<8x384xf32>
    %119 = arith.addf %118, %117 : vector<8x384xf32>
    %120 = arith.divf %118, %119 : vector<8x384xf32>
    %121 = vector.extract_strided_slice %120 {offsets = [0, 0], sizes = [8, 128], strides = [1, 1]} : vector<8x384xf32> to vector<8x128xf32>
    %122 = vector.extract_strided_slice %120 {offsets = [0, 128], sizes = [8, 128], strides = [1, 1]} : vector<8x384xf32> to vector<8x128xf32>
    %123 = vector.extract_strided_slice %120 {offsets = [0, 256], sizes = [8, 128], strides = [1, 1]} : vector<8x384xf32> to vector<8x128xf32>
    %124 = vector.extract_strided_slice %114 {offsets = [0, 384], sizes = [8, 128], strides = [1, 1]} : vector<8x512xf32> to vector<8x128xf32>
    %125 = math.tanh %124 : vector<8x128xf32>
    %126 = arith.mulf %122, %104 : vector<8x128xf32>
    %127 = arith.mulf %121, %125 : vector<8x128xf32>
    %128 = arith.addf %126, %127 : vector<8x128xf32>
    %129 = math.tanh %128 : vector<8x128xf32>
    %130 = arith.mulf %123, %129 : vector<8x128xf32>
    %131 = arith.index_cast %110 : i32 to index
    %c0_38 = arith.constant 0 : index
    %132 = vector.load %arg8[%131, %c0_38] : memref<64x128xf32, #tpu.memory_space<vmem>>, vector<8x128xf32>
    tpu.vector_store %arg8[%131, %c0_38], %130 {strides = array<i32>} : memref<64x128xf32, #tpu.memory_space<vmem>>, vector<8x128xf32>,
    %c5_i32 = arith.constant 5 : i32
    %c8_i32_39 = arith.constant 8 : i32
    %133 = arith.muli %c5_i32, %c8_i32_39 : i32
    %134 = tpu.assume_multiple %133, 8 : i32
    %135 = arith.index_cast %134 : i32 to index
    %c0_40 = arith.constant 0 : index
    %136 = vector.load %arg11[%135, %c0_40] : memref<64x512xf32, #tpu.memory_space<vmem>>, vector<8x512xf32>
    %cst_41 = arith.constant dense<0.000000e+00> : vector<8x512xf32>
    %137 = tpu.matmul %130, %10, %cst_41 {dimension_numbers = #tpu.dot_dimension_numbers<[1], [0], [0], [1], [0, 0, 1, 1], [], []>} : vector<8x128xf32>, vector<128x512xf32>, vector<8x512xf32> -> vector<8x512xf32>
    %138 = arith.addf %136, %137 : vector<8x512xf32>
    %139 = vector.extract_strided_slice %138 {offsets = [0, 0], sizes = [8, 384], strides = [1, 1]} : vector<8x512xf32> to vector<8x384xf32>
    %140 = arith.negf %139 : vector<8x384xf32>
    %141 = math.exp %140 : vector<8x384xf32>
    %cst_42 = arith.constant 1.000000e+00 : f32
    %142 = vector.broadcast %cst_42 : f32 to vector<8x384xf32>
    %143 = arith.addf %142, %141 : vector<8x384xf32>
    %144 = arith.divf %142, %143 : vector<8x384xf32>
    %145 = vector.extract_strided_slice %144 {offsets = [0, 0], sizes = [8, 128], strides = [1, 1]} : vector<8x384xf32> to vector<8x128xf32>
    %146 = vector.extract_strided_slice %144 {offsets = [0, 128], sizes = [8, 128], strides = [1, 1]} : vector<8x384xf32> to vector<8x128xf32>
    %147 = vector.extract_strided_slice %144 {offsets = [0, 256], sizes = [8, 128], strides = [1, 1]} : vector<8x384xf32> to vector<8x128xf32>
    %148 = vector.extract_strided_slice %138 {offsets = [0, 384], sizes = [8, 128], strides = [1, 1]} : vector<8x512xf32> to vector<8x128xf32>
    %149 = math.tanh %148 : vector<8x128xf32>
    %150 = arith.mulf %146, %128 : vector<8x128xf32>
    %151 = arith.mulf %145, %149 : vector<8x128xf32>
    %152 = arith.addf %150, %151 : vector<8x128xf32>
    %153 = math.tanh %152 : vector<8x128xf32>
    %154 = arith.mulf %147, %153 : vector<8x128xf32>
    %155 = arith.index_cast %134 : i32 to index
    %c0_43 = arith.constant 0 : index
    %156 = vector.load %arg8[%155, %c0_43] : memref<64x128xf32, #tpu.memory_space<vmem>>, vector<8x128xf32>
    tpu.vector_store %arg8[%155, %c0_43], %154 {strides = array<i32>} : memref<64x128xf32, #tpu.memory_space<vmem>>, vector<8x128xf32>,
    %c6_i32 = arith.constant 6 : i32
    %c8_i32_44 = arith.constant 8 : i32
    %157 = arith.muli %c6_i32, %c8_i32_44 : i32
    %158 = tpu.assume_multiple %157, 8 : i32
    %159 = arith.index_cast %158 : i32 to index
    %c0_45 = arith.constant 0 : index
    %160 = vector.load %arg11[%159, %c0_45] : memref<64x512xf32, #tpu.memory_space<vmem>>, vector<8x512xf32>
    %cst_46 = arith.constant dense<0.000000e+00> : vector<8x512xf32>
    %161 = tpu.matmul %154, %10, %cst_46 {dimension_numbers = #tpu.dot_dimension_numbers<[1], [0], [0], [1], [0, 0, 1, 1], [], []>} : vector<8x128xf32>, vector<128x512xf32>, vector<8x512xf32> -> vector<8x512xf32>
    %162 = arith.addf %160, %161 : vector<8x512xf32>
    %163 = vector.extract_strided_slice %162 {offsets = [0, 0], sizes = [8, 384], strides = [1, 1]} : vector<8x512xf32> to vector<8x384xf32>
    %164 = arith.negf %163 : vector<8x384xf32>
    %165 = math.exp %164 : vector<8x384xf32>
    %cst_47 = arith.constant 1.000000e+00 : f32
    %166 = vector.broadcast %cst_47 : f32 to vector<8x384xf32>
    %167 = arith.addf %166, %165 : vector<8x384xf32>
    %168 = arith.divf %166, %167 : vector<8x384xf32>
    %169 = vector.extract_strided_slice %168 {offsets = [0, 0], sizes = [8, 128], strides = [1, 1]} : vector<8x384xf32> to vector<8x128xf32>
    %170 = vector.extract_strided_slice %168 {offsets = [0, 128], sizes = [8, 128], strides = [1, 1]} : vector<8x384xf32> to vector<8x128xf32>
    %171 = vector.extract_strided_slice %168 {offsets = [0, 256], sizes = [8, 128], strides = [1, 1]} : vector<8x384xf32> to vector<8x128xf32>
    %172 = vector.extract_strided_slice %162 {offsets = [0, 384], sizes = [8, 128], strides = [1, 1]} : vector<8x512xf32> to vector<8x128xf32>
    %173 = math.tanh %172 : vector<8x128xf32>
    %174 = arith.mulf %170, %152 : vector<8x128xf32>
    %175 = arith.mulf %169, %173 : vector<8x128xf32>
    %176 = arith.addf %174, %175 : vector<8x128xf32>
    %177 = math.tanh %176 : vector<8x128xf32>
    %178 = arith.mulf %171, %177 : vector<8x128xf32>
    %179 = arith.index_cast %158 : i32 to index
    %c0_48 = arith.constant 0 : index
    %180 = vector.load %arg8[%179, %c0_48] : memref<64x128xf32, #tpu.memory_space<vmem>>, vector<8x128xf32>
    tpu.vector_store %arg8[%179, %c0_48], %178 {strides = array<i32>} : memref<64x128xf32, #tpu.memory_space<vmem>>, vector<8x128xf32>,
    %c7_i32 = arith.constant 7 : i32
    %c8_i32_49 = arith.constant 8 : i32
    %181 = arith.muli %c7_i32, %c8_i32_49 : i32
    %182 = tpu.assume_multiple %181, 8 : i32
    %183 = arith.index_cast %182 : i32 to index
    %c0_50 = arith.constant 0 : index
    %184 = vector.load %arg11[%183, %c0_50] : memref<64x512xf32, #tpu.memory_space<vmem>>, vector<8x512xf32>
    %cst_51 = arith.constant dense<0.000000e+00> : vector<8x512xf32>
    %185 = tpu.matmul %178, %10, %cst_51 {dimension_numbers = #tpu.dot_dimension_numbers<[1], [0], [0], [1], [0, 0, 1, 1], [], []>} : vector<8x128xf32>, vector<128x512xf32>, vector<8x512xf32> -> vector<8x512xf32>
    %186 = arith.addf %184, %185 : vector<8x512xf32>
    %187 = vector.extract_strided_slice %186 {offsets = [0, 0], sizes = [8, 384], strides = [1, 1]} : vector<8x512xf32> to vector<8x384xf32>
    %188 = arith.negf %187 : vector<8x384xf32>
    %189 = math.exp %188 : vector<8x384xf32>
    %cst_52 = arith.constant 1.000000e+00 : f32
    %190 = vector.broadcast %cst_52 : f32 to vector<8x384xf32>
    %191 = arith.addf %190, %189 : vector<8x384xf32>
    %192 = arith.divf %190, %191 : vector<8x384xf32>
    %193 = vector.extract_strided_slice %192 {offsets = [0, 0], sizes = [8, 128], strides = [1, 1]} : vector<8x384xf32> to vector<8x128xf32>
    %194 = vector.extract_strided_slice %192 {offsets = [0, 128], sizes = [8, 128], strides = [1, 1]} : vector<8x384xf32> to vector<8x128xf32>
    %195 = vector.extract_strided_slice %192 {offsets = [0, 256], sizes = [8, 128], strides = [1, 1]} : vector<8x384xf32> to vector<8x128xf32>
    %196 = vector.extract_strided_slice %186 {offsets = [0, 384], sizes = [8, 128], strides = [1, 1]} : vector<8x512xf32> to vector<8x128xf32>
    %197 = math.tanh %196 : vector<8x128xf32>
    %198 = arith.mulf %194, %176 : vector<8x128xf32>
    %199 = arith.mulf %193, %197 : vector<8x128xf32>
    %200 = arith.addf %198, %199 : vector<8x128xf32>
    %201 = math.tanh %200 : vector<8x128xf32>
    %202 = arith.mulf %195, %201 : vector<8x128xf32>
    %203 = arith.index_cast %182 : i32 to index
    %c0_53 = arith.constant 0 : index
    %204 = vector.load %arg8[%203, %c0_53] : memref<64x128xf32, #tpu.memory_space<vmem>>, vector<8x128xf32>
    tpu.vector_store %arg8[%203, %c0_53], %202 {strides = array<i32>} : memref<64x128xf32, #tpu.memory_space<vmem>>, vector<8x128xf32>,
    %c8_i32_54 = arith.constant 8 : i32
    %c0_55 = arith.constant 0 : index
    %c0_56 = arith.constant 0 : index
    %205 = vector.load %arg9[%c0_55, %c0_56] : memref<8x128xf32, #tpu.memory_space<vmem>>, vector<8x128xf32>
    tpu.vector_store %arg9[%c0_55, %c0_56], %202 {strides = array<i32>} : memref<8x128xf32, #tpu.memory_space<vmem>>, vector<8x128xf32>,
    %c0_57 = arith.constant 0 : index
    %c0_58 = arith.constant 0 : index
    %206 = vector.load %arg10[%c0_57, %c0_58] : memref<8x128xf32, #tpu.memory_space<vmem>>, vector<8x128xf32>
    tpu.vector_store %arg10[%c0_57, %c0_58], %200 {strides = array<i32>} : memref<8x128xf32, #tpu.memory_space<vmem>>, vector<8x128xf32>,
    return
  }
  func.func @transform_0(%arg0: i32) -> (i32, i32) {
    %c0_i32 = arith.constant 0 : i32
    %c0_i32_0 = arith.constant 0 : i32
    return %arg0, %c0_i32 : i32, i32
  }
  func.func @transform_1(%arg0: i32) -> (i32, i32) {
    %c0_i32 = arith.constant 0 : i32
    %c0_i32_0 = arith.constant 0 : i32
    %c0_i32_1 = arith.constant 0 : i32
    return %c0_i32, %c0_i32_0 : i32, i32
  }
  func.func @transform_2(%arg0: i32) -> (i32, i32) {
    %c0_i32 = arith.constant 0 : i32
    %c0_i32_0 = arith.constant 0 : i32
    %c0_i32_1 = arith.constant 0 : i32
    return %c0_i32, %c0_i32_0 : i32, i32
  }
  func.func @transform_3(%arg0: i32) -> (i32, i32) {
    %c0_i32 = arith.constant 0 : i32
    %c0_i32_0 = arith.constant 0 : i32
    %c0_i32_1 = arith.constant 0 : i32
    return %c0_i32, %c0_i32_0 : i32, i32
  }
  func.func @transform_4(%arg0: i32) -> (i32, i32) {
    %c0_i32 = arith.constant 0 : i32
    %c0_i32_0 = arith.constant 0 : i32
    %c0_i32_1 = arith.constant 0 : i32
    return %c0_i32, %c0_i32_0 : i32, i32
  }
  func.func @transform_5(%arg0: i32) -> (i32, i32) {
    %c0_i32 = arith.constant 0 : i32
    %c0_i32_0 = arith.constant 0 : i32
    %c0_i32_1 = arith.constant 0 : i32
    return %c0_i32, %c0_i32_0 : i32, i32
  }
  func.func @transform_6(%arg0: i32) -> (i32, i32) {
    %c0_i32 = arith.constant 0 : i32
    %c0_i32_0 = arith.constant 0 : i32
    %c0_i32_1 = arith.constant 0 : i32
    return %c0_i32, %c0_i32_0 : i32, i32
  }
  func.func @transform_7(%arg0: i32) -> (i32, i32) {
    %c0_i32 = arith.constant 0 : i32
    %c0_i32_0 = arith.constant 0 : i32
    return %arg0, %c0_i32 : i32, i32
  }
}

module attributes {stable_mosaic.version = 11 : i64} {
  func.func @_lstm_layer_kernel(%arg0: i32, %arg1: memref<64x32xf32, #tpu.memory_space<vmem>>, %arg2: memref<32x512xf32, #tpu.memory_space<vmem>>, %arg3: memref<128x512xf32, #tpu.memory_space<vmem>>, %arg4: memref<1x512xf32, #tpu.memory_space<vmem>>, %arg5: memref<8x16xf32, #tpu.memory_space<vmem>>, %arg6: memref<16x256xf32, #tpu.memory_space<vmem>>, %arg7: memref<1x256xf32, #tpu.memory_space<vmem>>, %arg8: memref<64x128xf32, #tpu.memory_space<vmem>>, %arg9: memref<8x128xf32, #tpu.memory_space<vmem>>, %arg10: memref<8x128xf32, #tpu.memory_space<vmem>>, %arg11: memref<64x512xf32, #tpu.memory_space<vmem>>) attributes {dimension_semantics = [#tpu.dimension_semantics<arbitrary>], iteration_bounds = array<i64: 1>, scalar_prefetch = 0 : i64, scratch_operands = 3 : i64, tpu.core_type = #tpu.core_type<tc>, window_params = [{transform_indices = @transform_0, window_bounds = array<i64: 64, 32>}, {pipeline_mode = #tpu.pipeline_mode<synchronous>, transform_indices = @transform_1, window_bounds = array<i64: 32, 512>}, {pipeline_mode = #tpu.pipeline_mode<synchronous>, transform_indices = @transform_2, window_bounds = array<i64: 128, 512>}, {pipeline_mode = #tpu.pipeline_mode<synchronous>, transform_indices = @transform_3, window_bounds = array<i64: 1, 512>}, {pipeline_mode = #tpu.pipeline_mode<synchronous>, transform_indices = @transform_4, window_bounds = array<i64: 8, 16>}, {pipeline_mode = #tpu.pipeline_mode<synchronous>, transform_indices = @transform_5, window_bounds = array<i64: 16, 256>}, {pipeline_mode = #tpu.pipeline_mode<synchronous>, transform_indices = @transform_6, window_bounds = array<i64: 1, 256>}, {transform_indices = @transform_7, window_bounds = array<i64: 64, 128>}]} {
    %c0_i32 = arith.constant 0 : i32
    %0 = arith.cmpi eq, %arg0, %c0_i32 : i32
    %1 = arith.extui %0 : i1 to i32
    %c0_i32_0 = arith.constant 0 : i32
    %2 = arith.cmpi ne, %1, %c0_i32_0 : i32
    scf.if %2 {
      %c0_59 = arith.constant 0 : index
      %c0_60 = arith.constant 0 : index
      %207 = vector.load %arg5[%c0_59, %c0_60] : memref<8x16xf32, #tpu.memory_space<vmem>>, vector<8x16xf32>
      %c0_61 = arith.constant 0 : index
      %c0_62 = arith.constant 0 : index
      %208 = vector.load %arg6[%c0_61, %c0_62] : memref<16x256xf32, #tpu.memory_space<vmem>>, vector<16x256xf32>
      %cst_63 = arith.constant dense<0.000000e+00> : vector<8x256xf32>
      %209 = tpu.matmul %207, %208, %cst_63 {dimension_numbers = #tpu.dot_dimension_numbers<[1], [0], [0], [1], [0, 0, 1, 1], [], []>} : vector<8x16xf32>, vector<16x256xf32>, vector<8x256xf32> -> vector<8x256xf32>
      %c0_64 = arith.constant 0 : index
      %c0_65 = arith.constant 0 : index
      %210 = vector.load %arg7[%c0_64, %c0_65] : memref<1x256xf32, #tpu.memory_space<vmem>>, vector<1x256xf32>
      %211 = vector.broadcast %210 : vector<1x256xf32> to vector<8x256xf32>
      %212 = arith.addf %209, %211 : vector<8x256xf32>
      %213 = vector.extract_strided_slice %212 {offsets = [0, 0], sizes = [8, 128], strides = [1, 1]} : vector<8x256xf32> to vector<8x128xf32>
      %c0_66 = arith.constant 0 : index
      %c0_67 = arith.constant 0 : index
      %214 = vector.load %arg9[%c0_66, %c0_67] : memref<8x128xf32, #tpu.memory_space<vmem>>, vector<8x128xf32>
      tpu.vector_store %arg9[%c0_66, %c0_67], %213 {strides = array<i32>} : memref<8x128xf32, #tpu.memory_space<vmem>>, vector<8x128xf32>,
      %215 = vector.extract_strided_slice %212 {offsets = [0, 128], sizes = [8, 128], strides = [1, 1]} : vector<8x256xf32> to vector<8x128xf32>
      %c0_68 = arith.constant 0 : index
      %c0_69 = arith.constant 0 : index
      %216 = vector.load %arg10[%c0_68, %c0_69] : memref<8x128xf32, #tpu.memory_space<vmem>>, vector<8x128xf32>
      tpu.vector_store %arg10[%c0_68, %c0_69], %215 {strides = array<i32>} : memref<8x128xf32, #tpu.memory_space<vmem>>, vector<8x128xf32>,
    } else {
    }
    %c0 = arith.constant 0 : index
    %c0_1 = arith.constant 0 : index
    %3 = vector.load %arg1[%c0, %c0_1] : memref<64x32xf32, #tpu.memory_space<vmem>>, vector<64x32xf32>
    %c0_2 = arith.constant 0 : index
    %c0_3 = arith.constant 0 : index
    %4 = vector.load %arg2[%c0_2, %c0_3] : memref<32x512xf32, #tpu.memory_space<vmem>>, vector<32x512xf32>
    %cst = arith.constant dense<0.000000e+00> : vector<64x512xf32>
    %5 = tpu.matmul %3, %4, %cst {dimension_numbers = #tpu.dot_dimension_numbers<[1], [0], [0], [1], [0, 0, 1, 1], [], []>} : vector<64x32xf32>, vector<32x512xf32>, vector<64x512xf32> -> vector<64x512xf32>
    %c0_4 = arith.constant 0 : index
    %c0_5 = arith.constant 0 : index
    %6 = vector.load %arg4[%c0_4, %c0_5] : memref<1x512xf32, #tpu.memory_space<vmem>>, vector<1x512xf32>
    %7 = vector.broadcast %6 : vector<1x512xf32> to vector<64x512xf32>
    %8 = arith.addf %5, %7 : vector<64x512xf32>
    %c0_6 = arith.constant 0 : index
    %c0_7 = arith.constant 0 : index
    %9 = vector.load %arg11[%c0_6, %c0_7] : memref<64x512xf32, #tpu.memory_space<vmem>>, vector<64x512xf32>
    tpu.vector_store %arg11[%c0_6, %c0_7], %8 {strides = array<i32>} : memref<64x512xf32, #tpu.memory_space<vmem>>, vector<64x512xf32>,
    %c0_8 = arith.constant 0 : index
    %c0_9 = arith.constant 0 : index
    %10 = vector.load %arg3[%c0_8, %c0_9] : memref<128x512xf32, #tpu.memory_space<vmem>>, vector<128x512xf32>
    %c0_10 = arith.constant 0 : index
    %c0_11 = arith.constant 0 : index
    %11 = vector.load %arg9[%c0_10, %c0_11] : memref<8x128xf32, #tpu.memory_space<vmem>>, vector<8x128xf32>
    %c0_12 = arith.constant 0 : index
    %c0_13 = arith.constant 0 : index
    %12 = vector.load %arg10[%c0_12, %c0_13] : memref<8x128xf32, #tpu.memory_space<vmem>>, vector<8x128xf32>
    %c0_i32_14 = arith.constant 0 : i32
    %c8_i32 = arith.constant 8 : i32
    %13 = arith.muli %c0_i32_14, %c8_i32 : i32
    %14 = tpu.assume_multiple %13, 8 : i32
    %15 = arith.index_cast %14 : i32 to index
    %c0_15 = arith.constant 0 : index
    %16 = vector.load %arg11[%15, %c0_15] : memref<64x512xf32, #tpu.memory_space<vmem>>, vector<8x512xf32>
    %cst_16 = arith.constant dense<0.000000e+00> : vector<8x512xf32>
    %17 = tpu.matmul %11, %10, %cst_16 {dimension_numbers = #tpu.dot_dimension_numbers<[1], [0], [0], [1], [0, 0, 1, 1], [], []>} : vector<8x128xf32>, vector<128x512xf32>, vector<8x512xf32> -> vector<8x512xf32>
    %18 = arith.addf %16, %17 : vector<8x512xf32>
    %19 = vector.extract_strided_slice %18 {offsets = [0, 0], sizes = [8, 384], strides = [1, 1]} : vector<8x512xf32> to vector<8x384xf32>
    %20 = arith.negf %19 : vector<8x384xf32>
    %21 = math.exp %20 : vector<8x384xf32>
    %cst_17 = arith.constant 1.000000e+00 : f32
    %22 = vector.broadcast %cst_17 : f32 to vector<8x384xf32>
    %23 = arith.addf %22, %21 : vector<8x384xf32>
    %24 = arith.divf %22, %23 : vector<8x384xf32>
    %25 = vector.extract_strided_slice %24 {offsets = [0, 0], sizes = [8, 128], strides = [1, 1]} : vector<8x384xf32> to vector<8x128xf32>
    %26 = vector.extract_strided_slice %24 {offsets = [0, 128], sizes = [8, 128], strides = [1, 1]} : vector<8x384xf32> to vector<8x128xf32>
    %27 = vector.extract_strided_slice %24 {offsets = [0, 256], sizes = [8, 128], strides = [1, 1]} : vector<8x384xf32> to vector<8x128xf32>
    %28 = vector.extract_strided_slice %18 {offsets = [0, 384], sizes = [8, 128], strides = [1, 1]} : vector<8x512xf32> to vector<8x128xf32>
    %29 = math.tanh %28 : vector<8x128xf32>
    %30 = arith.mulf %26, %12 : vector<8x128xf32>
    %31 = arith.mulf %25, %29 : vector<8x128xf32>
    %32 = arith.addf %30, %31 : vector<8x128xf32>
    %33 = math.tanh %32 : vector<8x128xf32>
    %34 = arith.mulf %27, %33 : vector<8x128xf32>
    %35 = arith.index_cast %14 : i32 to index
    %c0_18 = arith.constant 0 : index
    %36 = vector.load %arg8[%35, %c0_18] : memref<64x128xf32, #tpu.memory_space<vmem>>, vector<8x128xf32>
    tpu.vector_store %arg8[%35, %c0_18], %34 {strides = array<i32>} : memref<64x128xf32, #tpu.memory_space<vmem>>, vector<8x128xf32>,
    %c1_i32 = arith.constant 1 : i32
    %c8_i32_19 = arith.constant 8 : i32
    %37 = arith.muli %c1_i32, %c8_i32_19 : i32
    %38 = tpu.assume_multiple %37, 8 : i32
    %39 = arith.index_cast %38 : i32 to index
    %c0_20 = arith.constant 0 : index
    %40 = vector.load %arg11[%39, %c0_20] : memref<64x512xf32, #tpu.memory_space<vmem>>, vector<8x512xf32>
    %cst_21 = arith.constant dense<0.000000e+00> : vector<8x512xf32>
    %41 = tpu.matmul %34, %10, %cst_21 {dimension_numbers = #tpu.dot_dimension_numbers<[1], [0], [0], [1], [0, 0, 1, 1], [], []>} : vector<8x128xf32>, vector<128x512xf32>, vector<8x512xf32> -> vector<8x512xf32>
    %42 = arith.addf %40, %41 : vector<8x512xf32>
    %43 = vector.extract_strided_slice %42 {offsets = [0, 0], sizes = [8, 384], strides = [1, 1]} : vector<8x512xf32> to vector<8x384xf32>
    %44 = arith.negf %43 : vector<8x384xf32>
    %45 = math.exp %44 : vector<8x384xf32>
    %cst_22 = arith.constant 1.000000e+00 : f32
    %46 = vector.broadcast %cst_22 : f32 to vector<8x384xf32>
    %47 = arith.addf %46, %45 : vector<8x384xf32>
    %48 = arith.divf %46, %47 : vector<8x384xf32>
    %49 = vector.extract_strided_slice %48 {offsets = [0, 0], sizes = [8, 128], strides = [1, 1]} : vector<8x384xf32> to vector<8x128xf32>
    %50 = vector.extract_strided_slice %48 {offsets = [0, 128], sizes = [8, 128], strides = [1, 1]} : vector<8x384xf32> to vector<8x128xf32>
    %51 = vector.extract_strided_slice %48 {offsets = [0, 256], sizes = [8, 128], strides = [1, 1]} : vector<8x384xf32> to vector<8x128xf32>
    %52 = vector.extract_strided_slice %42 {offsets = [0, 384], sizes = [8, 128], strides = [1, 1]} : vector<8x512xf32> to vector<8x128xf32>
    %53 = math.tanh %52 : vector<8x128xf32>
    %54 = arith.mulf %50, %32 : vector<8x128xf32>
    %55 = arith.mulf %49, %53 : vector<8x128xf32>
    %56 = arith.addf %54, %55 : vector<8x128xf32>
    %57 = math.tanh %56 : vector<8x128xf32>
    %58 = arith.mulf %51, %57 : vector<8x128xf32>
    %59 = arith.index_cast %38 : i32 to index
    %c0_23 = arith.constant 0 : index
    %60 = vector.load %arg8[%59, %c0_23] : memref<64x128xf32, #tpu.memory_space<vmem>>, vector<8x128xf32>
    tpu.vector_store %arg8[%59, %c0_23], %58 {strides = array<i32>} : memref<64x128xf32, #tpu.memory_space<vmem>>, vector<8x128xf32>,
    %c2_i32 = arith.constant 2 : i32
    %c8_i32_24 = arith.constant 8 : i32
    %61 = arith.muli %c2_i32, %c8_i32_24 : i32
    %62 = tpu.assume_multiple %61, 8 : i32
    %63 = arith.index_cast %62 : i32 to index
    %c0_25 = arith.constant 0 : index
    %64 = vector.load %arg11[%63, %c0_25] : memref<64x512xf32, #tpu.memory_space<vmem>>, vector<8x512xf32>
    %cst_26 = arith.constant dense<0.000000e+00> : vector<8x512xf32>
    %65 = tpu.matmul %58, %10, %cst_26 {dimension_numbers = #tpu.dot_dimension_numbers<[1], [0], [0], [1], [0, 0, 1, 1], [], []>} : vector<8x128xf32>, vector<128x512xf32>, vector<8x512xf32> -> vector<8x512xf32>
    %66 = arith.addf %64, %65 : vector<8x512xf32>
    %67 = vector.extract_strided_slice %66 {offsets = [0, 0], sizes = [8, 384], strides = [1, 1]} : vector<8x512xf32> to vector<8x384xf32>
    %68 = arith.negf %67 : vector<8x384xf32>
    %69 = math.exp %68 : vector<8x384xf32>
    %cst_27 = arith.constant 1.000000e+00 : f32
    %70 = vector.broadcast %cst_27 : f32 to vector<8x384xf32>
    %71 = arith.addf %70, %69 : vector<8x384xf32>
    %72 = arith.divf %70, %71 : vector<8x384xf32>
    %73 = vector.extract_strided_slice %72 {offsets = [0, 0], sizes = [8, 128], strides = [1, 1]} : vector<8x384xf32> to vector<8x128xf32>
    %74 = vector.extract_strided_slice %72 {offsets = [0, 128], sizes = [8, 128], strides = [1, 1]} : vector<8x384xf32> to vector<8x128xf32>
    %75 = vector.extract_strided_slice %72 {offsets = [0, 256], sizes = [8, 128], strides = [1, 1]} : vector<8x384xf32> to vector<8x128xf32>
    %76 = vector.extract_strided_slice %66 {offsets = [0, 384], sizes = [8, 128], strides = [1, 1]} : vector<8x512xf32> to vector<8x128xf32>
    %77 = math.tanh %76 : vector<8x128xf32>
    %78 = arith.mulf %74, %56 : vector<8x128xf32>
    %79 = arith.mulf %73, %77 : vector<8x128xf32>
    %80 = arith.addf %78, %79 : vector<8x128xf32>
    %81 = math.tanh %80 : vector<8x128xf32>
    %82 = arith.mulf %75, %81 : vector<8x128xf32>
    %83 = arith.index_cast %62 : i32 to index
    %c0_28 = arith.constant 0 : index
    %84 = vector.load %arg8[%83, %c0_28] : memref<64x128xf32, #tpu.memory_space<vmem>>, vector<8x128xf32>
    tpu.vector_store %arg8[%83, %c0_28], %82 {strides = array<i32>} : memref<64x128xf32, #tpu.memory_space<vmem>>, vector<8x128xf32>,
    %c3_i32 = arith.constant 3 : i32
    %c8_i32_29 = arith.constant 8 : i32
    %85 = arith.muli %c3_i32, %c8_i32_29 : i32
    %86 = tpu.assume_multiple %85, 8 : i32
    %87 = arith.index_cast %86 : i32 to index
    %c0_30 = arith.constant 0 : index
    %88 = vector.load %arg11[%87, %c0_30] : memref<64x512xf32, #tpu.memory_space<vmem>>, vector<8x512xf32>
    %cst_31 = arith.constant dense<0.000000e+00> : vector<8x512xf32>
    %89 = tpu.matmul %82, %10, %cst_31 {dimension_numbers = #tpu.dot_dimension_numbers<[1], [0], [0], [1], [0, 0, 1, 1], [], []>} : vector<8x128xf32>, vector<128x512xf32>, vector<8x512xf32> -> vector<8x512xf32>
    %90 = arith.addf %88, %89 : vector<8x512xf32>
    %91 = vector.extract_strided_slice %90 {offsets = [0, 0], sizes = [8, 384], strides = [1, 1]} : vector<8x512xf32> to vector<8x384xf32>
    %92 = arith.negf %91 : vector<8x384xf32>
    %93 = math.exp %92 : vector<8x384xf32>
    %cst_32 = arith.constant 1.000000e+00 : f32
    %94 = vector.broadcast %cst_32 : f32 to vector<8x384xf32>
    %95 = arith.addf %94, %93 : vector<8x384xf32>
    %96 = arith.divf %94, %95 : vector<8x384xf32>
    %97 = vector.extract_strided_slice %96 {offsets = [0, 0], sizes = [8, 128], strides = [1, 1]} : vector<8x384xf32> to vector<8x128xf32>
    %98 = vector.extract_strided_slice %96 {offsets = [0, 128], sizes = [8, 128], strides = [1, 1]} : vector<8x384xf32> to vector<8x128xf32>
    %99 = vector.extract_strided_slice %96 {offsets = [0, 256], sizes = [8, 128], strides = [1, 1]} : vector<8x384xf32> to vector<8x128xf32>
    %100 = vector.extract_strided_slice %90 {offsets = [0, 384], sizes = [8, 128], strides = [1, 1]} : vector<8x512xf32> to vector<8x128xf32>
    %101 = math.tanh %100 : vector<8x128xf32>
    %102 = arith.mulf %98, %80 : vector<8x128xf32>
    %103 = arith.mulf %97, %101 : vector<8x128xf32>
    %104 = arith.addf %102, %103 : vector<8x128xf32>
    %105 = math.tanh %104 : vector<8x128xf32>
    %106 = arith.mulf %99, %105 : vector<8x128xf32>
    %107 = arith.index_cast %86 : i32 to index
    %c0_33 = arith.constant 0 : index
    %108 = vector.load %arg8[%107, %c0_33] : memref<64x128xf32, #tpu.memory_space<vmem>>, vector<8x128xf32>
    tpu.vector_store %arg8[%107, %c0_33], %106 {strides = array<i32>} : memref<64x128xf32, #tpu.memory_space<vmem>>, vector<8x128xf32>,
    %c4_i32 = arith.constant 4 : i32
    %c8_i32_34 = arith.constant 8 : i32
    %109 = arith.muli %c4_i32, %c8_i32_34 : i32
    %110 = tpu.assume_multiple %109, 8 : i32
    %111 = arith.index_cast %110 : i32 to index
    %c0_35 = arith.constant 0 : index
    %112 = vector.load %arg11[%111, %c0_35] : memref<64x512xf32, #tpu.memory_space<vmem>>, vector<8x512xf32>
    %cst_36 = arith.constant dense<0.000000e+00> : vector<8x512xf32>
    %113 = tpu.matmul %106, %10, %cst_36 {dimension_numbers = #tpu.dot_dimension_numbers<[1], [0], [0], [1], [0, 0, 1, 1], [], []>} : vector<8x128xf32>, vector<128x512xf32>, vector<8x512xf32> -> vector<8x512xf32>
    %114 = arith.addf %112, %113 : vector<8x512xf32>
    %115 = vector.extract_strided_slice %114 {offsets = [0, 0], sizes = [8, 384], strides = [1, 1]} : vector<8x512xf32> to vector<8x384xf32>
    %116 = arith.negf %115 : vector<8x384xf32>
    %117 = math.exp %116 : vector<8x384xf32>
    %cst_37 = arith.constant 1.000000e+00 : f32
    %118 = vector.broadcast %cst_37 : f32 to vector<8x384xf32>
    %119 = arith.addf %118, %117 : vector<8x384xf32>
    %120 = arith.divf %118, %119 : vector<8x384xf32>
    %121 = vector.extract_strided_slice %120 {offsets = [0, 0], sizes = [8, 128], strides = [1, 1]} : vector<8x384xf32> to vector<8x128xf32>
    %122 = vector.extract_strided_slice %120 {offsets = [0, 128], sizes = [8, 128], strides = [1, 1]} : vector<8x384xf32> to vector<8x128xf32>
    %123 = vector.extract_strided_slice %120 {offsets = [0, 256], sizes = [8, 128], strides = [1, 1]} : vector<8x384xf32> to vector<8x128xf32>
    %124 = vector.extract_strided_slice %114 {offsets = [0, 384], sizes = [8, 128], strides = [1, 1]} : vector<8x512xf32> to vector<8x128xf32>
    %125 = math.tanh %124 : vector<8x128xf32>
    %126 = arith.mulf %122, %104 : vector<8x128xf32>
    %127 = arith.mulf %121, %125 : vector<8x128xf32>
    %128 = arith.addf %126, %127 : vector<8x128xf32>
    %129 = math.tanh %128 : vector<8x128xf32>
    %130 = arith.mulf %123, %129 : vector<8x128xf32>
    %131 = arith.index_cast %110 : i32 to index
    %c0_38 = arith.constant 0 : index
    %132 = vector.load %arg8[%131, %c0_38] : memref<64x128xf32, #tpu.memory_space<vmem>>, vector<8x128xf32>
    tpu.vector_store %arg8[%131, %c0_38], %130 {strides = array<i32>} : memref<64x128xf32, #tpu.memory_space<vmem>>, vector<8x128xf32>,
    %c5_i32 = arith.constant 5 : i32
    %c8_i32_39 = arith.constant 8 : i32
    %133 = arith.muli %c5_i32, %c8_i32_39 : i32
    %134 = tpu.assume_multiple %133, 8 : i32
    %135 = arith.index_cast %134 : i32 to index
    %c0_40 = arith.constant 0 : index
    %136 = vector.load %arg11[%135, %c0_40] : memref<64x512xf32, #tpu.memory_space<vmem>>, vector<8x512xf32>
    %cst_41 = arith.constant dense<0.000000e+00> : vector<8x512xf32>
    %137 = tpu.matmul %130, %10, %cst_41 {dimension_numbers = #tpu.dot_dimension_numbers<[1], [0], [0], [1], [0, 0, 1, 1], [], []>} : vector<8x128xf32>, vector<128x512xf32>, vector<8x512xf32> -> vector<8x512xf32>
    %138 = arith.addf %136, %137 : vector<8x512xf32>
    %139 = vector.extract_strided_slice %138 {offsets = [0, 0], sizes = [8, 384], strides = [1, 1]} : vector<8x512xf32> to vector<8x384xf32>
    %140 = arith.negf %139 : vector<8x384xf32>
    %141 = math.exp %140 : vector<8x384xf32>
    %cst_42 = arith.constant 1.000000e+00 : f32
    %142 = vector.broadcast %cst_42 : f32 to vector<8x384xf32>
    %143 = arith.addf %142, %141 : vector<8x384xf32>
    %144 = arith.divf %142, %143 : vector<8x384xf32>
    %145 = vector.extract_strided_slice %144 {offsets = [0, 0], sizes = [8, 128], strides = [1, 1]} : vector<8x384xf32> to vector<8x128xf32>
    %146 = vector.extract_strided_slice %144 {offsets = [0, 128], sizes = [8, 128], strides = [1, 1]} : vector<8x384xf32> to vector<8x128xf32>
    %147 = vector.extract_strided_slice %144 {offsets = [0, 256], sizes = [8, 128], strides = [1, 1]} : vector<8x384xf32> to vector<8x128xf32>
    %148 = vector.extract_strided_slice %138 {offsets = [0, 384], sizes = [8, 128], strides = [1, 1]} : vector<8x512xf32> to vector<8x128xf32>
    %149 = math.tanh %148 : vector<8x128xf32>
    %150 = arith.mulf %146, %128 : vector<8x128xf32>
    %151 = arith.mulf %145, %149 : vector<8x128xf32>
    %152 = arith.addf %150, %151 : vector<8x128xf32>
    %153 = math.tanh %152 : vector<8x128xf32>
    %154 = arith.mulf %147, %153 : vector<8x128xf32>
    %155 = arith.index_cast %134 : i32 to index
    %c0_43 = arith.constant 0 : index
    %156 = vector.load %arg8[%155, %c0_43] : memref<64x128xf32, #tpu.memory_space<vmem>>, vector<8x128xf32>
    tpu.vector_store %arg8[%155, %c0_43], %154 {strides = array<i32>} : memref<64x128xf32, #tpu.memory_space<vmem>>, vector<8x128xf32>,
    %c6_i32 = arith.constant 6 : i32
    %c8_i32_44 = arith.constant 8 : i32
    %157 = arith.muli %c6_i32, %c8_i32_44 : i32
    %158 = tpu.assume_multiple %157, 8 : i32
    %159 = arith.index_cast %158 : i32 to index
    %c0_45 = arith.constant 0 : index
    %160 = vector.load %arg11[%159, %c0_45] : memref<64x512xf32, #tpu.memory_space<vmem>>, vector<8x512xf32>
    %cst_46 = arith.constant dense<0.000000e+00> : vector<8x512xf32>
    %161 = tpu.matmul %154, %10, %cst_46 {dimension_numbers = #tpu.dot_dimension_numbers<[1], [0], [0], [1], [0, 0, 1, 1], [], []>} : vector<8x128xf32>, vector<128x512xf32>, vector<8x512xf32> -> vector<8x512xf32>
    %162 = arith.addf %160, %161 : vector<8x512xf32>
    %163 = vector.extract_strided_slice %162 {offsets = [0, 0], sizes = [8, 384], strides = [1, 1]} : vector<8x512xf32> to vector<8x384xf32>
    %164 = arith.negf %163 : vector<8x384xf32>
    %165 = math.exp %164 : vector<8x384xf32>
    %cst_47 = arith.constant 1.000000e+00 : f32
    %166 = vector.broadcast %cst_47 : f32 to vector<8x384xf32>
    %167 = arith.addf %166, %165 : vector<8x384xf32>
    %168 = arith.divf %166, %167 : vector<8x384xf32>
    %169 = vector.extract_strided_slice %168 {offsets = [0, 0], sizes = [8, 128], strides = [1, 1]} : vector<8x384xf32> to vector<8x128xf32>
    %170 = vector.extract_strided_slice %168 {offsets = [0, 128], sizes = [8, 128], strides = [1, 1]} : vector<8x384xf32> to vector<8x128xf32>
    %171 = vector.extract_strided_slice %168 {offsets = [0, 256], sizes = [8, 128], strides = [1, 1]} : vector<8x384xf32> to vector<8x128xf32>
    %172 = vector.extract_strided_slice %162 {offsets = [0, 384], sizes = [8, 128], strides = [1, 1]} : vector<8x512xf32> to vector<8x128xf32>
    %173 = math.tanh %172 : vector<8x128xf32>
    %174 = arith.mulf %170, %152 : vector<8x128xf32>
    %175 = arith.mulf %169, %173 : vector<8x128xf32>
    %176 = arith.addf %174, %175 : vector<8x128xf32>
    %177 = math.tanh %176 : vector<8x128xf32>
    %178 = arith.mulf %171, %177 : vector<8x128xf32>
    %179 = arith.index_cast %158 : i32 to index
    %c0_48 = arith.constant 0 : index
    %180 = vector.load %arg8[%179, %c0_48] : memref<64x128xf32, #tpu.memory_space<vmem>>, vector<8x128xf32>
    tpu.vector_store %arg8[%179, %c0_48], %178 {strides = array<i32>} : memref<64x128xf32, #tpu.memory_space<vmem>>, vector<8x128xf32>,
    %c7_i32 = arith.constant 7 : i32
    %c8_i32_49 = arith.constant 8 : i32
    %181 = arith.muli %c7_i32, %c8_i32_49 : i32
    %182 = tpu.assume_multiple %181, 8 : i32
    %183 = arith.index_cast %182 : i32 to index
    %c0_50 = arith.constant 0 : index
    %184 = vector.load %arg11[%183, %c0_50] : memref<64x512xf32, #tpu.memory_space<vmem>>, vector<8x512xf32>
    %cst_51 = arith.constant dense<0.000000e+00> : vector<8x512xf32>
    %185 = tpu.matmul %178, %10, %cst_51 {dimension_numbers = #tpu.dot_dimension_numbers<[1], [0], [0], [1], [0, 0, 1, 1], [], []>} : vector<8x128xf32>, vector<128x512xf32>, vector<8x512xf32> -> vector<8x512xf32>
    %186 = arith.addf %184, %185 : vector<8x512xf32>
    %187 = vector.extract_strided_slice %186 {offsets = [0, 0], sizes = [8, 384], strides = [1, 1]} : vector<8x512xf32> to vector<8x384xf32>
    %188 = arith.negf %187 : vector<8x384xf32>
    %189 = math.exp %188 : vector<8x384xf32>
    %cst_52 = arith.constant 1.000000e+00 : f32
    %190 = vector.broadcast %cst_52 : f32 to vector<8x384xf32>
    %191 = arith.addf %190, %189 : vector<8x384xf32>
    %192 = arith.divf %190, %191 : vector<8x384xf32>
    %193 = vector.extract_strided_slice %192 {offsets = [0, 0], sizes = [8, 128], strides = [1, 1]} : vector<8x384xf32> to vector<8x128xf32>
    %194 = vector.extract_strided_slice %192 {offsets = [0, 128], sizes = [8, 128], strides = [1, 1]} : vector<8x384xf32> to vector<8x128xf32>
    %195 = vector.extract_strided_slice %192 {offsets = [0, 256], sizes = [8, 128], strides = [1, 1]} : vector<8x384xf32> to vector<8x128xf32>
    %196 = vector.extract_strided_slice %186 {offsets = [0, 384], sizes = [8, 128], strides = [1, 1]} : vector<8x512xf32> to vector<8x128xf32>
    %197 = math.tanh %196 : vector<8x128xf32>
    %198 = arith.mulf %194, %176 : vector<8x128xf32>
    %199 = arith.mulf %193, %197 : vector<8x128xf32>
    %200 = arith.addf %198, %199 : vector<8x128xf32>
    %201 = math.tanh %200 : vector<8x128xf32>
    %202 = arith.mulf %195, %201 : vector<8x128xf32>
    %203 = arith.index_cast %182 : i32 to index
    %c0_53 = arith.constant 0 : index
    %204 = vector.load %arg8[%203, %c0_53] : memref<64x128xf32, #tpu.memory_space<vmem>>, vector<8x128xf32>
    tpu.vector_store %arg8[%203, %c0_53], %202 {strides = array<i32>} : memref<64x128xf32, #tpu.memory_space<vmem>>, vector<8x128xf32>,
    %c8_i32_54 = arith.constant 8 : i32
    %c0_55 = arith.constant 0 : index
    %c0_56 = arith.constant 0 : index
    %205 = vector.load %arg9[%c0_55, %c0_56] : memref<8x128xf32, #tpu.memory_space<vmem>>, vector<8x128xf32>
    tpu.vector_store %arg9[%c0_55, %c0_56], %202 {strides = array<i32>} : memref<8x128xf32, #tpu.memory_space<vmem>>, vector<8x128xf32>,
    %c0_57 = arith.constant 0 : index
    %c0_58 = arith.constant 0 : index
    %206 = vector.load %arg10[%c0_57, %c0_58] : memref<8x128xf32, #tpu.memory_space<vmem>>, vector<8x128xf32>
    tpu.vector_store %arg10[%c0_57, %c0_58], %200 {strides = array<i32>} : memref<8x128xf32, #tpu.memory_space<vmem>>, vector<8x128xf32>,
    return
  }
  func.func @transform_0(%arg0: i32) -> (i32, i32) {
    %c0_i32 = arith.constant 0 : i32
    %c0_i32_0 = arith.constant 0 : i32
    return %arg0, %c0_i32 : i32, i32
  }
  func.func @transform_1(%arg0: i32) -> (i32, i32) {
    %c0_i32 = arith.constant 0 : i32
    %c0_i32_0 = arith.constant 0 : i32
    %c0_i32_1 = arith.constant 0 : i32
    return %c0_i32, %c0_i32_0 : i32, i32
  }
  func.func @transform_2(%arg0: i32) -> (i32, i32) {
    %c0_i32 = arith.constant 0 : i32
    %c0_i32_0 = arith.constant 0 : i32
    %c0_i32_1 = arith.constant 0 : i32
    return %c0_i32, %c0_i32_0 : i32, i32
  }
  func.func @transform_3(%arg0: i32) -> (i32, i32) {
    %c0_i32 = arith.constant 0 : i32
    %c0_i32_0 = arith.constant 0 : i32
    %c0_i32_1 = arith.constant 0 : i32
    return %c0_i32, %c0_i32_0 : i32, i32
  }
  func.func @transform_4(%arg0: i32) -> (i32, i32) {
    %c0_i32 = arith.constant 0 : i32
    %c0_i32_0 = arith.constant 0 : i32
    %c0_i32_1 = arith.constant 0 : i32
    return %c0_i32, %c0_i32_0 : i32, i32
  }
  func.func @transform_5(%arg0: i32) -> (i32, i32) {
    %c0_i32 = arith.constant 0 : i32
    %c0_i32_0 = arith.constant 0 : i32
    %c0_i32_1 = arith.constant 0 : i32
    return %c0_i32, %c0_i32_0 : i32, i32
  }
  func.func @transform_6(%arg0: i32) -> (i32, i32) {
    %c0_i32 = arith.constant 0 : i32
    %c0_i32_0 = arith.constant 0 : i32
    %c0_i32_1 = arith.constant 0 : i32
    return %c0_i32, %c0_i32_0 : i32, i32
  }
  func.func @transform_7(%arg0: i32) -> (i32, i32) {
    %c0_i32 = arith.constant 0 : i32
    %c0_i32_0 = arith.constant 0 : i32
    return %arg0, %c0_i32 : i32, i32
  }
}

</mosaic_0001>

<llo_original>
// kernel: rnn_decoder_forward.3
$region0: #{rnn_decoder_forward.3}
  #allocation0 [shape = 'u32[]', space=smem, size = 0x4, offset = 0x4, fixed_abs, tag = 'smem constant byte address 0x4 - core index']
  #allocation1 [shape = 'u32[144,128]{1,0:T(1,128)}', space=vmem, size = 0x12000, scoped, tag = 'internal scratch']
  #allocation2 [shape = 'f32[8,128]{1,0:T(8,128)}', space=vmem, size = 0x1000, scoped, tag = 'scratch operand']
  #allocation3 [shape = 'f32[8,128]{1,0:T(8,128)}', space=vmem, size = 0x1000, scoped, tag = 'scratch operand']
  #allocation4 [shape = 'f32[64,512]{1,0:T(8,128)}', space=vmem, size = 0x20000, scoped, tag = 'scratch operand']
  %s0 = inlined_call_operand.vmem [shape: f32[64,128], index: 0, kind: input, shape index: {}]
  %s1 = inlined_call_operand.vmem [shape: f32[128,512], index: 1, kind: input, shape index: {}]
  %s2 = inlined_call_operand.hbm [shape: f32[128,512], index: 2, kind: input, shape index: {}]
  %s3 = inlined_call_operand.vmem [shape: f32[1,512], index: 3, kind: input, shape index: {}]
  %s4 = inlined_call_operand.vmem [shape: f32[8,16], index: 4, kind: input, shape index: {}]
  %s5 = inlined_call_operand.vmem [shape: f32[16,256], index: 5, kind: input, shape index: {}]
  %s6 = inlined_call_operand.vmem [shape: f32[1,256], index: 6, kind: input, shape index: {}]
  %s7 = inlined_call_operand.vmem [shape: f32[64,128], index: 7, kind: output, shape index: {}]
  %s8 = sld [smem:[#allocation0]]
  $region46: #{rnn_decoder_forward.3} parent=0
    _
  %s10 = ssub.s32 1, %s8
  %s11 = scalar_select 0, %s10, %s8
  $region1: #{rnn_decoder_forward.3} parent=0
    #allocation5 [shape = 'u8[262144]{0}', space=vmem, size = 0x40000, scoped, tag = 'input window, operand 2, single buffered']
    #allocation6 [shape = 's32[1]{0}', space=sflag, size = 0x4, scoped, tag = 'scoped memory for rnn_decoder_forward.3']
    %12 = vsyncpa [#allocation6], 0
    // Predicated region
    $region2: #{rnn_decoder_forward.3} parent=1 // pred_check
      _
    $region3: #{rnn_decoder_forward.3} parent=1 // pred_check_branch
      %14 = sbr.rel (0) target = $region5
    $region4: #{rnn_decoder_forward.3} parent=1 // pred_region
      _
    $region5: #{rnn_decoder_forward.3} parent=1 // pred_fallthru
      _
    // Predicated region
    $region6: #{rnn_decoder_forward.3} parent=1 // pred_check
      _
    $region7: #{rnn_decoder_forward.3} parent=1 // pred_check_branch
      %16 = sbr.rel (0) target = $region9
    $region8: #{rnn_decoder_forward.3} parent=1 // pred_region
      _
    $region9: #{rnn_decoder_forward.3} parent=1 // pred_fallthru
      _
    // Predicated region
    $region10: #{rnn_decoder_forward.3} parent=1 // pred_check
      _
    $region11: #{rnn_decoder_forward.3} parent=1 // pred_check_branch
      %18 = sbr.rel (0) target = $region13
    $region12: #{rnn_decoder_forward.3} parent=1 // pred_region
      %s20 = ssub.s32 8192, 8192
      %21 = vsyncadd [#allocation6], %s20
      %s22 = sshll.u32 [#allocation5], 4
      %s23 = int_to_ptr.vmem [resolvable:$true] %s22
      %28 = dma.hbm_to_vmem [thread:$0]  %s2, 8192, %s23, [#allocation6], 512, 512, 32
    $region13: #{rnn_decoder_forward.3} parent=1 // pred_fallthru
      _
    // Predicated region
    $region14: #{rnn_decoder_forward.3} parent=1 // pred_check
      _
    $region15: #{rnn_decoder_forward.3} parent=1 // pred_check_branch
      %30 = sbr.rel (0) target = $region17
    $region16: #{rnn_decoder_forward.3} parent=1 // pred_region
      _
    $region17: #{rnn_decoder_forward.3} parent=1 // pred_fallthru
      _
    // Predicated region
    $region18: #{rnn_decoder_forward.3} parent=1 // pred_check
      _
    $region19: #{rnn_decoder_forward.3} parent=1 // pred_check_branch
      %32 = sbr.rel (0) target = $region21
    $region20: #{rnn_decoder_forward.3} parent=1 // pred_region
      _
    $region21: #{rnn_decoder_forward.3} parent=1 // pred_fallthru
      _
    // Predicated region
    $region22: #{rnn_decoder_forward.3} parent=1 // pred_check
      _
    $region23: #{rnn_decoder_forward.3} parent=1 // pred_check_branch
      %34 = sbr.rel (0) target = $region25
    $region24: #{rnn_decoder_forward.3} parent=1 // pred_region
      _
    $region25: #{rnn_decoder_forward.3} parent=1 // pred_fallthru
      _
    // Predicated region
    $region26: #{rnn_decoder_forward.3} parent=1 // pred_check
      _
    $region27: #{rnn_decoder_forward.3} parent=1 // pred_check_branch
      %36 = sbr.rel (0) target = $region29
    $region28: #{rnn_decoder_forward.3} parent=1 // pred_region
      _
    $region29: #{rnn_decoder_forward.3} parent=1 // pred_fallthru
      _
    // Predicated region
    $region30: #{rnn_decoder_forward.3} parent=1 // pred_check
      _
    $region31: #{rnn_decoder_forward.3} parent=1 // pred_check_branch
      %38 = sbr.rel (0) target = $region33
    $region32: #{rnn_decoder_forward.3} parent=1 // pred_region
      %39 = dma.done [#allocation6], 8192
    $region33: #{rnn_decoder_forward.3} parent=1 // pred_fallthru
      _
    %p40 = scmp.eq.s32.totalorder 0, 0
    // Predicated region
    $region34: #{rnn_decoder_forward.3} parent=1 // pred_check
      %p41 = pneg %p40
    $region35: #{rnn_decoder_forward.3} parent=1 // pred_check_branch
      %43 = sbr.rel (%p41) target = $region37
    $region36: #{rnn_decoder_forward.3} parent=1 // pred_region
      %v44 = vld [vmem:[%s4] sm:$0xff]
      %v45 = vld [vmem:[%s5] sm:$0xff]
      %v46 = vld [vmem:[%s5 + $0x8] sm:$0xff]
      %v47 = vld [vmem:[%s5 + $0x10] sm:$0xff]
      %v48 = vld [vmem:[%s5 + $0x18] sm:$0xff]
      %v49 = vld [vmem:[%s6] sm:$0x3]
      %v51 = vlaneseq
      %v52 = vshrl.u32 %v51, 7
      %v53 = vsub.s32 0, %v52
      %v54 = vrot.slane %v49, %v53
      %v55 = vlaneseq
      %v56 = vshrl.u32 %v55, 7
      %v57 = vsub.s32 1, %v56
      %v58 = vrot.slane %v49, %v57
      %vm61 = vcmask 130048
      %v63 = vsel %vm61, %v44, 0
      %65 = vmatprep.subr.mxu0 %v46
      %66 = vmatpush1.msra.mxu0 %v45
      %67 = vmatprep.subr.mxu0 %v48
      %68 = vmatpush1.msra.mxu0 %v47
      %69 = vmatprep.subr.mxu0 0.0
      %70 = vmatpush1.msra.mxu0 0.0
      %71 = vmatprep.subr.mxu0 0.0
      %72 = vmatpush1.msra.mxu0 0.0
      %73 = vmatprep.subr.mxu0 0.0
      %74 = vmatpush1.msra.mxu0 0.0
      %75 = vmatprep.subr.mxu0 0.0
      %76 = vmatpush1.msra.mxu0 0.0
      %77 = vmatprep.subr.mxu0 0.0
      %78 = vmatpush1.msra.mxu0 0.0
      %79 = vmatprep.subr.mxu0 0.0
      %80 = vmatpush1.msra.mxu0 0.0
      %81 = vmatprep.subr.mxu0 0.0
      %82 = vmatpush1.msra.mxu0 0.0
      %83 = vmatprep.subr.mxu0 0.0
      %84 = vmatpush1.msra.mxu0 0.0
      %85 = vmatprep.subr.mxu0 0.0
      %86 = vmatpush1.msra.mxu0 0.0
      %87 = vmatprep.subr.mxu0 0.0
      %88 = vmatpush1.msra.mxu0 0.0
      %89 = vmatprep.subr.mxu0 0.0
      %90 = vmatpush1.msra.mxu0 0.0
      %91 = vmatprep.subr.mxu0 0.0
      %92 = vmatpush1.msra.mxu0 0.0
      %93 = vmatprep.subr.mxu0 0.0
      %94 = vmatpush1.msra.mxu0 0.0
      %95 = vmatprep.subr.mxu0 0.0
      %96 = vmatpush1.msra.mxu0 0.0
      %97 = vmatprep.subr.mxu0 0.0
      %98 = vmatpush1.msra.mxu0 0.0
      %99 = vmatprep.subr.mxu0 0.0
      %100 = vmatpush1.msra.mxu0 0.0
      %101 = vmatprep.subr.mxu0 0.0
      %102 = vmatpush1.msra.mxu0 0.0
      %103 = vmatprep.subr.mxu0 0.0
      %104 = vmatpush1.msra.mxu0 0.0
      %105 = vmatprep.subr.mxu0 0.0
      %106 = vmatpush1.msra.mxu0 0.0
      %107 = vmatprep.subr.mxu0 0.0
      %108 = vmatpush1.msra.mxu0 0.0
      %109 = vmatprep.subr.mxu0 0.0
      %110 = vmatpush1.msra.mxu0 0.0
      %111 = vmatprep.subr.mxu0 0.0
      %112 = vmatpush1.msra.mxu0 0.0
      %113 = vmatprep.subr.mxu0 0.0
      %114 = vmatpush1.msra.mxu0 0.0
      %115 = vmatprep.subr.mxu0 0.0
      %116 = vmatpush1.msra.mxu0 0.0
      %117 = vmatprep.subr.mxu0 0.0
      %118 = vmatpush1.msra.mxu0 0.0
      %119 = vmatprep.subr.mxu0 0.0
      %120 = vmatpush1.msra.mxu0 0.0
      %121 = vmatprep.subr.mxu0 0.0
      %122 = vmatpush1.msra.mxu0 0.0
      %123 = vmatprep.subr.mxu0 0.0
      %124 = vmatpush1.msra.mxu0 0.0
      %125 = vmatprep.subr.mxu0 0.0
      %126 = vmatpush1.msra.mxu0 0.0
      %127 = vmatprep.subr.mxu0 0.0
      %128 = vmatpush1.msra.mxu0 0.0
      %129 = vmatprep.mubr.f32.mxu0 0.0
      %130 = vmatmul.mubr.f32.gmra.mrb[0].mxu0 %v63
      %v131 = vpop.f32.mrb[0].mxu0
      %v132 = vadd.f32 %v54, %v131
      %v133 = vpop.f32.mrb[0].mxu0
      %v134 = vadd.f32 %v58, %v133
      %135 = vdwg.mxu0
      %136 = vst [vmem:[#allocation2] sm:$0xff] %v132
      %137 = vst [vmem:[#allocation3] sm:$0xff] %v134
    $region37: #{rnn_decoder_forward.3} parent=1 // pred_fallthru
      _
    %v138 = vld [vmem:[%s0] sm:$0xff]
    %v139 = vld [vmem:[%s0 + $0x8] sm:$0xff]
    %v140 = vld [vmem:[%s0 + $0x10] sm:$0xff]
    %v141 = vld [vmem:[%s0 + $0x18] sm:$0xff]
    %v142 = vld [vmem:[%s0 + $0x20] sm:$0xff]
    %v143 = vld [vmem:[%s0 + $0x28] sm:$0xff]
    %v144 = vld [vmem:[%s0 + $0x30] sm:$0xff]
    %v145 = vld [vmem:[%s0 + $0x38] sm:$0xff]
    %v146 = vld [vmem:[%s1] sm:$0xff]
    %v147 = vld [vmem:[%s1 + $0x8] sm:$0xff]
    %v148 = vld [vmem:[%s1 + $0x10] sm:$0xff]
    %v149 = vld [vmem:[%s1 + $0x18] sm:$0xff]
    %v150 = vld [vmem:[%s1 + $0x20] sm:$0xff]
    %v151 = vld [vmem:[%s1 + $0x28] sm:$0xff]
    %v152 = vld [vmem:[%s1 + $0x30] sm:$0xff]
    %v153 = vld [vmem:[%s1 + $0x38] sm:$0xff]
    %v154 = vld [vmem:[%s1 + $0x40] sm:$0xff]
    %v155 = vld [vmem:[%s1 + $0x48] sm:$0xff]
    %v156 = vld [vmem:[%s1 + $0x50] sm:$0xff]
    %v157 = vld [vmem:[%s1 + $0x58] sm:$0xff]
    %v158 = vld [vmem:[%s1 + $0x60] sm:$0xff]
    %v159 = vld [vmem:[%s1 + $0x68] sm:$0xff]
    %v160 = vld [vmem:[%s1 + $0x70] sm:$0xff]
    %v161 = vld [vmem:[%s1 + $0x78] sm:$0xff]
    %v162 = vld [vmem:[%s1 + $0x80] sm:$0xff]
    %v163 = vld [vmem:[%s1 + $0x88] sm:$0xff]
    %v164 = vld [vmem:[%s1 + $0x90] sm:$0xff]
    %v165 = vld [vmem:[%s1 + $0x98] sm:$0xff]
    %v166 = vld [vmem:[%s1 + $0xa0] sm:$0xff]
    %v167 = vld [vmem:[%s1 + $0xa8] sm:$0xff]
    %v168 = vld [vmem:[%s1 + $0xb0] sm:$0xff]
    %v169 = vld [vmem:[%s1 + $0xb8] sm:$0xff]
    %v170 = vld [vmem:[%s1 + $0xc0] sm:$0xff]
    %v171 = vld [vmem:[%s1 + $0xc8] sm:$0xff]
    %v172 = vld [vmem:[%s1 + $0xd0] sm:$0xff]
    %v173 = vld [vmem:[%s1 + $0xd8] sm:$0xff]
    %v174 = vld [vmem:[%s1 + $0xe0] sm:$0xff]
    %v175 = vld [vmem:[%s1 + $0xe8] sm:$0xff]
    %v176 = vld [vmem:[%s1 + $0xf0] sm:$0xff]
    %v177 = vld [vmem:[%s1 + $0xf8] sm:$0xff]
    %v178 = vld [vmem:[%s1 + $0x100] sm:$0xff]
    %v179 = vld [vmem:[%s1 + $0x108] sm:$0xff]
    %v180 = vld [vmem:[%s1 + $0x110] sm:$0xff]
    %v181 = vld [vmem:[%s1 + $0x118] sm:$0xff]
    %v182 = vld [vmem:[%s1 + $0x120] sm:$0xff]
    %v183 = vld [vmem:[%s1 + $0x128] sm:$0xff]
    %v184 = vld [vmem:[%s1 + $0x130] sm:$0xff]
    %v185 = vld [vmem:[%s1 + $0x138] sm:$0xff]
    %v186 = vld [vmem:[%s1 + $0x140] sm:$0xff]
    %v187 = vld [vmem:[%s1 + $0x148] sm:$0xff]
    %v188 = vld [vmem:[%s1 + $0x150] sm:$0xff]
    %v189 = vld [vmem:[%s1 + $0x158] sm:$0xff]
    %v190 = vld [vmem:[%s1 + $0x160] sm:$0xff]
    %v191 = vld [vmem:[%s1 + $0x168] sm:$0xff]
    %v192 = vld [vmem:[%s1 + $0x170] sm:$0xff]
    %v193 = vld [vmem:[%s1 + $0x178] sm:$0xff]
    %v194 = vld [vmem:[%s1 + $0x180] sm:$0xff]
    %v195 = vld [vmem:[%s1 + $0x188] sm:$0xff]
    %v196 = vld [vmem:[%s1 + $0x190] sm:$0xff]
    %v197 = vld [vmem:[%s1 + $0x198] sm:$0xff]
    %v198 = vld [vmem:[%s1 + $0x1a0] sm:$0xff]
    %v199 = vld [vmem:[%s1 + $0x1a8] sm:$0xff]
    %v200 = vld [vmem:[%s1 + $0x1b0] sm:$0xff]
    %v201 = vld [vmem:[%s1 + $0x1b8] sm:$0xff]
    %v202 = vld [vmem:[%s1 + $0x1c0] sm:$0xff]
    %v203 = vld [vmem:[%s1 + $0x1c8] sm:$0xff]
    %v204 = vld [vmem:[%s1 + $0x1d0] sm:$0xff]
    %v205 = vld [vmem:[%s1 + $0x1d8] sm:$0xff]
    %v206 = vld [vmem:[%s1 + $0x1e0] sm:$0xff]
    %v207 = vld [vmem:[%s1 + $0x1e8] sm:$0xff]
    %v208 = vld [vmem:[%s1 + $0x1f0] sm:$0xff]
    %v209 = vld [vmem:[%s1 + $0x1f8] sm:$0xff]
    %v210 = vld [vmem:[%s3] sm:$0xf]
    %v212 = vlaneseq
    %v213 = vshrl.u32 %v212, 7
    %v214 = vsub.s32 0, %v213
    %v215 = vrot.slane %v210, %v214
    %v216 = vlaneseq
    %v217 = vshrl.u32 %v216, 7
    %v218 = vsub.s32 1, %v217
    %v219 = vrot.slane %v210, %v218
    %v220 = vlaneseq
    %v221 = vshrl.u32 %v220, 7
    %v222 = vsub.s32 2, %v221
    %v223 = vrot.slane %v210, %v222
    %v224 = vlaneseq
    %v225 = vshrl.u32 %v224, 7
    %v226 = vsub.s32 3, %v225
    %v227 = vrot.slane %v210, %v226
    %232 = vmatprep.subr.mxu0 %v147
    %233 = vmatpush1.msra.mxu0 %v146
    %234 = vmatprep.subr.mxu0 %v151
    %235 = vmatpush1.msra.mxu0 %v150
    %236 = vmatprep.subr.mxu0 %v155
    %237 = vmatpush1.msra.mxu0 %v154
    %238 = vmatprep.subr.mxu0 %v159
    %239 = vmatpush1.msra.mxu0 %v158
    %240 = vmatprep.subr.mxu0 %v163
    %241 = vmatpush1.msra.mxu0 %v162
    %242 = vmatprep.subr.mxu0 %v167
    %243 = vmatpush1.msra.mxu0 %v166
    %244 = vmatprep.subr.mxu0 %v171
    %245 = vmatpush1.msra.mxu0 %v170
    %246 = vmatprep.subr.mxu0 %v175
    %247 = vmatpush1.msra.mxu0 %v174
    %248 = vmatprep.subr.mxu0 %v179
    %249 = vmatpush1.msra.mxu0 %v178
    %250 = vmatprep.subr.mxu0 %v183
    %251 = vmatpush1.msra.mxu0 %v182
    %252 = vmatprep.subr.mxu0 %v187
    %253 = vmatpush1.msra.mxu0 %v186
    %254 = vmatprep.subr.mxu0 %v191
    %255 = vmatpush1.msra.mxu0 %v190
    %256 = vmatprep.subr.mxu0 %v195
    %257 = vmatpush1.msra.mxu0 %v194
    %258 = vmatprep.subr.mxu0 %v199
    %259 = vmatpush1.msra.mxu0 %v198
    %260 = vmatprep.subr.mxu0 %v203
    %261 = vmatpush1.msra.mxu0 %v202
    %262 = vmatprep.subr.mxu0 %v207
    %263 = vmatpush1.msra.mxu0 %v206
    %264 = vmatprep.subr.mxu0 0.0
    %265 = vmatpush1.msra.mxu0 0.0
    %266 = vmatprep.subr.mxu0 0.0
    %267 = vmatpush1.msra.mxu0 0.0
    %268 = vmatprep.subr.mxu0 0.0
    %269 = vmatpush1.msra.mxu0 0.0
    %270 = vmatprep.subr.mxu0 0.0
    %271 = vmatpush1.msra.mxu0 0.0
    %272 = vmatprep.subr.mxu0 0.0
    %273 = vmatpush1.msra.mxu0 0.0
    %274 = vmatprep.subr.mxu0 0.0
    %275 = vmatpush1.msra.mxu0 0.0
    %276 = vmatprep.subr.mxu0 0.0
    %277 = vmatpush1.msra.mxu0 0.0
    %278 = vmatprep.subr.mxu0 0.0
    %279 = vmatpush1.msra.mxu0 0.0
    %280 = vmatprep.subr.mxu0 0.0
    %281 = vmatpush1.msra.mxu0 0.0
    %282 = vmatprep.subr.mxu0 0.0
    %283 = vmatpush1.msra.mxu0 0.0
    %284 = vmatprep.subr.mxu0 0.0
    %285 = vmatpush1.msra.mxu0 0.0
    %286 = vmatprep.subr.mxu0 0.0
    %287 = vmatpush1.msra.mxu0 0.0
    %288 = vmatprep.subr.mxu0 0.0
    %289 = vmatpush1.msra.mxu0 0.0
    %290 = vmatprep.subr.mxu0 0.0
    %291 = vmatpush1.msra.mxu0 0.0
    %292 = vmatprep.subr.mxu0 0.0
    %293 = vmatpush1.msra.mxu0 0.0
    %294 = vmatprep.subr.mxu0 0.0
    %295 = vmatpush1.msra.mxu0 0.0
    %296 = vmatprep.mubr.f32.mxu0 0.0
    %297 = vmatmul.mubr.f32.gmra.mrb[0].mxu0 %v138
    %v298 = vpop.f32.mrb[0].mxu0
    %v299 = vadd.f32 %v215, %v298
    %v300 = vpop.f32.mrb[0].mxu0
    %v301 = vadd.f32 %v219, %v300
    %302 = vmatprep.mubr.f32.mxu0 0.0
    %303 = vmatmul.mubr.f32.gmra.mrb[0].mxu0 %v139
    %v304 = vpop.f32.mrb[0].mxu0
    %v305 = vadd.f32 %v215, %v304
    %v306 = vpop.f32.mrb[0].mxu0
    %v307 = vadd.f32 %v219, %v306
    %308 = vmatprep.mubr.f32.mxu0 0.0
    %309 = vmatmul.mubr.f32.gmra.mrb[0].mxu0 %v140
    %v310 = vpop.f32.mrb[0].mxu0
    %v311 = vadd.f32 %v215, %v310
    %v312 = vpop.f32.mrb[0].mxu0
    %v313 = vadd.f32 %v219, %v312
    %314 = vmatprep.mubr.f32.mxu0 0.0
    %315 = vmatmul.mubr.f32.gmra.mrb[0].mxu0 %v141
    %v316 = vpop.f32.mrb[0].mxu0
    %v317 = vadd.f32 %v215, %v316
    %v318 = vpop.f32.mrb[0].mxu0
    %v319 = vadd.f32 %v219, %v318
    %320 = vmatprep.mubr.f32.mxu0 0.0
    %321 = vmatmul.mubr.f32.gmra.mrb[0].mxu0 %v142
    %v322 = vpop.f32.mrb[0].mxu0
    %v323 = vadd.f32 %v215, %v322
    %v324 = vpop.f32.mrb[0].mxu0
    %v325 = vadd.f32 %v219, %v324
    %326 = vmatprep.mubr.f32.mxu0 0.0
    %327 = vmatmul.mubr.f32.gmra.mrb[0].mxu0 %v143
    %v328 = vpop.f32.mrb[0].mxu0
    %v329 = vadd.f32 %v215, %v328
    %v330 = vpop.f32.mrb[0].mxu0
    %v331 = vadd.f32 %v219, %v330
    %332 = vmatprep.mubr.f32.mxu0 0.0
    %333 = vmatmul.mubr.f32.gmra.mrb[0].mxu0 %v144
    %v334 = vpop.f32.mrb[0].mxu0
    %v335 = vadd.f32 %v215, %v334
    %v336 = vpop.f32.mrb[0].mxu0
    %v337 = vadd.f32 %v219, %v336
    %338 = vmatprep.mubr.f32.mxu0 0.0
    %339 = vmatmul.mubr.f32.gmra.mrb[0].mxu0 %v145
    %v340 = vpop.f32.mrb[0].mxu0
    %v341 = vadd.f32 %v215, %v340
    %v342 = vpop.f32.mrb[0].mxu0
    %v343 = vadd.f32 %v219, %v342
    %344 = vdwg.mxu0
    %345 = vmatprep.subr.mxu0 %v149
    %346 = vmatpush1.msra.mxu0 %v148
    %347 = vmatprep.subr.mxu0 %v153
    %348 = vmatpush1.msra.mxu0 %v152
    %349 = vmatprep.subr.mxu0 %v157
    %350 = vmatpush1.msra.mxu0 %v156
    %351 = vmatprep.subr.mxu0 %v161
    %352 = vmatpush1.msra.mxu0 %v160
    %353 = vmatprep.subr.mxu0 %v165
    %354 = vmatpush1.msra.mxu0 %v164
    %355 = vmatprep.subr.mxu0 %v169
    %356 = vmatpush1.msra.mxu0 %v168
    %357 = vmatprep.subr.mxu0 %v173
    %358 = vmatpush1.msra.mxu0 %v172
    %359 = vmatprep.subr.mxu0 %v177
    %360 = vmatpush1.msra.mxu0 %v176
    %361 = vmatprep.subr.mxu0 %v181
    %362 = vmatpush1.msra.mxu0 %v180
    %363 = vmatprep.subr.mxu0 %v185
    %364 = vmatpush1.msra.mxu0 %v184
    %365 = vmatprep.subr.mxu0 %v189
    %366 = vmatpush1.msra.mxu0 %v188
    %367 = vmatprep.subr.mxu0 %v193
    %368 = vmatpush1.msra.mxu0 %v192
    %369 = vmatprep.subr.mxu0 %v197
    %370 = vmatpush1.msra.mxu0 %v196
    %371 = vmatprep.subr.mxu0 %v201
    %372 = vmatpush1.msra.mxu0 %v200
    %373 = vmatprep.subr.mxu0 %v205
    %374 = vmatpush1.msra.mxu0 %v204
    %375 = vmatprep.subr.mxu0 %v209
    %376 = vmatpush1.msra.mxu0 %v208
    %377 = vmatprep.subr.mxu0 0.0
    %378 = vmatpush1.msra.mxu0 0.0
    %379 = vmatprep.subr.mxu0 0.0
    %380 = vmatpush1.msra.mxu0 0.0
    %381 = vmatprep.subr.mxu0 0.0
    %382 = vmatpush1.msra.mxu0 0.0
    %383 = vmatprep.subr.mxu0 0.0
    %384 = vmatpush1.msra.mxu0 0.0
    %385 = vmatprep.subr.mxu0 0.0
    %386 = vmatpush1.msra.mxu0 0.0
    %387 = vmatprep.subr.mxu0 0.0
    %388 = vmatpush1.msra.mxu0 0.0
    %389 = vmatprep.subr.mxu0 0.0
    %390 = vmatpush1.msra.mxu0 0.0
    %391 = vmatprep.subr.mxu0 0.0
    %392 = vmatpush1.msra.mxu0 0.0
    %393 = vmatprep.subr.mxu0 0.0
    %394 = vmatpush1.msra.mxu0 0.0
    %395 = vmatprep.subr.mxu0 0.0
    %396 = vmatpush1.msra.mxu0 0.0
    %397 = vmatprep.subr.mxu0 0.0
    %398 = vmatpush1.msra.mxu0 0.0
    %399 = vmatprep.subr.mxu0 0.0
    %400 = vmatpush1.msra.mxu0 0.0
    %401 = vmatprep.subr.mxu0 0.0
    %402 = vmatpush1.msra.mxu0 0.0
    %403 = vmatprep.subr.mxu0 0.0
    %404 = vmatpush1.msra.mxu0 0.0
    %405 = vmatprep.subr.mxu0 0.0
    %406 = vmatpush1.msra.mxu0 0.0
    %407 = vmatprep.subr.mxu0 0.0
    %408 = vmatpush1.msra.mxu0 0.0
    %409 = vmatprep.mubr.f32.mxu0 0.0
    %410 = vmatmul.mubr.f32.gmra.mrb[0].mxu0 %v138
    %v411 = vpop.f32.mrb[0].mxu0
    %v412 = vadd.f32 %v223, %v411
    %v413 = vpop.f32.mrb[0].mxu0
    %v414 = vadd.f32 %v227, %v413
    %415 = vmatprep.mubr.f32.mxu0 0.0
    %416 = vmatmul.mubr.f32.gmra.mrb[0].mxu0 %v139
    %v417 = vpop.f32.mrb[0].mxu0
    %v418 = vadd.f32 %v223, %v417
    %v419 = vpop.f32.mrb[0].mxu0
    %v420 = vadd.f32 %v227, %v419
    %421 = vmatprep.mubr.f32.mxu0 0.0
    %422 = vmatmul.mubr.f32.gmra.mrb[0].mxu0 %v140
    %v423 = vpop.f32.mrb[0].mxu0
    %v424 = vadd.f32 %v223, %v423
    %v425 = vpop.f32.mrb[0].mxu0
    %v426 = vadd.f32 %v227, %v425
    %427 = vmatprep.mubr.f32.mxu0 0.0
    %428 = vmatmul.mubr.f32.gmra.mrb[0].mxu0 %v141
    %v429 = vpop.f32.mrb[0].mxu0
    %v430 = vadd.f32 %v223, %v429
    %v431 = vpop.f32.mrb[0].mxu0
    %v432 = vadd.f32 %v227, %v431
    %433 = vmatprep.mubr.f32.mxu0 0.0
    %434 = vmatmul.mubr.f32.gmra.mrb[0].mxu0 %v142
    %v435 = vpop.f32.mrb[0].mxu0
    %v436 = vadd.f32 %v223, %v435
    %v437 = vpop.f32.mrb[0].mxu0
    %v438 = vadd.f32 %v227, %v437
    %439 = vmatprep.mubr.f32.mxu0 0.0
    %440 = vmatmul.mubr.f32.gmra.mrb[0].mxu0 %v143
    %v441 = vpop.f32.mrb[0].mxu0
    %v442 = vadd.f32 %v223, %v441
    %v443 = vpop.f32.mrb[0].mxu0
    %v444 = vadd.f32 %v227, %v443
    %445 = vmatprep.mubr.f32.mxu0 0.0
    %446 = vmatmul.mubr.f32.gmra.mrb[0].mxu0 %v144
    %v447 = vpop.f32.mrb[0].mxu0
    %v448 = vadd.f32 %v223, %v447
    %v449 = vpop.f32.mrb[0].mxu0
    %v450 = vadd.f32 %v227, %v449
    %451 = vmatprep.mubr.f32.mxu0 0.0
    %452 = vmatmul.mubr.f32.gmra.mrb[0].mxu0 %v145
    %v453 = vpop.f32.mrb[0].mxu0
    %v454 = vadd.f32 %v223, %v453
    %v455 = vpop.f32.mrb[0].mxu0
    %v456 = vadd.f32 %v227, %v455
    %457 = vdwg.mxu0
    %458 = vst [vmem:[#allocation4] sm:$0xff] %v299
    %459 = vst [vmem:[#allocation4 + $0x8] sm:$0xff] %v301
    %460 = vst [vmem:[#allocation4 + $0x10] sm:$0xff] %v412
    %461 = vst [vmem:[#allocation4 + $0x18] sm:$0xff] %v414
    %462 = vst [vmem:[#allocation4 + $0x20] sm:$0xff] %v305
    %463 = vst [vmem:[#allocation4 + $0x28] sm:$0xff] %v307
    %464 = vst [vmem:[#allocation4 + $0x30] sm:$0xff] %v418
    %465 = vst [vmem:[#allocation4 + $0x38] sm:$0xff] %v420
    %466 = vst [vmem:[#allocation4 + $0x40] sm:$0xff] %v311
    %467 = vst [vmem:[#allocation4 + $0x48] sm:$0xff] %v313
    %468 = vst [vmem:[#allocation4 + $0x50] sm:$0xff] %v424
    %469 = vst [vmem:[#allocation4 + $0x58] sm:$0xff] %v426
    %470 = vst [vmem:[#allocation4 + $0x60] sm:$0xff] %v317
    %471 = vst [vmem:[#allocation4 + $0x68] sm:$0xff] %v319
    %472 = vst [vmem:[#allocation4 + $0x70] sm:$0xff] %v430
    %473 = vst [vmem:[#allocation4 + $0x78] sm:$0xff] %v432
    %474 = vst [vmem:[#allocation4 + $0x80] sm:$0xff] %v323
    %475 = vst [vmem:[#allocation4 + $0x88] sm:$0xff] %v325
    %476 = vst [vmem:[#allocation4 + $0x90] sm:$0xff] %v436
    %477 = vst [vmem:[#allocation4 + $0x98] sm:$0xff] %v438
    %478 = vst [vmem:[#allocation4 + $0xa0] sm:$0xff] %v329
    %479 = vst [vmem:[#allocation4 + $0xa8] sm:$0xff] %v331
    %480 = vst [vmem:[#allocation4 + $0xb0] sm:$0xff] %v442
    %481 = vst [vmem:[#allocation4 + $0xb8] sm:$0xff] %v444
    %482 = vst [vmem:[#allocation4 + $0xc0] sm:$0xff] %v335
    %483 = vst [vmem:[#allocation4 + $0xc8] sm:$0xff] %v337
    %484 = vst [vmem:[#allocation4 + $0xd0] sm:$0xff] %v448
    %485 = vst [vmem:[#allocation4 + $0xd8] sm:$0xff] %v450
    %486 = vst [vmem:[#allocation4 + $0xe0] sm:$0xff] %v341
    %487 = vst [vmem:[#allocation4 + $0xe8] sm:$0xff] %v343
    %488 = vst [vmem:[#allocation4 + $0xf0] sm:$0xff] %v454
    %489 = vst [vmem:[#allocation4 + $0xf8] sm:$0xff] %v456
    %v490 = vld [vmem:[#allocation5] sm:$0xff]
    %v491 = vld [vmem:[#allocation5 + $0x8] sm:$0xff]
    %v492 = vld [vmem:[#allocation5 + $0x10] sm:$0xff]
    %v493 = vld [vmem:[#allocation5 + $0x18] sm:$0xff]
    %v494 = vld [vmem:[#allocation5 + $0x20] sm:$0xff]
    %v495 = vld [vmem:[#allocation5 + $0x28] sm:$0xff]
    %v496 = vld [vmem:[#allocation5 + $0x30] sm:$0xff]
    %v497 = vld [vmem:[#allocation5 + $0x38] sm:$0xff]
    %v498 = vld [vmem:[#allocation5 + $0x40] sm:$0xff]
    %v499 = vld [vmem:[#allocation5 + $0x48] sm:$0xff]
    %v500 = vld [vmem:[#allocation5 + $0x50] sm:$0xff]
    %v501 = vld [vmem:[#allocation5 + $0x58] sm:$0xff]
    %v502 = vld [vmem:[#allocation5 + $0x60] sm:$0xff]
    %v503 = vld [vmem:[#allocation5 + $0x68] sm:$0xff]
    %v504 = vld [vmem:[#allocation5 + $0x70] sm:$0xff]
    %v505 = vld [vmem:[#allocation5 + $0x78] sm:$0xff]
    %v506 = vld [vmem:[#allocation5 + $0x80] sm:$0xff]
    %v507 = vld [vmem:[#allocation5 + $0x88] sm:$0xff]
    %v508 = vld [vmem:[#allocation5 + $0x90] sm:$0xff]
    %v509 = vld [vmem:[#allocation5 + $0x98] sm:$0xff]
    %v510 = vld [vmem:[#allocation5 + $0xa0] sm:$0xff]
    %v511 = vld [vmem:[#allocation5 + $0xa8] sm:$0xff]
    %v512 = vld [vmem:[#allocation5 + $0xb0] sm:$0xff]
    %v513 = vld [vmem:[#allocation5 + $0xb8] sm:$0xff]
    %v514 = vld [vmem:[#allocation5 + $0xc0] sm:$0xff]
    %v515 = vld [vmem:[#allocation5 + $0xc8] sm:$0xff]
    %v516 = vld [vmem:[#allocation5 + $0xd0] sm:$0xff]
    %v517 = vld [vmem:[#allocation5 + $0xd8] sm:$0xff]
    %v518 = vld [vmem:[#allocation5 + $0xe0] sm:$0xff]
    %v519 = vld [vmem:[#allocation5 + $0xe8] sm:$0xff]
    %v520 = vld [vmem:[#allocation5 + $0xf0] sm:$0xff]
    %v521 = vld [vmem:[#allocation5 + $0xf8] sm:$0xff]
    %v522 = vld [vmem:[#allocation5 + $0x100] sm:$0xff]
    %v523 = vld [vmem:[#allocation5 + $0x108] sm:$0xff]
    %v524 = vld [vmem:[#allocation5 + $0x110] sm:$0xff]
    %v525 = vld [vmem:[#allocation5 + $0x118] sm:$0xff]
    %v526 = vld [vmem:[#allocation5 + $0x120] sm:$0xff]
    %v527 = vld [vmem:[#allocation5 + $0x128] sm:$0xff]
    %v528 = vld [vmem:[#allocation5 + $0x130] sm:$0xff]
    %v529 = vld [vmem:[#allocation5 + $0x138] sm:$0xff]
    %v530 = vld [vmem:[#allocation5 + $0x140] sm:$0xff]
    %v531 = vld [vmem:[#allocation5 + $0x148] sm:$0xff]
    %v532 = vld [vmem:[#allocation5 + $0x150] sm:$0xff]
    %v533 = vld [vmem:[#allocation5 + $0x158] sm:$0xff]
    %v534 = vld [vmem:[#allocation5 + $0x160] sm:$0xff]
    %v535 = vld [vmem:[#allocation5 + $0x168] sm:$0xff]
    %v536 = vld [vmem:[#allocation5 + $0x170] sm:$0xff]
    %v537 = vld [vmem:[#allocation5 + $0x178] sm:$0xff]
    %v538 = vld [vmem:[#allocation5 + $0x180] sm:$0xff]
    %v539 = vld [vmem:[#allocation5 + $0x188] sm:$0xff]
    %v540 = vld [vmem:[#allocation5 + $0x190] sm:$0xff]
    %v541 = vld [vmem:[#allocation5 + $0x198] sm:$0xff]
    %v542 = vld [vmem:[#allocation5 + $0x1a0] sm:$0xff]
    %v543 = vld [vmem:[#allocation5 + $0x1a8] sm:$0xff]
    %v544 = vld [vmem:[#allocation5 + $0x1b0] sm:$0xff]
    %v545 = vld [vmem:[#allocation5 + $0x1b8] sm:$0xff]
    %v546 = vld [vmem:[#allocation5 + $0x1c0] sm:$0xff]
    %v547 = vld [vmem:[#allocation5 + $0x1c8] sm:$0xff]
    %v548 = vld [vmem:[#allocation5 + $0x1d0] sm:$0xff]
    %v549 = vld [vmem:[#allocation5 + $0x1d8] sm:$0xff]
    %v550 = vld [vmem:[#allocation5 + $0x1e0] sm:$0xff]
    %v551 = vld [vmem:[#allocation5 + $0x1e8] sm:$0xff]
    %v552 = vld [vmem:[#allocation5 + $0x1f0] sm:$0xff]
    %v553 = vld [vmem:[#allocation5 + $0x1f8] sm:$0xff]
    %v554 = vld [vmem:[#allocation2] sm:$0xff]
    %v555 = vld [vmem:[#allocation3] sm:$0xff]
    %s556 = smul.u32 0, 4
    %s557 = smul.addr %s556, 8
    %s558 = scalar_lea.vmem [#allocation4], %s557
    %v559 = vld [vmem:[%s558] sm:$0xff]
    %v560 = vld [vmem:[%s558 + $0x8] sm:$0xff]
    %v561 = vld [vmem:[%s558 + $0x10] sm:$0xff]
    %v562 = vld [vmem:[%s558 + $0x18] sm:$0xff]
    %563 = vmatprep.subr.mxu0 %v491
    %564 = vmatpush1.msra.mxu0 %v490
    %565 = vmatprep.subr.mxu0 %v495
    %566 = vmatpush1.msra.mxu0 %v494
    %567 = vmatprep.subr.mxu0 %v499
    %568 = vmatpush1.msra.mxu0 %v498
    %569 = vmatprep.subr.mxu0 %v503
    %570 = vmatpush1.msra.mxu0 %v502
    %571 = vmatprep.subr.mxu0 %v507
    %572 = vmatpush1.msra.mxu0 %v506
    %573 = vmatprep.subr.mxu0 %v511
    %574 = vmatpush1.msra.mxu0 %v510
    %575 = vmatprep.subr.mxu0 %v515
    %576 = vmatpush1.msra.mxu0 %v514
    %577 = vmatprep.subr.mxu0 %v519
    %578 = vmatpush1.msra.mxu0 %v518
    %579 = vmatprep.subr.mxu0 %v523
    %580 = vmatpush1.msra.mxu0 %v522
    %581 = vmatprep.subr.mxu0 %v527
    %582 = vmatpush1.msra.mxu0 %v526
    %583 = vmatprep.subr.mxu0 %v531
    %584 = vmatpush1.msra.mxu0 %v530
    %585 = vmatprep.subr.mxu0 %v535
    %586 = vmatpush1.msra.mxu0 %v534
    %587 = vmatprep.subr.mxu0 %v539
    %588 = vmatpush1.msra.mxu0 %v538
    %589 = vmatprep.subr.mxu0 %v543
    %590 = vmatpush1.msra.mxu0 %v542
    %591 = vmatprep.subr.mxu0 %v547
    %592 = vmatpush1.msra.mxu0 %v546
    %593 = vmatprep.subr.mxu0 %v551
    %594 = vmatpush1.msra.mxu0 %v550
    %595 = vmatprep.subr.mxu0 0.0
    %596 = vmatpush1.msra.mxu0 0.0
    %597 = vmatprep.subr.mxu0 0.0
    %598 = vmatpush1.msra.mxu0 0.0
    %599 = vmatprep.subr.mxu0 0.0
    %600 = vmatpush1.msra.mxu0 0.0
    %601 = vmatprep.subr.mxu0 0.0
    %602 = vmatpush1.msra.mxu0 0.0
    %603 = vmatprep.subr.mxu0 0.0
    %604 = vmatpush1.msra.mxu0 0.0
    %605 = vmatprep.subr.mxu0 0.0
    %606 = vmatpush1.msra.mxu0 0.0
    %607 = vmatprep.subr.mxu0 0.0
    %608 = vmatpush1.msra.mxu0 0.0
    %609 = vmatprep.subr.mxu0 0.0
    %610 = vmatpush1.msra.mxu0 0.0
    %611 = vmatprep.subr.mxu0 0.0
    %612 = vmatpush1.msra.mxu0 0.0
    %613 = vmatprep.subr.mxu0 0.0
    %614 = vmatpush1.msra.mxu0 0.0
    %615 = vmatprep.subr.mxu0 0.0
    %616 = vmatpush1.msra.mxu0 0.0
    %617 = vmatprep.subr.mxu0 0.0
    %618 = vmatpush1.msra.mxu0 0.0
    %619 = vmatprep.subr.mxu0 0.0
    %620 = vmatpush1.msra.mxu0 0.0
    %621 = vmatprep.subr.mxu0 0.0
    %622 = vmatpush1.msra.mxu0 0.0
    %623 = vmatprep.subr.mxu0 0.0
    %624 = vmatpush1.msra.mxu0 0.0
    %625 = vmatprep.subr.mxu0 0.0
    %626 = vmatpush1.msra.mxu0 0.0
    %627 = vmatprep.mubr.f32.mxu0 0.0
    %628 = vmatmul.mubr.f32.gmra.mrb[0].mxu0 %v554
    %v629 = vpop.f32.mrb[0].mxu0
    %v630 = vadd.f32 0.0, %v629
    %v631 = vpop.f32.mrb[0].mxu0
    %v632 = vadd.f32 0.0, %v631
    %633 = vdwg.mxu0
    %634 = vmatprep.subr.mxu0 %v493
    %635 = vmatpush1.msra.mxu0 %v492
    %636 = vmatprep.subr.mxu0 %v497
    %637 = vmatpush1.msra.mxu0 %v496
    %638 = vmatprep.subr.mxu0 %v501
    %639 = vmatpush1.msra.mxu0 %v500
    %640 = vmatprep.subr.mxu0 %v505
    %641 = vmatpush1.msra.mxu0 %v504
    %642 = vmatprep.subr.mxu0 %v509
    %643 = vmatpush1.msra.mxu0 %v508
    %644 = vmatprep.subr.mxu0 %v513
    %645 = vmatpush1.msra.mxu0 %v512
    %646 = vmatprep.subr.mxu0 %v517
    %647 = vmatpush1.msra.mxu0 %v516
    %648 = vmatprep.subr.mxu0 %v521
    %649 = vmatpush1.msra.mxu0 %v520
    %650 = vmatprep.subr.mxu0 %v525
    %651 = vmatpush1.msra.mxu0 %v524
    %652 = vmatprep.subr.mxu0 %v529
    %653 = vmatpush1.msra.mxu0 %v528
    %654 = vmatprep.subr.mxu0 %v533
    %655 = vmatpush1.msra.mxu0 %v532
    %656 = vmatprep.subr.mxu0 %v537
    %657 = vmatpush1.msra.mxu0 %v536
    %658 = vmatprep.subr.mxu0 %v541
    %659 = vmatpush1.msra.mxu0 %v540
    %660 = vmatprep.subr.mxu0 %v545
    %661 = vmatpush1.msra.mxu0 %v544
    %662 = vmatprep.subr.mxu0 %v549
    %663 = vmatpush1.msra.mxu0 %v548
    %664 = vmatprep.subr.mxu0 %v553
    %665 = vmatpush1.msra.mxu0 %v552
    %666 = vmatprep.subr.mxu0 0.0
    %667 = vmatpush1.msra.mxu0 0.0
    %668 = vmatprep.subr.mxu0 0.0
    %669 = vmatpush1.msra.mxu0 0.0
    %670 = vmatprep.subr.mxu0 0.0
    %671 = vmatpush1.msra.mxu0 0.0
    %672 = vmatprep.subr.mxu0 0.0
    %673 = vmatpush1.msra.mxu0 0.0
    %674 = vmatprep.subr.mxu0 0.0
    %675 = vmatpush1.msra.mxu0 0.0
    %676 = vmatprep.subr.mxu0 0.0
    %677 = vmatpush1.msra.mxu0 0.0
    %678 = vmatprep.subr.mxu0 0.0
    %679 = vmatpush1.msra.mxu0 0.0
    %680 = vmatprep.subr.mxu0 0.0
    %681 = vmatpush1.msra.mxu0 0.0
    %682 = vmatprep.subr.mxu0 0.0
    %683 = vmatpush1.msra.mxu0 0.0
    %684 = vmatprep.subr.mxu0 0.0
    %685 = vmatpush1.msra.mxu0 0.0
    %686 = vmatprep.subr.mxu0 0.0
    %687 = vmatpush1.msra.mxu0 0.0
    %688 = vmatprep.subr.mxu0 0.0
    %689 = vmatpush1.msra.mxu0 0.0
    %690 = vmatprep.subr.mxu0 0.0
    %691 = vmatpush1.msra.mxu0 0.0
    %692 = vmatprep.subr.mxu0 0.0
    %693 = vmatpush1.msra.mxu0 0.0
    %694 = vmatprep.subr.mxu0 0.0
    %695 = vmatpush1.msra.mxu0 0.0
    %696 = vmatprep.subr.mxu0 0.0
    %697 = vmatpush1.msra.mxu0 0.0
    %698 = vmatprep.mubr.f32.mxu0 0.0
    %699 = vmatmul.mubr.f32.gmra.mrb[0].mxu0 %v554
    %v700 = vpop.f32.mrb[0].mxu0
    %v701 = vadd.f32 0.0, %v700
    %v702 = vpop.f32.mrb[0].mxu0
    %v703 = vadd.f32 0.0, %v702
    %704 = vdwg.mxu0
    %v705 = vadd.f32 %v559, %v630
    %v706 = vadd.f32 %v560, %v632
    %v707 = vadd.f32 %v561, %v701
    %v708 = vadd.f32 %v562, %v703
    %v709 = vxor.u32 %v705, 2147483648
    %v710 = vxor.u32 %v706, 2147483648
    %v711 = vxor.u32 %v707, 2147483648
    %v712 = vmul.f32 %v709, 1.442695
    %v713 = vpow.pop %v712
    %v714 = vmul.f32 %v710, 1.442695
    %v715 = vpow.pop %v714
    %v716 = vmul.f32 %v711, 1.442695
    %v717 = vpow.pop %v716
    %v718 = vadd.f32 %v713, 1.0
    %v719 = vadd.f32 %v715, 1.0
    %v720 = vadd.f32 %v717, 1.0
    %v721 = vrcp.pop %v718
    %v722 = vmul.f32 1.0, %v721
    %v723 = vrcp.pop %v719
    %v724 = vmul.f32 1.0, %v723
    %v725 = vrcp.pop %v720
    %v726 = vmul.f32 1.0, %v725
    %v727 = vtanh.pop %v708
    %v728 = vmul.f32 %v724, %v555
    %v729 = vmul.f32 %v722, %v727
    %v730 = vadd.f32 %v728, %v729
    %v731 = vtanh.pop %v730
    %v732 = vmul.f32 %v726, %v731
    %733 = vst [vmem:[%s7] sm:$0xff] %v732
    %s734 = smul.u32 1, 4
    %s735 = smul.addr %s734, 8
    %s736 = scalar_lea.vmem [#allocation4], %s735
    %v737 = vld [vmem:[%s736] sm:$0xff]
    %v738 = vld [vmem:[%s736 + $0x8] sm:$0xff]
    %v739 = vld [vmem:[%s736 + $0x10] sm:$0xff]
    %v740 = vld [vmem:[%s736 + $0x18] sm:$0xff]
    %741 = vmatprep.subr.mxu0 %v491
    %742 = vmatpush1.msra.mxu0 %v490
    %743 = vmatprep.subr.mxu0 %v495
    %744 = vmatpush1.msra.mxu0 %v494
    %745 = vmatprep.subr.mxu0 %v499
    %746 = vmatpush1.msra.mxu0 %v498
    %747 = vmatprep.subr.mxu0 %v503
    %748 = vmatpush1.msra.mxu0 %v502
    %749 = vmatprep.subr.mxu0 %v507
    %750 = vmatpush1.msra.mxu0 %v506
    %751 = vmatprep.subr.mxu0 %v511
    %752 = vmatpush1.msra.mxu0 %v510
    %753 = vmatprep.subr.mxu0 %v515
    %754 = vmatpush1.msra.mxu0 %v514
    %755 = vmatprep.subr.mxu0 %v519
    %756 = vmatpush1.msra.mxu0 %v518
    %757 = vmatprep.subr.mxu0 %v523
    %758 = vmatpush1.msra.mxu0 %v522
    %759 = vmatprep.subr.mxu0 %v527
    %760 = vmatpush1.msra.mxu0 %v526
    %761 = vmatprep.subr.mxu0 %v531
    %762 = vmatpush1.msra.mxu0 %v530
    %763 = vmatprep.subr.mxu0 %v535
    %764 = vmatpush1.msra.mxu0 %v534
    %765 = vmatprep.subr.mxu0 %v539
    %766 = vmatpush1.msra.mxu0 %v538
    %767 = vmatprep.subr.mxu0 %v543
    %768 = vmatpush1.msra.mxu0 %v542
    %769 = vmatprep.subr.mxu0 %v547
    %770 = vmatpush1.msra.mxu0 %v546
    %771 = vmatprep.subr.mxu0 %v551
    %772 = vmatpush1.msra.mxu0 %v550
    %773 = vmatprep.subr.mxu0 0.0
    %774 = vmatpush1.msra.mxu0 0.0
    %775 = vmatprep.subr.mxu0 0.0
    %776 = vmatpush1.msra.mxu0 0.0
    %777 = vmatprep.subr.mxu0 0.0
    %778 = vmatpush1.msra.mxu0 0.0
    %779 = vmatprep.subr.mxu0 0.0
    %780 = vmatpush1.msra.mxu0 0.0
    %781 = vmatprep.subr.mxu0 0.0
    %782 = vmatpush1.msra.mxu0 0.0
    %783 = vmatprep.subr.mxu0 0.0
    %784 = vmatpush1.msra.mxu0 0.0
    %785 = vmatprep.subr.mxu0 0.0
    %786 = vmatpush1.msra.mxu0 0.0
    %787 = vmatprep.subr.mxu0 0.0
    %788 = vmatpush1.msra.mxu0 0.0
    %789 = vmatprep.subr.mxu0 0.0
    %790 = vmatpush1.msra.mxu0 0.0
    %791 = vmatprep.subr.mxu0 0.0
    %792 = vmatpush1.msra.mxu0 0.0
    %793 = vmatprep.subr.mxu0 0.0
    %794 = vmatpush1.msra.mxu0 0.0
    %795 = vmatprep.subr.mxu0 0.0
    %796 = vmatpush1.msra.mxu0 0.0
    %797 = vmatprep.subr.mxu0 0.0
    %798 = vmatpush1.msra.mxu0 0.0
    %799 = vmatprep.subr.mxu0 0.0
    %800 = vmatpush1.msra.mxu0 0.0
    %801 = vmatprep.subr.mxu0 0.0
    %802 = vmatpush1.msra.mxu0 0.0
    %803 = vmatprep.subr.mxu0 0.0
    %804 = vmatpush1.msra.mxu0 0.0
    %805 = vmatprep.mubr.f32.mxu0 0.0
    %806 = vmatmul.mubr.f32.gmra.mrb[0].mxu0 %v732
    %v807 = vpop.f32.mrb[0].mxu0
    %v808 = vadd.f32 0.0, %v807
    %v809 = vpop.f32.mrb[0].mxu0
    %v810 = vadd.f32 0.0, %v809
    %811 = vdwg.mxu0
    %812 = vmatprep.subr.mxu0 %v493
    %813 = vmatpush1.msra.mxu0 %v492
    %814 = vmatprep.subr.mxu0 %v497
    %815 = vmatpush1.msra.mxu0 %v496
    %816 = vmatprep.subr.mxu0 %v501
    %817 = vmatpush1.msra.mxu0 %v500
    %818 = vmatprep.subr.mxu0 %v505
    %819 = vmatpush1.msra.mxu0 %v504
    %820 = vmatprep.subr.mxu0 %v509
    %821 = vmatpush1.msra.mxu0 %v508
    %822 = vmatprep.subr.mxu0 %v513
    %823 = vmatpush1.msra.mxu0 %v512
    %824 = vmatprep.subr.mxu0 %v517
    %825 = vmatpush1.msra.mxu0 %v516
    %826 = vmatprep.subr.mxu0 %v521
    %827 = vmatpush1.msra.mxu0 %v520
    %828 = vmatprep.subr.mxu0 %v525
    %829 = vmatpush1.msra.mxu0 %v524
    %830 = vmatprep.subr.mxu0 %v529
    %831 = vmatpush1.msra.mxu0 %v528
    %832 = vmatprep.subr.mxu0 %v533
    %833 = vmatpush1.msra.mxu0 %v532
    %834 = vmatprep.subr.mxu0 %v537
    %835 = vmatpush1.msra.mxu0 %v536
    %836 = vmatprep.subr.mxu0 %v541
    %837 = vmatpush1.msra.mxu0 %v540
    %838 = vmatprep.subr.mxu0 %v545
    %839 = vmatpush1.msra.mxu0 %v544
    %840 = vmatprep.subr.mxu0 %v549
    %841 = vmatpush1.msra.mxu0 %v548
    %842 = vmatprep.subr.mxu0 %v553
    %843 = vmatpush1.msra.mxu0 %v552
    %844 = vmatprep.subr.mxu0 0.0
    %845 = vmatpush1.msra.mxu0 0.0
    %846 = vmatprep.subr.mxu0 0.0
    %847 = vmatpush1.msra.mxu0 0.0
    %848 = vmatprep.subr.mxu0 0.0
    %849 = vmatpush1.msra.mxu0 0.0
    %850 = vmatprep.subr.mxu0 0.0
    %851 = vmatpush1.msra.mxu0 0.0
    %852 = vmatprep.subr.mxu0 0.0
    %853 = vmatpush1.msra.mxu0 0.0
    %854 = vmatprep.subr.mxu0 0.0
    %855 = vmatpush1.msra.mxu0 0.0
    %856 = vmatprep.subr.mxu0 0.0
    %857 = vmatpush1.msra.mxu0 0.0
    %858 = vmatprep.subr.mxu0 0.0
    %859 = vmatpush1.msra.mxu0 0.0
    %860 = vmatprep.subr.mxu0 0.0
    %861 = vmatpush1.msra.mxu0 0.0
    %862 = vmatprep.subr.mxu0 0.0
    %863 = vmatpush1.msra.mxu0 0.0
    %864 = vmatprep.subr.mxu0 0.0
    %865 = vmatpush1.msra.mxu0 0.0
    %866 = vmatprep.subr.mxu0 0.0
    %867 = vmatpush1.msra.mxu0 0.0
    %868 = vmatprep.subr.mxu0 0.0
    %869 = vmatpush1.msra.mxu0 0.0
    %870 = vmatprep.subr.mxu0 0.0
    %871 = vmatpush1.msra.mxu0 0.0
    %872 = vmatprep.subr.mxu0 0.0
    %873 = vmatpush1.msra.mxu0 0.0
    %874 = vmatprep.subr.mxu0 0.0
    %875 = vmatpush1.msra.mxu0 0.0
    %876 = vmatprep.mubr.f32.mxu0 0.0
    %877 = vmatmul.mubr.f32.gmra.mrb[0].mxu0 %v732
    %v878 = vpop.f32.mrb[0].mxu0
    %v879 = vadd.f32 0.0, %v878
    %v880 = vpop.f32.mrb[0].mxu0
    %v881 = vadd.f32 0.0, %v880
    %882 = vdwg.mxu0
    %v883 = vadd.f32 %v737, %v808
    %v884 = vadd.f32 %v738, %v810
    %v885 = vadd.f32 %v739, %v879
    %v886 = vadd.f32 %v740, %v881
    %v887 = vxor.u32 %v883, 2147483648
    %v888 = vxor.u32 %v884, 2147483648
    %v889 = vxor.u32 %v885, 2147483648
    %v890 = vmul.f32 %v887, 1.442695
    %v891 = vpow.pop %v890
    %v892 = vmul.f32 %v888, 1.442695
    %v893 = vpow.pop %v892
    %v894 = vmul.f32 %v889, 1.442695
    %v895 = vpow.pop %v894
    %v896 = vadd.f32 %v891, 1.0
    %v897 = vadd.f32 %v893, 1.0
    %v898 = vadd.f32 %v895, 1.0
    %v899 = vrcp.pop %v896
    %v900 = vmul.f32 1.0, %v899
    %v901 = vrcp.pop %v897
    %v902 = vmul.f32 1.0, %v901
    %v903 = vrcp.pop %v898
    %v904 = vmul.f32 1.0, %v903
    %v905 = vtanh.pop %v886
    %v906 = vmul.f32 %v902, %v730
    %v907 = vmul.f32 %v900, %v905
    %v908 = vadd.f32 %v906, %v907
    %v909 = vtanh.pop %v908
    %v910 = vmul.f32 %v904, %v909
    %s911 = scalar_lea.vmem %s7, 8
    %912 = vst [vmem:[%s911] sm:$0xff] %v910
    %s913 = smul.u32 2, 4
    %s914 = smul.addr %s913, 8
    %s915 = scalar_lea.vmem [#allocation4], %s914
    %v916 = vld [vmem:[%s915] sm:$0xff]
    %v917 = vld [vmem:[%s915 + $0x8] sm:$0xff]
    %v918 = vld [vmem:[%s915 + $0x10] sm:$0xff]
    %v919 = vld [vmem:[%s915 + $0x18] sm:$0xff]
    %920 = vmatprep.subr.mxu0 %v491
    %921 = vmatpush1.msra.mxu0 %v490
    %922 = vmatprep.subr.mxu0 %v495
    %923 = vmatpush1.msra.mxu0 %v494
    %924 = vmatprep.subr.mxu0 %v499
    %925 = vmatpush1.msra.mxu0 %v498
    %926 = vmatprep.subr.mxu0 %v503
    %927 = vmatpush1.msra.mxu0 %v502
    %928 = vmatprep.subr.mxu0 %v507
    %929 = vmatpush1.msra.mxu0 %v506
    %930 = vmatprep.subr.mxu0 %v511
    %931 = vmatpush1.msra.mxu0 %v510
    %932 = vmatprep.subr.mxu0 %v515
    %933 = vmatpush1.msra.mxu0 %v514
    %934 = vmatprep.subr.mxu0 %v519
    %935 = vmatpush1.msra.mxu0 %v518
    %936 = vmatprep.subr.mxu0 %v523
    %937 = vmatpush1.msra.mxu0 %v522
    %938 = vmatprep.subr.mxu0 %v527
    %939 = vmatpush1.msra.mxu0 %v526
    %940 = vmatprep.subr.mxu0 %v531
    %941 = vmatpush1.msra.mxu0 %v530
    %942 = vmatprep.subr.mxu0 %v535
    %943 = vmatpush1.msra.mxu0 %v534
    %944 = vmatprep.subr.mxu0 %v539
    %945 = vmatpush1.msra.mxu0 %v538
    %946 = vmatprep.subr.mxu0 %v543
    %947 = vmatpush1.msra.mxu0 %v542
    %948 = vmatprep.subr.mxu0 %v547
    %949 = vmatpush1.msra.mxu0 %v546
    %950 = vmatprep.subr.mxu0 %v551
    %951 = vmatpush1.msra.mxu0 %v550
    %952 = vmatprep.subr.mxu0 0.0
    %953 = vmatpush1.msra.mxu0 0.0
    %954 = vmatprep.subr.mxu0 0.0
    %955 = vmatpush1.msra.mxu0 0.0
    %956 = vmatprep.subr.mxu0 0.0
    %957 = vmatpush1.msra.mxu0 0.0
    %958 = vmatprep.subr.mxu0 0.0
    %959 = vmatpush1.msra.mxu0 0.0
    %960 = vmatprep.subr.mxu0 0.0
    %961 = vmatpush1.msra.mxu0 0.0
    %962 = vmatprep.subr.mxu0 0.0
    %963 = vmatpush1.msra.mxu0 0.0
    %964 = vmatprep.subr.mxu0 0.0
    %965 = vmatpush1.msra.mxu0 0.0
    %966 = vmatprep.subr.mxu0 0.0
    %967 = vmatpush1.msra.mxu0 0.0
    %968 = vmatprep.subr.mxu0 0.0
    %969 = vmatpush1.msra.mxu0 0.0
    %970 = vmatprep.subr.mxu0 0.0
    %971 = vmatpush1.msra.mxu0 0.0
    %972 = vmatprep.subr.mxu0 0.0
    %973 = vmatpush1.msra.mxu0 0.0
    %974 = vmatprep.subr.mxu0 0.0
    %975 = vmatpush1.msra.mxu0 0.0
    %976 = vmatprep.subr.mxu0 0.0
    %977 = vmatpush1.msra.mxu0 0.0
    %978 = vmatprep.subr.mxu0 0.0
    %979 = vmatpush1.msra.mxu0 0.0
    %980 = vmatprep.subr.mxu0 0.0
    %981 = vmatpush1.msra.mxu0 0.0
    %982 = vmatprep.subr.mxu0 0.0
    %983 = vmatpush1.msra.mxu0 0.0
    %984 = vmatprep.mubr.f32.mxu0 0.0
    %985 = vmatmul.mubr.f32.gmra.mrb[0].mxu0 %v910
    %v986 = vpop.f32.mrb[0].mxu0
    %v987 = vadd.f32 0.0, %v986
    %v988 = vpop.f32.mrb[0].mxu0
    %v989 = vadd.f32 0.0, %v988
    %990 = vdwg.mxu0
    %991 = vmatprep.subr.mxu0 %v493
    %992 = vmatpush1.msra.mxu0 %v492
    %993 = vmatprep.subr.mxu0 %v497
    %994 = vmatpush1.msra.mxu0 %v496
    %995 = vmatprep.subr.mxu0 %v501
    %996 = vmatpush1.msra.mxu0 %v500
    %997 = vmatprep.subr.mxu0 %v505
    %998 = vmatpush1.msra.mxu0 %v504
    %999 = vmatprep.subr.mxu0 %v509
    %1000 = vmatpush1.msra.mxu0 %v508
    %1001 = vmatprep.subr.mxu0 %v513
    %1002 = vmatpush1.msra.mxu0 %v512
    %1003 = vmatprep.subr.mxu0 %v517
    %1004 = vmatpush1.msra.mxu0 %v516
    %1005 = vmatprep.subr.mxu0 %v521
    %1006 = vmatpush1.msra.mxu0 %v520
    %1007 = vmatprep.subr.mxu0 %v525
    %1008 = vmatpush1.msra.mxu0 %v524
    %1009 = vmatprep.subr.mxu0 %v529
    %1010 = vmatpush1.msra.mxu0 %v528
    %1011 = vmatprep.subr.mxu0 %v533
    %1012 = vmatpush1.msra.mxu0 %v532
    %1013 = vmatprep.subr.mxu0 %v537
    %1014 = vmatpush1.msra.mxu0 %v536
    %1015 = vmatprep.subr.mxu0 %v541
    %1016 = vmatpush1.msra.mxu0 %v540
    %1017 = vmatprep.subr.mxu0 %v545
    %1018 = vmatpush1.msra.mxu0 %v544
    %1019 = vmatprep.subr.mxu0 %v549
    %1020 = vmatpush1.msra.mxu0 %v548
    %1021 = vmatprep.subr.mxu0 %v553
    %1022 = vmatpush1.msra.mxu0 %v552
    %1023 = vmatprep.subr.mxu0 0.0
    %1024 = vmatpush1.msra.mxu0 0.0
    %1025 = vmatprep.subr.mxu0 0.0
    %1026 = vmatpush1.msra.mxu0 0.0
    %1027 = vmatprep.subr.mxu0 0.0
    %1028 = vmatpush1.msra.mxu0 0.0
    %1029 = vmatprep.subr.mxu0 0.0
    %1030 = vmatpush1.msra.mxu0 0.0
    %1031 = vmatprep.subr.mxu0 0.0
    %1032 = vmatpush1.msra.mxu0 0.0
    %1033 = vmatprep.subr.mxu0 0.0
    %1034 = vmatpush1.msra.mxu0 0.0
    %1035 = vmatprep.subr.mxu0 0.0
    %1036 = vmatpush1.msra.mxu0 0.0
    %1037 = vmatprep.subr.mxu0 0.0
    %1038 = vmatpush1.msra.mxu0 0.0
    %1039 = vmatprep.subr.mxu0 0.0
    %1040 = vmatpush1.msra.mxu0 0.0
    %1041 = vmatprep.subr.mxu0 0.0
    %1042 = vmatpush1.msra.mxu0 0.0
    %1043 = vmatprep.subr.mxu0 0.0
    %1044 = vmatpush1.msra.mxu0 0.0
    %1045 = vmatprep.subr.mxu0 0.0
    %1046 = vmatpush1.msra.mxu0 0.0
    %1047 = vmatprep.subr.mxu0 0.0
    %1048 = vmatpush1.msra.mxu0 0.0
    %1049 = vmatprep.subr.mxu0 0.0
    %1050 = vmatpush1.msra.mxu0 0.0
    %1051 = vmatprep.subr.mxu0 0.0
    %1052 = vmatpush1.msra.mxu0 0.0
    %1053 = vmatprep.subr.mxu0 0.0
    %1054 = vmatpush1.msra.mxu0 0.0
    %1055 = vmatprep.mubr.f32.mxu0 0.0
    %1056 = vmatmul.mubr.f32.gmra.mrb[0].mxu0 %v910
    %v1057 = vpop.f32.mrb[0].mxu0
    %v1058 = vadd.f32 0.0, %v1057
    %v1059 = vpop.f32.mrb[0].mxu0
    %v1060 = vadd.f32 0.0, %v1059
    %1061 = vdwg.mxu0
    %v1062 = vadd.f32 %v916, %v987
    %v1063 = vadd.f32 %v917, %v989
    %v1064 = vadd.f32 %v918, %v1058
    %v1065 = vadd.f32 %v919, %v1060
    %v1066 = vxor.u32 %v1062, 2147483648
    %v1067 = vxor.u32 %v1063, 2147483648
    %v1068 = vxor.u32 %v1064, 2147483648
    %v1069 = vmul.f32 %v1066, 1.442695
    %v1070 = vpow.pop %v1069
    %v1071 = vmul.f32 %v1067, 1.442695
    %v1072 = vpow.pop %v1071
    %v1073 = vmul.f32 %v1068, 1.442695
    %v1074 = vpow.pop %v1073
    %v1075 = vadd.f32 %v1070, 1.0
    %v1076 = vadd.f32 %v1072, 1.0
    %v1077 = vadd.f32 %v1074, 1.0
    %v1078 = vrcp.pop %v1075
    %v1079 = vmul.f32 1.0, %v1078
    %v1080 = vrcp.pop %v1076
    %v1081 = vmul.f32 1.0, %v1080
    %v1082 = vrcp.pop %v1077
    %v1083 = vmul.f32 1.0, %v1082
    %v1084 = vtanh.pop %v1065
    %v1085 = vmul.f32 %v1081, %v908
    %v1086 = vmul.f32 %v1079, %v1084
    %v1087 = vadd.f32 %v1085, %v1086
    %v1088 = vtanh.pop %v1087
    %v1089 = vmul.f32 %v1083, %v1088
    %s1090 = scalar_lea.vmem %s7, 16
    %1091 = vst [vmem:[%s1090] sm:$0xff] %v1089
    %s1092 = smul.u32 3, 4
    %s1093 = smul.addr %s1092, 8
    %s1094 = scalar_lea.vmem [#allocation4], %s1093
    %v1095 = vld [vmem:[%s1094] sm:$0xff]
    %v1096 = vld [vmem:[%s1094 + $0x8] sm:$0xff]
    %v1097 = vld [vmem:[%s1094 + $0x10] sm:$0xff]
    %v1098 = vld [vmem:[%s1094 + $0x18] sm:$0xff]
    %1099 = vmatprep.subr.mxu0 %v491
    %1100 = vmatpush1.msra.mxu0 %v490
    %1101 = vmatprep.subr.mxu0 %v495
    %1102 = vmatpush1.msra.mxu0 %v494
    %1103 = vmatprep.subr.mxu0 %v499
    %1104 = vmatpush1.msra.mxu0 %v498
    %1105 = vmatprep.subr.mxu0 %v503
    %1106 = vmatpush1.msra.mxu0 %v502
    %1107 = vmatprep.subr.mxu0 %v507
    %1108 = vmatpush1.msra.mxu0 %v506
    %1109 = vmatprep.subr.mxu0 %v511
    %1110 = vmatpush1.msra.mxu0 %v510
    %1111 = vmatprep.subr.mxu0 %v515
    %1112 = vmatpush1.msra.mxu0 %v514
    %1113 = vmatprep.subr.mxu0 %v519
    %1114 = vmatpush1.msra.mxu0 %v518
    %1115 = vmatprep.subr.mxu0 %v523
    %1116 = vmatpush1.msra.mxu0 %v522
    %1117 = vmatprep.subr.mxu0 %v527
    %1118 = vmatpush1.msra.mxu0 %v526
    %1119 = vmatprep.subr.mxu0 %v531
    %1120 = vmatpush1.msra.mxu0 %v530
    %1121 = vmatprep.subr.mxu0 %v535
    %1122 = vmatpush1.msra.mxu0 %v534
    %1123 = vmatprep.subr.mxu0 %v539
    %1124 = vmatpush1.msra.mxu0 %v538
    %1125 = vmatprep.subr.mxu0 %v543
    %1126 = vmatpush1.msra.mxu0 %v542
    %1127 = vmatprep.subr.mxu0 %v547
    %1128 = vmatpush1.msra.mxu0 %v546
    %1129 = vmatprep.subr.mxu0 %v551
    %1130 = vmatpush1.msra.mxu0 %v550
    %1131 = vmatprep.subr.mxu0 0.0
    %1132 = vmatpush1.msra.mxu0 0.0
    %1133 = vmatprep.subr.mxu0 0.0
    %1134 = vmatpush1.msra.mxu0 0.0
    %1135 = vmatprep.subr.mxu0 0.0
    %1136 = vmatpush1.msra.mxu0 0.0
    %1137 = vmatprep.subr.mxu0 0.0
    %1138 = vmatpush1.msra.mxu0 0.0
    %1139 = vmatprep.subr.mxu0 0.0
    %1140 = vmatpush1.msra.mxu0 0.0
    %1141 = vmatprep.subr.mxu0 0.0
    %1142 = vmatpush1.msra.mxu0 0.0
    %1143 = vmatprep.subr.mxu0 0.0
    %1144 = vmatpush1.msra.mxu0 0.0
    %1145 = vmatprep.subr.mxu0 0.0
    %1146 = vmatpush1.msra.mxu0 0.0
    %1147 = vmatprep.subr.mxu0 0.0
    %1148 = vmatpush1.msra.mxu0 0.0
    %1149 = vmatprep.subr.mxu0 0.0
    %1150 = vmatpush1.msra.mxu0 0.0
    %1151 = vmatprep.subr.mxu0 0.0
    %1152 = vmatpush1.msra.mxu0 0.0
    %1153 = vmatprep.subr.mxu0 0.0
    %1154 = vmatpush1.msra.mxu0 0.0
    %1155 = vmatprep.subr.mxu0 0.0
    %1156 = vmatpush1.msra.mxu0 0.0
    %1157 = vmatprep.subr.mxu0 0.0
    %1158 = vmatpush1.msra.mxu0 0.0
    %1159 = vmatprep.subr.mxu0 0.0
    %1160 = vmatpush1.msra.mxu0 0.0
    %1161 = vmatprep.subr.mxu0 0.0
    %1162 = vmatpush1.msra.mxu0 0.0
    %1163 = vmatprep.mubr.f32.mxu0 0.0
    %1164 = vmatmul.mubr.f32.gmra.mrb[0].mxu0 %v1089
    %v1165 = vpop.f32.mrb[0].mxu0
    %v1166 = vadd.f32 0.0, %v1165
    %v1167 = vpop.f32.mrb[0].mxu0
    %v1168 = vadd.f32 0.0, %v1167
    %1169 = vdwg.mxu0
    %1170 = vmatprep.subr.mxu0 %v493
    %1171 = vmatpush1.msra.mxu0 %v492
    %1172 = vmatprep.subr.mxu0 %v497
    %1173 = vmatpush1.msra.mxu0 %v496
    %1174 = vmatprep.subr.mxu0 %v501
    %1175 = vmatpush1.msra.mxu0 %v500
    %1176 = vmatprep.subr.mxu0 %v505
    %1177 = vmatpush1.msra.mxu0 %v504
    %1178 = vmatprep.subr.mxu0 %v509
    %1179 = vmatpush1.msra.mxu0 %v508
    %1180 = vmatprep.subr.mxu0 %v513
    %1181 = vmatpush1.msra.mxu0 %v512
    %1182 = vmatprep.subr.mxu0 %v517
    %1183 = vmatpush1.msra.mxu0 %v516
    %1184 = vmatprep.subr.mxu0 %v521
    %1185 = vmatpush1.msra.mxu0 %v520
    %1186 = vmatprep.subr.mxu0 %v525
    %1187 = vmatpush1.msra.mxu0 %v524
    %1188 = vmatprep.subr.mxu0 %v529
    %1189 = vmatpush1.msra.mxu0 %v528
    %1190 = vmatprep.subr.mxu0 %v533
    %1191 = vmatpush1.msra.mxu0 %v532
    %1192 = vmatprep.subr.mxu0 %v537
    %1193 = vmatpush1.msra.mxu0 %v536
    %1194 = vmatprep.subr.mxu0 %v541
    %1195 = vmatpush1.msra.mxu0 %v540
    %1196 = vmatprep.subr.mxu0 %v545
    %1197 = vmatpush1.msra.mxu0 %v544
    %1198 = vmatprep.subr.mxu0 %v549
    %1199 = vmatpush1.msra.mxu0 %v548
    %1200 = vmatprep.subr.mxu0 %v553
    %1201 = vmatpush1.msra.mxu0 %v552
    %1202 = vmatprep.subr.mxu0 0.0
    %1203 = vmatpush1.msra.mxu0 0.0
    %1204 = vmatprep.subr.mxu0 0.0
    %1205 = vmatpush1.msra.mxu0 0.0
    %1206 = vmatprep.subr.mxu0 0.0
    %1207 = vmatpush1.msra.mxu0 0.0
    %1208 = vmatprep.subr.mxu0 0.0
    %1209 = vmatpush1.msra.mxu0 0.0
    %1210 = vmatprep.subr.mxu0 0.0
    %1211 = vmatpush1.msra.mxu0 0.0
    %1212 = vmatprep.subr.mxu0 0.0
    %1213 = vmatpush1.msra.mxu0 0.0
    %1214 = vmatprep.subr.mxu0 0.0
    %1215 = vmatpush1.msra.mxu0 0.0
    %1216 = vmatprep.subr.mxu0 0.0
    %1217 = vmatpush1.msra.mxu0 0.0
    %1218 = vmatprep.subr.mxu0 0.0
    %1219 = vmatpush1.msra.mxu0 0.0
    %1220 = vmatprep.subr.mxu0 0.0
    %1221 = vmatpush1.msra.mxu0 0.0
    %1222 = vmatprep.subr.mxu0 0.0
    %1223 = vmatpush1.msra.mxu0 0.0
    %1224 = vmatprep.subr.mxu0 0.0
    %1225 = vmatpush1.msra.mxu0 0.0
    %1226 = vmatprep.subr.mxu0 0.0
    %1227 = vmatpush1.msra.mxu0 0.0
    %1228 = vmatprep.subr.mxu0 0.0
    %1229 = vmatpush1.msra.mxu0 0.0
    %1230 = vmatprep.subr.mxu0 0.0
    %1231 = vmatpush1.msra.mxu0 0.0
    %1232 = vmatprep.subr.mxu0 0.0
    %1233 = vmatpush1.msra.mxu0 0.0
    %1234 = vmatprep.mubr.f32.mxu0 0.0
    %1235 = vmatmul.mubr.f32.gmra.mrb[0].mxu0 %v1089
    %v1236 = vpop.f32.mrb[0].mxu0
    %v1237 = vadd.f32 0.0, %v1236
    %v1238 = vpop.f32.mrb[0].mxu0
    %v1239 = vadd.f32 0.0, %v1238
    %1240 = vdwg.mxu0
    %v1241 = vadd.f32 %v1095, %v1166
    %v1242 = vadd.f32 %v1096, %v1168
    %v1243 = vadd.f32 %v1097, %v1237
    %v1244 = vadd.f32 %v1098, %v1239
    %v1245 = vxor.u32 %v1241, 2147483648
    %v1246 = vxor.u32 %v1242, 2147483648
    %v1247 = vxor.u32 %v1243, 2147483648
    %v1248 = vmul.f32 %v1245, 1.442695
    %v1249 = vpow.pop %v1248
    %v1250 = vmul.f32 %v1246, 1.442695
    %v1251 = vpow.pop %v1250
    %v1252 = vmul.f32 %v1247, 1.442695
    %v1253 = vpow.pop %v1252
    %v1254 = vadd.f32 %v1249, 1.0
    %v1255 = vadd.f32 %v1251, 1.0
    %v1256 = vadd.f32 %v1253, 1.0
    %v1257 = vrcp.pop %v1254
    %v1258 = vmul.f32 1.0, %v1257
    %v1259 = vrcp.pop %v1255
    %v1260 = vmul.f32 1.0, %v1259
    %v1261 = vrcp.pop %v1256
    %v1262 = vmul.f32 1.0, %v1261
    %v1263 = vtanh.pop %v1244
    %v1264 = vmul.f32 %v1260, %v1087
    %v1265 = vmul.f32 %v1258, %v1263
    %v1266 = vadd.f32 %v1264, %v1265
    %v1267 = vtanh.pop %v1266
    %v1268 = vmul.f32 %v1262, %v1267
    %s1269 = scalar_lea.vmem %s7, 24
    %1270 = vst [vmem:[%s1269] sm:$0xff] %v1268
    %s1271 = smul.u32 4, 4
    %s1272 = smul.addr %s1271, 8
    %s1273 = scalar_lea.vmem [#allocation4], %s1272
    %v1274 = vld [vmem:[%s1273] sm:$0xff]
    %v1275 = vld [vmem:[%s1273 + $0x8] sm:$0xff]
    %v1276 = vld [vmem:[%s1273 + $0x10] sm:$0xff]
    %v1277 = vld [vmem:[%s1273 + $0x18] sm:$0xff]
    %1278 = vmatprep.subr.mxu0 %v491
    %1279 = vmatpush1.msra.mxu0 %v490
    %1280 = vmatprep.subr.mxu0 %v495
    %1281 = vmatpush1.msra.mxu0 %v494
    %1282 = vmatprep.subr.mxu0 %v499
    %1283 = vmatpush1.msra.mxu0 %v498
    %1284 = vmatprep.subr.mxu0 %v503
    %1285 = vmatpush1.msra.mxu0 %v502
    %1286 = vmatprep.subr.mxu0 %v507
    %1287 = vmatpush1.msra.mxu0 %v506
    %1288 = vmatprep.subr.mxu0 %v511
    %1289 = vmatpush1.msra.mxu0 %v510
    %1290 = vmatprep.subr.mxu0 %v515
    %1291 = vmatpush1.msra.mxu0 %v514
    %1292 = vmatprep.subr.mxu0 %v519
    %1293 = vmatpush1.msra.mxu0 %v518
    %1294 = vmatprep.subr.mxu0 %v523
    %1295 = vmatpush1.msra.mxu0 %v522
    %1296 = vmatprep.subr.mxu0 %v527
    %1297 = vmatpush1.msra.mxu0 %v526
    %1298 = vmatprep.subr.mxu0 %v531
    %1299 = vmatpush1.msra.mxu0 %v530
    %1300 = vmatprep.subr.mxu0 %v535
    %1301 = vmatpush1.msra.mxu0 %v534
    %1302 = vmatprep.subr.mxu0 %v539
    %1303 = vmatpush1.msra.mxu0 %v538
    %1304 = vmatprep.subr.mxu0 %v543
    %1305 = vmatpush1.msra.mxu0 %v542
    %1306 = vmatprep.subr.mxu0 %v547
    %1307 = vmatpush1.msra.mxu0 %v546
    %1308 = vmatprep.subr.mxu0 %v551
    %1309 = vmatpush1.msra.mxu0 %v550
    %1310 = vmatprep.subr.mxu0 0.0
    %1311 = vmatpush1.msra.mxu0 0.0
    %1312 = vmatprep.subr.mxu0 0.0
    %1313 = vmatpush1.msra.mxu0 0.0
    %1314 = vmatprep.subr.mxu0 0.0
    %1315 = vmatpush1.msra.mxu0 0.0
    %1316 = vmatprep.subr.mxu0 0.0
    %1317 = vmatpush1.msra.mxu0 0.0
    %1318 = vmatprep.subr.mxu0 0.0
    %1319 = vmatpush1.msra.mxu0 0.0
    %1320 = vmatprep.subr.mxu0 0.0
    %1321 = vmatpush1.msra.mxu0 0.0
    %1322 = vmatprep.subr.mxu0 0.0
    %1323 = vmatpush1.msra.mxu0 0.0
    %1324 = vmatprep.subr.mxu0 0.0
    %1325 = vmatpush1.msra.mxu0 0.0
    %1326 = vmatprep.subr.mxu0 0.0
    %1327 = vmatpush1.msra.mxu0 0.0
    %1328 = vmatprep.subr.mxu0 0.0
    %1329 = vmatpush1.msra.mxu0 0.0
    %1330 = vmatprep.subr.mxu0 0.0
    %1331 = vmatpush1.msra.mxu0 0.0
    %1332 = vmatprep.subr.mxu0 0.0
    %1333 = vmatpush1.msra.mxu0 0.0
    %1334 = vmatprep.subr.mxu0 0.0
    %1335 = vmatpush1.msra.mxu0 0.0
    %1336 = vmatprep.subr.mxu0 0.0
    %1337 = vmatpush1.msra.mxu0 0.0
    %1338 = vmatprep.subr.mxu0 0.0
    %1339 = vmatpush1.msra.mxu0 0.0
    %1340 = vmatprep.subr.mxu0 0.0
    %1341 = vmatpush1.msra.mxu0 0.0
    %1342 = vmatprep.mubr.f32.mxu0 0.0
    %1343 = vmatmul.mubr.f32.gmra.mrb[0].mxu0 %v1268
    %v1344 = vpop.f32.mrb[0].mxu0
    %v1345 = vadd.f32 0.0, %v1344
    %v1346 = vpop.f32.mrb[0].mxu0
    %v1347 = vadd.f32 0.0, %v1346
    %1348 = vdwg.mxu0
    %1349 = vmatprep.subr.mxu0 %v493
    %1350 = vmatpush1.msra.mxu0 %v492
    %1351 = vmatprep.subr.mxu0 %v497
    %1352 = vmatpush1.msra.mxu0 %v496
    %1353 = vmatprep.subr.mxu0 %v501
    %1354 = vmatpush1.msra.mxu0 %v500
    %1355 = vmatprep.subr.mxu0 %v505
    %1356 = vmatpush1.msra.mxu0 %v504
    %1357 = vmatprep.subr.mxu0 %v509
    %1358 = vmatpush1.msra.mxu0 %v508
    %1359 = vmatprep.subr.mxu0 %v513
    %1360 = vmatpush1.msra.mxu0 %v512
    %1361 = vmatprep.subr.mxu0 %v517
    %1362 = vmatpush1.msra.mxu0 %v516
    %1363 = vmatprep.subr.mxu0 %v521
    %1364 = vmatpush1.msra.mxu0 %v520
    %1365 = vmatprep.subr.mxu0 %v525
    %1366 = vmatpush1.msra.mxu0 %v524
    %1367 = vmatprep.subr.mxu0 %v529
    %1368 = vmatpush1.msra.mxu0 %v528
    %1369 = vmatprep.subr.mxu0 %v533
    %1370 = vmatpush1.msra.mxu0 %v532
    %1371 = vmatprep.subr.mxu0 %v537
    %1372 = vmatpush1.msra.mxu0 %v536
    %1373 = vmatprep.subr.mxu0 %v541
    %1374 = vmatpush1.msra.mxu0 %v540
    %1375 = vmatprep.subr.mxu0 %v545
    %1376 = vmatpush1.msra.mxu0 %v544
    %1377 = vmatprep.subr.mxu0 %v549
    %1378 = vmatpush1.msra.mxu0 %v548
    %1379 = vmatprep.subr.mxu0 %v553
    %1380 = vmatpush1.msra.mxu0 %v552
    %1381 = vmatprep.subr.mxu0 0.0
    %1382 = vmatpush1.msra.mxu0 0.0
    %1383 = vmatprep.subr.mxu0 0.0
    %1384 = vmatpush1.msra.mxu0 0.0
    %1385 = vmatprep.subr.mxu0 0.0
    %1386 = vmatpush1.msra.mxu0 0.0
    %1387 = vmatprep.subr.mxu0 0.0
    %1388 = vmatpush1.msra.mxu0 0.0
    %1389 = vmatprep.subr.mxu0 0.0
    %1390 = vmatpush1.msra.mxu0 0.0
    %1391 = vmatprep.subr.mxu0 0.0
    %1392 = vmatpush1.msra.mxu0 0.0
    %1393 = vmatprep.subr.mxu0 0.0
    %1394 = vmatpush1.msra.mxu0 0.0
    %1395 = vmatprep.subr.mxu0 0.0
    %1396 = vmatpush1.msra.mxu0 0.0
    %1397 = vmatprep.subr.mxu0 0.0
    %1398 = vmatpush1.msra.mxu0 0.0
    %1399 = vmatprep.subr.mxu0 0.0
    %1400 = vmatpush1.msra.mxu0 0.0
    %1401 = vmatprep.subr.mxu0 0.0
    %1402 = vmatpush1.msra.mxu0 0.0
    %1403 = vmatprep.subr.mxu0 0.0
    %1404 = vmatpush1.msra.mxu0 0.0
    %1405 = vmatprep.subr.mxu0 0.0
    %1406 = vmatpush1.msra.mxu0 0.0
    %1407 = vmatprep.subr.mxu0 0.0
    %1408 = vmatpush1.msra.mxu0 0.0
    %1409 = vmatprep.subr.mxu0 0.0
    %1410 = vmatpush1.msra.mxu0 0.0
    %1411 = vmatprep.subr.mxu0 0.0
    %1412 = vmatpush1.msra.mxu0 0.0
    %1413 = vmatprep.mubr.f32.mxu0 0.0
    %1414 = vmatmul.mubr.f32.gmra.mrb[0].mxu0 %v1268
    %v1415 = vpop.f32.mrb[0].mxu0
    %v1416 = vadd.f32 0.0, %v1415
    %v1417 = vpop.f32.mrb[0].mxu0
    %v1418 = vadd.f32 0.0, %v1417
    %1419 = vdwg.mxu0
    %v1420 = vadd.f32 %v1274, %v1345
    %v1421 = vadd.f32 %v1275, %v1347
    %v1422 = vadd.f32 %v1276, %v1416
    %v1423 = vadd.f32 %v1277, %v1418
    %v1424 = vxor.u32 %v1420, 2147483648
    %v1425 = vxor.u32 %v1421, 2147483648
    %v1426 = vxor.u32 %v1422, 2147483648
    %v1427 = vmul.f32 %v1424, 1.442695
    %v1428 = vpow.pop %v1427
    %v1429 = vmul.f32 %v1425, 1.442695
    %v1430 = vpow.pop %v1429
    %v1431 = vmul.f32 %v1426, 1.442695
    %v1432 = vpow.pop %v1431
    %v1433 = vadd.f32 %v1428, 1.0
    %v1434 = vadd.f32 %v1430, 1.0
    %v1435 = vadd.f32 %v1432, 1.0
    %v1436 = vrcp.pop %v1433
    %v1437 = vmul.f32 1.0, %v1436
    %v1438 = vrcp.pop %v1434
    %v1439 = vmul.f32 1.0, %v1438
    %v1440 = vrcp.pop %v1435
    %v1441 = vmul.f32 1.0, %v1440
    %v1442 = vtanh.pop %v1423
    %v1443 = vmul.f32 %v1439, %v1266
    %v1444 = vmul.f32 %v1437, %v1442
    %v1445 = vadd.f32 %v1443, %v1444
    %v1446 = vtanh.pop %v1445
    %v1447 = vmul.f32 %v1441, %v1446
    %s1448 = scalar_lea.vmem %s7, 32
    %1449 = vst [vmem:[%s1448] sm:$0xff] %v1447
    %s1450 = smul.u32 5, 4
    %s1451 = smul.addr %s1450, 8
    %s1452 = scalar_lea.vmem [#allocation4], %s1451
    %v1453 = vld [vmem:[%s1452] sm:$0xff]
    %v1454 = vld [vmem:[%s1452 + $0x8] sm:$0xff]
    %v1455 = vld [vmem:[%s1452 + $0x10] sm:$0xff]
    %v1456 = vld [vmem:[%s1452 + $0x18] sm:$0xff]
    %1457 = vmatprep.subr.mxu0 %v491
    %1458 = vmatpush1.msra.mxu0 %v490
    %1459 = vmatprep.subr.mxu0 %v495
    %1460 = vmatpush1.msra.mxu0 %v494
    %1461 = vmatprep.subr.mxu0 %v499
    %1462 = vmatpush1.msra.mxu0 %v498
    %1463 = vmatprep.subr.mxu0 %v503
    %1464 = vmatpush1.msra.mxu0 %v502
    %1465 = vmatprep.subr.mxu0 %v507
    %1466 = vmatpush1.msra.mxu0 %v506
    %1467 = vmatprep.subr.mxu0 %v511
    %1468 = vmatpush1.msra.mxu0 %v510
    %1469 = vmatprep.subr.mxu0 %v515
    %1470 = vmatpush1.msra.mxu0 %v514
    %1471 = vmatprep.subr.mxu0 %v519
    %1472 = vmatpush1.msra.mxu0 %v518
    %1473 = vmatprep.subr.mxu0 %v523
    %1474 = vmatpush1.msra.mxu0 %v522
    %1475 = vmatprep.subr.mxu0 %v527
    %1476 = vmatpush1.msra.mxu0 %v526
    %1477 = vmatprep.subr.mxu0 %v531
    %1478 = vmatpush1.msra.mxu0 %v530
    %1479 = vmatprep.subr.mxu0 %v535
    %1480 = vmatpush1.msra.mxu0 %v534
    %1481 = vmatprep.subr.mxu0 %v539
    %1482 = vmatpush1.msra.mxu0 %v538
    %1483 = vmatprep.subr.mxu0 %v543
    %1484 = vmatpush1.msra.mxu0 %v542
    %1485 = vmatprep.subr.mxu0 %v547
    %1486 = vmatpush1.msra.mxu0 %v546
    %1487 = vmatprep.subr.mxu0 %v551
    %1488 = vmatpush1.msra.mxu0 %v550
    %1489 = vmatprep.subr.mxu0 0.0
    %1490 = vmatpush1.msra.mxu0 0.0
    %1491 = vmatprep.subr.mxu0 0.0
    %1492 = vmatpush1.msra.mxu0 0.0
    %1493 = vmatprep.subr.mxu0 0.0
    %1494 = vmatpush1.msra.mxu0 0.0
    %1495 = vmatprep.subr.mxu0 0.0
    %1496 = vmatpush1.msra.mxu0 0.0
    %1497 = vmatprep.subr.mxu0 0.0
    %1498 = vmatpush1.msra.mxu0 0.0
    %1499 = vmatprep.subr.mxu0 0.0
    %1500 = vmatpush1.msra.mxu0 0.0
    %1501 = vmatprep.subr.mxu0 0.0
    %1502 = vmatpush1.msra.mxu0 0.0
    %1503 = vmatprep.subr.mxu0 0.0
    %1504 = vmatpush1.msra.mxu0 0.0
    %1505 = vmatprep.subr.mxu0 0.0
    %1506 = vmatpush1.msra.mxu0 0.0
    %1507 = vmatprep.subr.mxu0 0.0
    %1508 = vmatpush1.msra.mxu0 0.0
    %1509 = vmatprep.subr.mxu0 0.0
    %1510 = vmatpush1.msra.mxu0 0.0
    %1511 = vmatprep.subr.mxu0 0.0
    %1512 = vmatpush1.msra.mxu0 0.0
    %1513 = vmatprep.subr.mxu0 0.0
    %1514 = vmatpush1.msra.mxu0 0.0
    %1515 = vmatprep.subr.mxu0 0.0
    %1516 = vmatpush1.msra.mxu0 0.0
    %1517 = vmatprep.subr.mxu0 0.0
    %1518 = vmatpush1.msra.mxu0 0.0
    %1519 = vmatprep.subr.mxu0 0.0
    %1520 = vmatpush1.msra.mxu0 0.0
    %1521 = vmatprep.mubr.f32.mxu0 0.0
    %1522 = vmatmul.mubr.f32.gmra.mrb[0].mxu0 %v1447
    %v1523 = vpop.f32.mrb[0].mxu0
    %v1524 = vadd.f32 0.0, %v1523
    %v1525 = vpop.f32.mrb[0].mxu0
    %v1526 = vadd.f32 0.0, %v1525
    %1527 = vdwg.mxu0
    %1528 = vmatprep.subr.mxu0 %v493
    %1529 = vmatpush1.msra.mxu0 %v492
    %1530 = vmatprep.subr.mxu0 %v497
    %1531 = vmatpush1.msra.mxu0 %v496
    %1532 = vmatprep.subr.mxu0 %v501
    %1533 = vmatpush1.msra.mxu0 %v500
    %1534 = vmatprep.subr.mxu0 %v505
    %1535 = vmatpush1.msra.mxu0 %v504
    %1536 = vmatprep.subr.mxu0 %v509
    %1537 = vmatpush1.msra.mxu0 %v508
    %1538 = vmatprep.subr.mxu0 %v513
    %1539 = vmatpush1.msra.mxu0 %v512
    %1540 = vmatprep.subr.mxu0 %v517
    %1541 = vmatpush1.msra.mxu0 %v516
    %1542 = vmatprep.subr.mxu0 %v521
    %1543 = vmatpush1.msra.mxu0 %v520
    %1544 = vmatprep.subr.mxu0 %v525
    %1545 = vmatpush1.msra.mxu0 %v524
    %1546 = vmatprep.subr.mxu0 %v529
    %1547 = vmatpush1.msra.mxu0 %v528
    %1548 = vmatprep.subr.mxu0 %v533
    %1549 = vmatpush1.msra.mxu0 %v532
    %1550 = vmatprep.subr.mxu0 %v537
    %1551 = vmatpush1.msra.mxu0 %v536
    %1552 = vmatprep.subr.mxu0 %v541
    %1553 = vmatpush1.msra.mxu0 %v540
    %1554 = vmatprep.subr.mxu0 %v545
    %1555 = vmatpush1.msra.mxu0 %v544
    %1556 = vmatprep.subr.mxu0 %v549
    %1557 = vmatpush1.msra.mxu0 %v548
    %1558 = vmatprep.subr.mxu0 %v553
    %1559 = vmatpush1.msra.mxu0 %v552
    %1560 = vmatprep.subr.mxu0 0.0
    %1561 = vmatpush1.msra.mxu0 0.0
    %1562 = vmatprep.subr.mxu0 0.0
    %1563 = vmatpush1.msra.mxu0 0.0
    %1564 = vmatprep.subr.mxu0 0.0
    %1565 = vmatpush1.msra.mxu0 0.0
    %1566 = vmatprep.subr.mxu0 0.0
    %1567 = vmatpush1.msra.mxu0 0.0
    %1568 = vmatprep.subr.mxu0 0.0
    %1569 = vmatpush1.msra.mxu0 0.0
    %1570 = vmatprep.subr.mxu0 0.0
    %1571 = vmatpush1.msra.mxu0 0.0
    %1572 = vmatprep.subr.mxu0 0.0
    %1573 = vmatpush1.msra.mxu0 0.0
    %1574 = vmatprep.subr.mxu0 0.0
    %1575 = vmatpush1.msra.mxu0 0.0
    %1576 = vmatprep.subr.mxu0 0.0
    %1577 = vmatpush1.msra.mxu0 0.0
    %1578 = vmatprep.subr.mxu0 0.0
    %1579 = vmatpush1.msra.mxu0 0.0
    %1580 = vmatprep.subr.mxu0 0.0
    %1581 = vmatpush1.msra.mxu0 0.0
    %1582 = vmatprep.subr.mxu0 0.0
    %1583 = vmatpush1.msra.mxu0 0.0
    %1584 = vmatprep.subr.mxu0 0.0
    %1585 = vmatpush1.msra.mxu0 0.0
    %1586 = vmatprep.subr.mxu0 0.0
    %1587 = vmatpush1.msra.mxu0 0.0
    %1588 = vmatprep.subr.mxu0 0.0
    %1589 = vmatpush1.msra.mxu0 0.0
    %1590 = vmatprep.subr.mxu0 0.0
    %1591 = vmatpush1.msra.mxu0 0.0
    %1592 = vmatprep.mubr.f32.mxu0 0.0
    %1593 = vmatmul.mubr.f32.gmra.mrb[0].mxu0 %v1447
    %v1594 = vpop.f32.mrb[0].mxu0
    %v1595 = vadd.f32 0.0, %v1594
    %v1596 = vpop.f32.mrb[0].mxu0
    %v1597 = vadd.f32 0.0, %v1596
    %1598 = vdwg.mxu0
    %v1599 = vadd.f32 %v1453, %v1524
    %v1600 = vadd.f32 %v1454, %v1526
    %v1601 = vadd.f32 %v1455, %v1595
    %v1602 = vadd.f32 %v1456, %v1597
    %v1603 = vxor.u32 %v1599, 2147483648
    %v1604 = vxor.u32 %v1600, 2147483648
    %v1605 = vxor.u32 %v1601, 2147483648
    %v1606 = vmul.f32 %v1603, 1.442695
    %v1607 = vpow.pop %v1606
    %v1608 = vmul.f32 %v1604, 1.442695
    %v1609 = vpow.pop %v1608
    %v1610 = vmul.f32 %v1605, 1.442695
    %v1611 = vpow.pop %v1610
    %v1612 = vadd.f32 %v1607, 1.0
    %v1613 = vadd.f32 %v1609, 1.0
    %v1614 = vadd.f32 %v1611, 1.0
    %v1615 = vrcp.pop %v1612
    %v1616 = vmul.f32 1.0, %v1615
    %v1617 = vrcp.pop %v1613
    %v1618 = vmul.f32 1.0, %v1617
    %v1619 = vrcp.pop %v1614
    %v1620 = vmul.f32 1.0, %v1619
    %v1621 = vtanh.pop %v1602
    %v1622 = vmul.f32 %v1618, %v1445
    %v1623 = vmul.f32 %v1616, %v1621
    %v1624 = vadd.f32 %v1622, %v1623
    %v1625 = vtanh.pop %v1624
    %v1626 = vmul.f32 %v1620, %v1625
    %s1627 = scalar_lea.vmem %s7, 40
    %1628 = vst [vmem:[%s1627] sm:$0xff] %v1626
    %s1629 = smul.u32 6, 4
    %s1630 = smul.addr %s1629, 8
    %s1631 = scalar_lea.vmem [#allocation4], %s1630
    %v1632 = vld [vmem:[%s1631] sm:$0xff]
    %v1633 = vld [vmem:[%s1631 + $0x8] sm:$0xff]
    %v1634 = vld [vmem:[%s1631 + $0x10] sm:$0xff]
    %v1635 = vld [vmem:[%s1631 + $0x18] sm:$0xff]
    %1636 = vmatprep.subr.mxu0 %v491
    %1637 = vmatpush1.msra.mxu0 %v490
    %1638 = vmatprep.subr.mxu0 %v495
    %1639 = vmatpush1.msra.mxu0 %v494
    %1640 = vmatprep.subr.mxu0 %v499
    %1641 = vmatpush1.msra.mxu0 %v498
    %1642 = vmatprep.subr.mxu0 %v503
    %1643 = vmatpush1.msra.mxu0 %v502
    %1644 = vmatprep.subr.mxu0 %v507
    %1645 = vmatpush1.msra.mxu0 %v506
    %1646 = vmatprep.subr.mxu0 %v511
    %1647 = vmatpush1.msra.mxu0 %v510
    %1648 = vmatprep.subr.mxu0 %v515
    %1649 = vmatpush1.msra.mxu0 %v514
    %1650 = vmatprep.subr.mxu0 %v519
    %1651 = vmatpush1.msra.mxu0 %v518
    %1652 = vmatprep.subr.mxu0 %v523
    %1653 = vmatpush1.msra.mxu0 %v522
    %1654 = vmatprep.subr.mxu0 %v527
    %1655 = vmatpush1.msra.mxu0 %v526
    %1656 = vmatprep.subr.mxu0 %v531
    %1657 = vmatpush1.msra.mxu0 %v530
    %1658 = vmatprep.subr.mxu0 %v535
    %1659 = vmatpush1.msra.mxu0 %v534
    %1660 = vmatprep.subr.mxu0 %v539
    %1661 = vmatpush1.msra.mxu0 %v538
    %1662 = vmatprep.subr.mxu0 %v543
    %1663 = vmatpush1.msra.mxu0 %v542
    %1664 = vmatprep.subr.mxu0 %v547
    %1665 = vmatpush1.msra.mxu0 %v546
    %1666 = vmatprep.subr.mxu0 %v551
    %1667 = vmatpush1.msra.mxu0 %v550
    %1668 = vmatprep.subr.mxu0 0.0
    %1669 = vmatpush1.msra.mxu0 0.0
    %1670 = vmatprep.subr.mxu0 0.0
    %1671 = vmatpush1.msra.mxu0 0.0
    %1672 = vmatprep.subr.mxu0 0.0
    %1673 = vmatpush1.msra.mxu0 0.0
    %1674 = vmatprep.subr.mxu0 0.0
    %1675 = vmatpush1.msra.mxu0 0.0
    %1676 = vmatprep.subr.mxu0 0.0
    %1677 = vmatpush1.msra.mxu0 0.0
    %1678 = vmatprep.subr.mxu0 0.0
    %1679 = vmatpush1.msra.mxu0 0.0
    %1680 = vmatprep.subr.mxu0 0.0
    %1681 = vmatpush1.msra.mxu0 0.0
    %1682 = vmatprep.subr.mxu0 0.0
    %1683 = vmatpush1.msra.mxu0 0.0
    %1684 = vmatprep.subr.mxu0 0.0
    %1685 = vmatpush1.msra.mxu0 0.0
    %1686 = vmatprep.subr.mxu0 0.0
    %1687 = vmatpush1.msra.mxu0 0.0
    %1688 = vmatprep.subr.mxu0 0.0
    %1689 = vmatpush1.msra.mxu0 0.0
    %1690 = vmatprep.subr.mxu0 0.0
    %1691 = vmatpush1.msra.mxu0 0.0
    %1692 = vmatprep.subr.mxu0 0.0
    %1693 = vmatpush1.msra.mxu0 0.0
    %1694 = vmatprep.subr.mxu0 0.0
    %1695 = vmatpush1.msra.mxu0 0.0
    %1696 = vmatprep.subr.mxu0 0.0
    %1697 = vmatpush1.msra.mxu0 0.0
    %1698 = vmatprep.subr.mxu0 0.0
    %1699 = vmatpush1.msra.mxu0 0.0
    %1700 = vmatprep.mubr.f32.mxu0 0.0
    %1701 = vmatmul.mubr.f32.gmra.mrb[0].mxu0 %v1626
    %v1702 = vpop.f32.mrb[0].mxu0
    %v1703 = vadd.f32 0.0, %v1702
    %v1704 = vpop.f32.mrb[0].mxu0
    %v1705 = vadd.f32 0.0, %v1704
    %1706 = vdwg.mxu0
    %1707 = vmatprep.subr.mxu0 %v493
    %1708 = vmatpush1.msra.mxu0 %v492
    %1709 = vmatprep.subr.mxu0 %v497
    %1710 = vmatpush1.msra.mxu0 %v496
    %1711 = vmatprep.subr.mxu0 %v501
    %1712 = vmatpush1.msra.mxu0 %v500
    %1713 = vmatprep.subr.mxu0 %v505
    %1714 = vmatpush1.msra.mxu0 %v504
    %1715 = vmatprep.subr.mxu0 %v509
    %1716 = vmatpush1.msra.mxu0 %v508
    %1717 = vmatprep.subr.mxu0 %v513
    %1718 = vmatpush1.msra.mxu0 %v512
    %1719 = vmatprep.subr.mxu0 %v517
    %1720 = vmatpush1.msra.mxu0 %v516
    %1721 = vmatprep.subr.mxu0 %v521
    %1722 = vmatpush1.msra.mxu0 %v520
    %1723 = vmatprep.subr.mxu0 %v525
    %1724 = vmatpush1.msra.mxu0 %v524
    %1725 = vmatprep.subr.mxu0 %v529
    %1726 = vmatpush1.msra.mxu0 %v528
    %1727 = vmatprep.subr.mxu0 %v533
    %1728 = vmatpush1.msra.mxu0 %v532
    %1729 = vmatprep.subr.mxu0 %v537
    %1730 = vmatpush1.msra.mxu0 %v536
    %1731 = vmatprep.subr.mxu0 %v541
    %1732 = vmatpush1.msra.mxu0 %v540
    %1733 = vmatprep.subr.mxu0 %v545
    %1734 = vmatpush1.msra.mxu0 %v544
    %1735 = vmatprep.subr.mxu0 %v549
    %1736 = vmatpush1.msra.mxu0 %v548
    %1737 = vmatprep.subr.mxu0 %v553
    %1738 = vmatpush1.msra.mxu0 %v552
    %1739 = vmatprep.subr.mxu0 0.0
    %1740 = vmatpush1.msra.mxu0 0.0
    %1741 = vmatprep.subr.mxu0 0.0
    %1742 = vmatpush1.msra.mxu0 0.0
    %1743 = vmatprep.subr.mxu0 0.0
    %1744 = vmatpush1.msra.mxu0 0.0
    %1745 = vmatprep.subr.mxu0 0.0
    %1746 = vmatpush1.msra.mxu0 0.0
    %1747 = vmatprep.subr.mxu0 0.0
    %1748 = vmatpush1.msra.mxu0 0.0
    %1749 = vmatprep.subr.mxu0 0.0
    %1750 = vmatpush1.msra.mxu0 0.0
    %1751 = vmatprep.subr.mxu0 0.0
    %1752 = vmatpush1.msra.mxu0 0.0
    %1753 = vmatprep.subr.mxu0 0.0
    %1754 = vmatpush1.msra.mxu0 0.0
    %1755 = vmatprep.subr.mxu0 0.0
    %1756 = vmatpush1.msra.mxu0 0.0
    %1757 = vmatprep.subr.mxu0 0.0
    %1758 = vmatpush1.msra.mxu0 0.0
    %1759 = vmatprep.subr.mxu0 0.0
    %1760 = vmatpush1.msra.mxu0 0.0
    %1761 = vmatprep.subr.mxu0 0.0
    %1762 = vmatpush1.msra.mxu0 0.0
    %1763 = vmatprep.subr.mxu0 0.0
    %1764 = vmatpush1.msra.mxu0 0.0
    %1765 = vmatprep.subr.mxu0 0.0
    %1766 = vmatpush1.msra.mxu0 0.0
    %1767 = vmatprep.subr.mxu0 0.0
    %1768 = vmatpush1.msra.mxu0 0.0
    %1769 = vmatprep.subr.mxu0 0.0
    %1770 = vmatpush1.msra.mxu0 0.0
    %1771 = vmatprep.mubr.f32.mxu0 0.0
    %1772 = vmatmul.mubr.f32.gmra.mrb[0].mxu0 %v1626
    %v1773 = vpop.f32.mrb[0].mxu0
    %v1774 = vadd.f32 0.0, %v1773
    %v1775 = vpop.f32.mrb[0].mxu0
    %v1776 = vadd.f32 0.0, %v1775
    %1777 = vdwg.mxu0
    %v1778 = vadd.f32 %v1632, %v1703
    %v1779 = vadd.f32 %v1633, %v1705
    %v1780 = vadd.f32 %v1634, %v1774
    %v1781 = vadd.f32 %v1635, %v1776
    %v1782 = vxor.u32 %v1778, 2147483648
    %v1783 = vxor.u32 %v1779, 2147483648
    %v1784 = vxor.u32 %v1780, 2147483648
    %v1785 = vmul.f32 %v1782, 1.442695
    %v1786 = vpow.pop %v1785
    %v1787 = vmul.f32 %v1783, 1.442695
    %v1788 = vpow.pop %v1787
    %v1789 = vmul.f32 %v1784, 1.442695
    %v1790 = vpow.pop %v1789
    %v1791 = vadd.f32 %v1786, 1.0
    %v1792 = vadd.f32 %v1788, 1.0
    %v1793 = vadd.f32 %v1790, 1.0
    %v1794 = vrcp.pop %v1791
    %v1795 = vmul.f32 1.0, %v1794
    %v1796 = vrcp.pop %v1792
    %v1797 = vmul.f32 1.0, %v1796
    %v1798 = vrcp.pop %v1793
    %v1799 = vmul.f32 1.0, %v1798
    %v1800 = vtanh.pop %v1781
    %v1801 = vmul.f32 %v1797, %v1624
    %v1802 = vmul.f32 %v1795, %v1800
    %v1803 = vadd.f32 %v1801, %v1802
    %v1804 = vtanh.pop %v1803
    %v1805 = vmul.f32 %v1799, %v1804
    %s1806 = scalar_lea.vmem %s7, 48
    %1807 = vst [vmem:[%s1806] sm:$0xff] %v1805
    %s1808 = smul.u32 7, 4
    %s1809 = smul.addr %s1808, 8
    %s1810 = scalar_lea.vmem [#allocation4], %s1809
    %v1811 = vld [vmem:[%s1810] sm:$0xff]
    %v1812 = vld [vmem:[%s1810 + $0x8] sm:$0xff]
    %v1813 = vld [vmem:[%s1810 + $0x10] sm:$0xff]
    %v1814 = vld [vmem:[%s1810 + $0x18] sm:$0xff]
    %1815 = vmatprep.subr.mxu0 %v491
    %1816 = vmatpush1.msra.mxu0 %v490
    %1817 = vmatprep.subr.mxu0 %v495
    %1818 = vmatpush1.msra.mxu0 %v494
    %1819 = vmatprep.subr.mxu0 %v499
    %1820 = vmatpush1.msra.mxu0 %v498
    %1821 = vmatprep.subr.mxu0 %v503
    %1822 = vmatpush1.msra.mxu0 %v502
    %1823 = vmatprep.subr.mxu0 %v507
    %1824 = vmatpush1.msra.mxu0 %v506
    %1825 = vmatprep.subr.mxu0 %v511
    %1826 = vmatpush1.msra.mxu0 %v510
    %1827 = vmatprep.subr.mxu0 %v515
    %1828 = vmatpush1.msra.mxu0 %v514
    %1829 = vmatprep.subr.mxu0 %v519
    %1830 = vmatpush1.msra.mxu0 %v518
    %1831 = vmatprep.subr.mxu0 %v523
    %1832 = vmatpush1.msra.mxu0 %v522
    %1833 = vmatprep.subr.mxu0 %v527
    %1834 = vmatpush1.msra.mxu0 %v526
    %1835 = vmatprep.subr.mxu0 %v531
    %1836 = vmatpush1.msra.mxu0 %v530
    %1837 = vmatprep.subr.mxu0 %v535
    %1838 = vmatpush1.msra.mxu0 %v534
    %1839 = vmatprep.subr.mxu0 %v539
    %1840 = vmatpush1.msra.mxu0 %v538
    %1841 = vmatprep.subr.mxu0 %v543
    %1842 = vmatpush1.msra.mxu0 %v542
    %1843 = vmatprep.subr.mxu0 %v547
    %1844 = vmatpush1.msra.mxu0 %v546
    %1845 = vmatprep.subr.mxu0 %v551
    %1846 = vmatpush1.msra.mxu0 %v550
    %1847 = vmatprep.subr.mxu0 0.0
    %1848 = vmatpush1.msra.mxu0 0.0
    %1849 = vmatprep.subr.mxu0 0.0
    %1850 = vmatpush1.msra.mxu0 0.0
    %1851 = vmatprep.subr.mxu0 0.0
    %1852 = vmatpush1.msra.mxu0 0.0
    %1853 = vmatprep.subr.mxu0 0.0
    %1854 = vmatpush1.msra.mxu0 0.0
    %1855 = vmatprep.subr.mxu0 0.0
    %1856 = vmatpush1.msra.mxu0 0.0
    %1857 = vmatprep.subr.mxu0 0.0
    %1858 = vmatpush1.msra.mxu0 0.0
    %1859 = vmatprep.subr.mxu0 0.0
    %1860 = vmatpush1.msra.mxu0 0.0
    %1861 = vmatprep.subr.mxu0 0.0
    %1862 = vmatpush1.msra.mxu0 0.0
    %1863 = vmatprep.subr.mxu0 0.0
    %1864 = vmatpush1.msra.mxu0 0.0
    %1865 = vmatprep.subr.mxu0 0.0
    %1866 = vmatpush1.msra.mxu0 0.0
    %1867 = vmatprep.subr.mxu0 0.0
    %1868 = vmatpush1.msra.mxu0 0.0
    %1869 = vmatprep.subr.mxu0 0.0
    %1870 = vmatpush1.msra.mxu0 0.0
    %1871 = vmatprep.subr.mxu0 0.0
    %1872 = vmatpush1.msra.mxu0 0.0
    %1873 = vmatprep.subr.mxu0 0.0
    %1874 = vmatpush1.msra.mxu0 0.0
    %1875 = vmatprep.subr.mxu0 0.0
    %1876 = vmatpush1.msra.mxu0 0.0
    %1877 = vmatprep.subr.mxu0 0.0
    %1878 = vmatpush1.msra.mxu0 0.0
    %1879 = vmatprep.mubr.f32.mxu0 0.0
    %1880 = vmatmul.mubr.f32.gmra.mrb[0].mxu0 %v1805
    %v1881 = vpop.f32.mrb[0].mxu0
    %v1882 = vadd.f32 0.0, %v1881
    %v1883 = vpop.f32.mrb[0].mxu0
    %v1884 = vadd.f32 0.0, %v1883
    %1885 = vdwg.mxu0
    %1886 = vmatprep.subr.mxu0 %v493
    %1887 = vmatpush1.msra.mxu0 %v492
    %1888 = vmatprep.subr.mxu0 %v497
    %1889 = vmatpush1.msra.mxu0 %v496
    %1890 = vmatprep.subr.mxu0 %v501
    %1891 = vmatpush1.msra.mxu0 %v500
    %1892 = vmatprep.subr.mxu0 %v505
    %1893 = vmatpush1.msra.mxu0 %v504
    %1894 = vmatprep.subr.mxu0 %v509
    %1895 = vmatpush1.msra.mxu0 %v508
    %1896 = vmatprep.subr.mxu0 %v513
    %1897 = vmatpush1.msra.mxu0 %v512
    %1898 = vmatprep.subr.mxu0 %v517
    %1899 = vmatpush1.msra.mxu0 %v516
    %1900 = vmatprep.subr.mxu0 %v521
    %1901 = vmatpush1.msra.mxu0 %v520
    %1902 = vmatprep.subr.mxu0 %v525
    %1903 = vmatpush1.msra.mxu0 %v524
    %1904 = vmatprep.subr.mxu0 %v529
    %1905 = vmatpush1.msra.mxu0 %v528
    %1906 = vmatprep.subr.mxu0 %v533
    %1907 = vmatpush1.msra.mxu0 %v532
    %1908 = vmatprep.subr.mxu0 %v537
    %1909 = vmatpush1.msra.mxu0 %v536
    %1910 = vmatprep.subr.mxu0 %v541
    %1911 = vmatpush1.msra.mxu0 %v540
    %1912 = vmatprep.subr.mxu0 %v545
    %1913 = vmatpush1.msra.mxu0 %v544
    %1914 = vmatprep.subr.mxu0 %v549
    %1915 = vmatpush1.msra.mxu0 %v548
    %1916 = vmatprep.subr.mxu0 %v553
    %1917 = vmatpush1.msra.mxu0 %v552
    %1918 = vmatprep.subr.mxu0 0.0
    %1919 = vmatpush1.msra.mxu0 0.0
    %1920 = vmatprep.subr.mxu0 0.0
    %1921 = vmatpush1.msra.mxu0 0.0
    %1922 = vmatprep.subr.mxu0 0.0
    %1923 = vmatpush1.msra.mxu0 0.0
    %1924 = vmatprep.subr.mxu0 0.0
    %1925 = vmatpush1.msra.mxu0 0.0
    %1926 = vmatprep.subr.mxu0 0.0
    %1927 = vmatpush1.msra.mxu0 0.0
    %1928 = vmatprep.subr.mxu0 0.0
    %1929 = vmatpush1.msra.mxu0 0.0
    %1930 = vmatprep.subr.mxu0 0.0
    %1931 = vmatpush1.msra.mxu0 0.0
    %1932 = vmatprep.subr.mxu0 0.0
    %1933 = vmatpush1.msra.mxu0 0.0
    %1934 = vmatprep.subr.mxu0 0.0
    %1935 = vmatpush1.msra.mxu0 0.0
    %1936 = vmatprep.subr.mxu0 0.0
    %1937 = vmatpush1.msra.mxu0 0.0
    %1938 = vmatprep.subr.mxu0 0.0
    %1939 = vmatpush1.msra.mxu0 0.0
    %1940 = vmatprep.subr.mxu0 0.0
    %1941 = vmatpush1.msra.mxu0 0.0
    %1942 = vmatprep.subr.mxu0 0.0
    %1943 = vmatpush1.msra.mxu0 0.0
    %1944 = vmatprep.subr.mxu0 0.0
    %1945 = vmatpush1.msra.mxu0 0.0
    %1946 = vmatprep.subr.mxu0 0.0
    %1947 = vmatpush1.msra.mxu0 0.0
    %1948 = vmatprep.subr.mxu0 0.0
    %1949 = vmatpush1.msra.mxu0 0.0
    %1950 = vmatprep.mubr.f32.mxu0 0.0
    %1951 = vmatmul.mubr.f32.gmra.mrb[0].mxu0 %v1805
    %v1952 = vpop.f32.mrb[0].mxu0
    %v1953 = vadd.f32 0.0, %v1952
    %v1954 = vpop.f32.mrb[0].mxu0
    %v1955 = vadd.f32 0.0, %v1954
    %1956 = vdwg.mxu0
    %v1957 = vadd.f32 %v1811, %v1882
    %v1958 = vadd.f32 %v1812, %v1884
    %v1959 = vadd.f32 %v1813, %v1953
    %v1960 = vadd.f32 %v1814, %v1955
    %v1961 = vxor.u32 %v1957, 2147483648
    %v1962 = vxor.u32 %v1958, 2147483648
    %v1963 = vxor.u32 %v1959, 2147483648
    %v1964 = vmul.f32 %v1961, 1.442695
    %v1965 = vpow.pop %v1964
    %v1966 = vmul.f32 %v1962, 1.442695
    %v1967 = vpow.pop %v1966
    %v1968 = vmul.f32 %v1963, 1.442695
    %v1969 = vpow.pop %v1968
    %v1970 = vadd.f32 %v1965, 1.0
    %v1971 = vadd.f32 %v1967, 1.0
    %v1972 = vadd.f32 %v1969, 1.0
    %v1973 = vrcp.pop %v1970
    %v1974 = vmul.f32 1.0, %v1973
    %v1975 = vrcp.pop %v1971
    %v1976 = vmul.f32 1.0, %v1975
    %v1977 = vrcp.pop %v1972
    %v1978 = vmul.f32 1.0, %v1977
    %v1979 = vtanh.pop %v1960
    %v1980 = vmul.f32 %v1976, %v1803
    %v1981 = vmul.f32 %v1974, %v1979
    %v1982 = vadd.f32 %v1980, %v1981
    %v1983 = vtanh.pop %v1982
    %v1984 = vmul.f32 %v1978, %v1983
    %s1985 = scalar_lea.vmem %s7, 56
    %1986 = vst [vmem:[%s1985] sm:$0xff] %v1984
    %1987 = vst [vmem:[#allocation2] sm:$0xff] %v1984
    %1988 = vst [vmem:[#allocation3] sm:$0xff] %v1982
    // Predicated region
    $region38: #{rnn_decoder_forward.3} parent=1 // pred_check
      _
    $region39: #{rnn_decoder_forward.3} parent=1 // pred_check_branch
      %1990 = sbr.rel (0) target = $region41
    $region40: #{rnn_decoder_forward.3} parent=1 // pred_region
      _
    $region41: #{rnn_decoder_forward.3} parent=1 // pred_fallthru
      _
    // Predicated region
    $region42: #{rnn_decoder_forward.3} parent=1 // pred_check
      _
    $region43: #{rnn_decoder_forward.3} parent=1 // pred_check_branch
      %1992 = sbr.rel (0) target = $region45
    $region44: #{rnn_decoder_forward.3} parent=1 // pred_region
      _
    $region45: #{rnn_decoder_forward.3} parent=1 // pred_fallthru
      _
    %1993 = vsyncpa [#allocation6], 1

// kernel: rnn_decoder_forward.2
$region0: #{rnn_decoder_forward.2}
  #allocation0 [shape = 'u32[]', space=smem, size = 0x4, offset = 0x4, fixed_abs, tag = 'smem constant byte address 0x4 - core index']
  #allocation1 [shape = 'u32[144,128]{1,0:T(1,128)}', space=vmem, size = 0x12000, scoped, tag = 'internal scratch']
  #allocation2 [shape = 'f32[8,128]{1,0:T(8,128)}', space=vmem, size = 0x1000, scoped, tag = 'scratch operand']
  #allocation3 [shape = 'f32[8,128]{1,0:T(8,128)}', space=vmem, size = 0x1000, scoped, tag = 'scratch operand']
  #allocation4 [shape = 'f32[64,512]{1,0:T(8,128)}', space=vmem, size = 0x20000, scoped, tag = 'scratch operand']
  %s0 = inlined_call_operand.vmem [shape: f32[64,32], index: 0, kind: input, shape index: {}]
  %s1 = inlined_call_operand.hbm [shape: f32[32,512], index: 1, kind: input, shape index: {}]
  %s2 = inlined_call_operand.hbm [shape: f32[128,512], index: 2, kind: input, shape index: {}]
  %s3 = inlined_call_operand.hbm [shape: f32[1,512], index: 3, kind: input, shape index: {}]
  %s4 = inlined_call_operand.vmem [shape: f32[8,16], index: 4, kind: input, shape index: {}]
  %s5 = inlined_call_operand.hbm [shape: f32[16,256], index: 5, kind: input, shape index: {}]
  %s6 = inlined_call_operand.hbm [shape: f32[1,256], index: 6, kind: input, shape index: {}]
  %s7 = inlined_call_operand.vmem [shape: f32[64,128], index: 7, kind: output, shape index: {}]
  %s8 = sld [smem:[#allocation0]]
  $region62: #{rnn_decoder_forward.2} parent=0
    _
  %s10 = ssub.s32 1, %s8
  %s11 = scalar_select 0, %s10, %s8
  $region1: #{rnn_decoder_forward.2} parent=0
    #allocation5 [shape = 'u8[65536]{0}', space=vmem, size = 0x10000, scoped, tag = 'input window, operand 1, single buffered']
    #allocation6 [shape = 's32[1]{0}', space=sflag, size = 0x4, scoped, tag = 'scoped memory for rnn_decoder_forward.2']
    #allocation7 [shape = 'u8[262144]{0}', space=vmem, size = 0x40000, scoped, tag = 'input window, operand 2, single buffered']
    #allocation8 [shape = 's32[1]{0}', space=sflag, size = 0x4, scoped, tag = 'scoped memory for rnn_decoder_forward.2']
    #allocation9 [shape = 'u8[2048]{0}', space=vmem, size = 0x800, scoped, tag = 'input window, operand 3, single buffered']
    #allocation10 [shape = 'u8[16384]{0}', space=vmem, size = 0x4000, scoped, tag = 'input window, operand 5, single buffered']
    #allocation11 [shape = 's32[1]{0}', space=sflag, size = 0x4, scoped, tag = 'scoped memory for rnn_decoder_forward.2']
    #allocation12 [shape = 'u8[1024]{0}', space=vmem, size = 0x400, scoped, tag = 'input window, operand 6, single buffered']
    %12 = vsyncpa [#allocation6], 0
    %13 = vsyncpa [#allocation8], 0
    %14 = vsyncpa [#allocation11], 0
    // Predicated region
    $region2: #{rnn_decoder_forward.2} parent=1 // pred_check
      _
    $region3: #{rnn_decoder_forward.2} parent=1 // pred_check_branch
      %16 = sbr.rel (0) target = $region5
    $region4: #{rnn_decoder_forward.2} parent=1 // pred_region
      _
    $region5: #{rnn_decoder_forward.2} parent=1 // pred_fallthru
      _
    // Predicated region
    $region6: #{rnn_decoder_forward.2} parent=1 // pred_check
      _
    $region7: #{rnn_decoder_forward.2} parent=1 // pred_check_branch
      %18 = sbr.rel (0) target = $region9
    $region8: #{rnn_decoder_forward.2} parent=1 // pred_region
      %s20 = ssub.s32 2048, 2048
      %21 = vsyncadd [#allocation6], %s20
      %s22 = sshll.u32 [#allocation5], 4
      %s23 = int_to_ptr.vmem [resolvable:$true] %s22
      %28 = dma.hbm_to_vmem [thread:$0]  %s1, 2048, %s23, [#allocation6], 512, 512, 32
    $region9: #{rnn_decoder_forward.2} parent=1 // pred_fallthru
      _
    // Predicated region
    $region10: #{rnn_decoder_forward.2} parent=1 // pred_check
      _
    $region11: #{rnn_decoder_forward.2} parent=1 // pred_check_branch
      %30 = sbr.rel (0) target = $region13
    $region12: #{rnn_decoder_forward.2} parent=1 // pred_region
      %s32 = ssub.s32 8192, 8192
      %33 = vsyncadd [#allocation8], %s32
      %s34 = sshll.u32 [#allocation7], 4
      %s35 = int_to_ptr.vmem [resolvable:$true] %s34
      %40 = dma.hbm_to_vmem [thread:$0]  %s2, 8192, %s35, [#allocation8], 512, 512, 32
    $region13: #{rnn_decoder_forward.2} parent=1 // pred_fallthru
      _
    // Predicated region
    $region14: #{rnn_decoder_forward.2} parent=1 // pred_check
      _
    $region15: #{rnn_decoder_forward.2} parent=1 // pred_check_branch
      %42 = sbr.rel (0) target = $region17
    $region16: #{rnn_decoder_forward.2} parent=1 // pred_region
      %s44 = ssub.s32 64, 64
      %45 = vsyncadd [#allocation8], %s44
      %s47 = sshll.u32 [#allocation9], 4
      %s48 = int_to_ptr.vmem [resolvable:$true] %s47
      %50 = dma.hbm_to_vmem [thread:$0]  %s3, 64, %s48, [#allocation8]
    $region17: #{rnn_decoder_forward.2} parent=1 // pred_fallthru
      _
    // Predicated region
    $region18: #{rnn_decoder_forward.2} parent=1 // pred_check
      _
    $region19: #{rnn_decoder_forward.2} parent=1 // pred_check_branch
      %52 = sbr.rel (0) target = $region21
    $region20: #{rnn_decoder_forward.2} parent=1 // pred_region
      _
    $region21: #{rnn_decoder_forward.2} parent=1 // pred_fallthru
      _
    // Predicated region
    $region22: #{rnn_decoder_forward.2} parent=1 // pred_check
      _
    $region23: #{rnn_decoder_forward.2} parent=1 // pred_check_branch
      %54 = sbr.rel (0) target = $region25
    $region24: #{rnn_decoder_forward.2} parent=1 // pred_region
      %s56 = ssub.s32 512, 512
      %57 = vsyncadd [#allocation11], %s56
      %s58 = sshll.u32 [#allocation10], 4
      %s59 = int_to_ptr.vmem [resolvable:$true] %s58
      %64 = dma.hbm_to_vmem [thread:$0]  %s5, 512, %s59, [#allocation11], 256, 256, 16
    $region25: #{rnn_decoder_forward.2} parent=1 // pred_fallthru
      _
    // Predicated region
    $region26: #{rnn_decoder_forward.2} parent=1 // pred_check
      _
    $region27: #{rnn_decoder_forward.2} parent=1 // pred_check_branch
      %66 = sbr.rel (0) target = $region29
    $region28: #{rnn_decoder_forward.2} parent=1 // pred_region
      %s68 = ssub.s32 32, 32
      %69 = vsyncadd [#allocation11], %s68
      %s71 = sshll.u32 [#allocation12], 4
      %s72 = int_to_ptr.vmem [resolvable:$true] %s71
      %74 = dma.hbm_to_vmem [thread:$0]  %s6, 32, %s72, [#allocation11]
    $region29: #{rnn_decoder_forward.2} parent=1 // pred_fallthru
      _
    // Predicated region
    $region30: #{rnn_decoder_forward.2} parent=1 // pred_check
      _
    $region31: #{rnn_decoder_forward.2} parent=1 // pred_check_branch
      %76 = sbr.rel (0) target = $region33
    $region32: #{rnn_decoder_forward.2} parent=1 // pred_region
      %77 = dma.done [#allocation6], 2048
    $region33: #{rnn_decoder_forward.2} parent=1 // pred_fallthru
      _
    // Predicated region
    $region34: #{rnn_decoder_forward.2} parent=1 // pred_check
      _
    $region35: #{rnn_decoder_forward.2} parent=1 // pred_check_branch
      %79 = sbr.rel (0) target = $region37
    $region36: #{rnn_decoder_forward.2} parent=1 // pred_region
      %80 = dma.done [#allocation8], 8192
    $region37: #{rnn_decoder_forward.2} parent=1 // pred_fallthru
      _
    // Predicated region
    $region38: #{rnn_decoder_forward.2} parent=1 // pred_check
      _
    $region39: #{rnn_decoder_forward.2} parent=1 // pred_check_branch
      %82 = sbr.rel (0) target = $region41
    $region40: #{rnn_decoder_forward.2} parent=1 // pred_region
      %83 = dma.done [#allocation8], 64
    $region41: #{rnn_decoder_forward.2} parent=1 // pred_fallthru
      _
    // Predicated region
    $region42: #{rnn_decoder_forward.2} parent=1 // pred_check
      _
    $region43: #{rnn_decoder_forward.2} parent=1 // pred_check_branch
      %85 = sbr.rel (0) target = $region45
    $region44: #{rnn_decoder_forward.2} parent=1 // pred_region
      %86 = dma.done [#allocation11], 512
    $region45: #{rnn_decoder_forward.2} parent=1 // pred_fallthru
      _
    // Predicated region
    $region46: #{rnn_decoder_forward.2} parent=1 // pred_check
      _
    $region47: #{rnn_decoder_forward.2} parent=1 // pred_check_branch
      %88 = sbr.rel (0) target = $region49
    $region48: #{rnn_decoder_forward.2} parent=1 // pred_region
      %89 = dma.done [#allocation11], 32
    $region49: #{rnn_decoder_forward.2} parent=1 // pred_fallthru
      _
    %p90 = scmp.eq.s32.totalorder 0, 0
    // Predicated region
    $region50: #{rnn_decoder_forward.2} parent=1 // pred_check
      %p91 = pneg %p90
    $region51: #{rnn_decoder_forward.2} parent=1 // pred_check_branch
      %93 = sbr.rel (%p91) target = $region53
    $region52: #{rnn_decoder_forward.2} parent=1 // pred_region
      %v94 = vld [vmem:[%s4] sm:$0xff]
      %v95 = vld [vmem:[#allocation10] sm:$0xff]
      %v96 = vld [vmem:[#allocation10 + $0x8] sm:$0xff]
      %v97 = vld [vmem:[#allocation10 + $0x10] sm:$0xff]
      %v98 = vld [vmem:[#allocation10 + $0x18] sm:$0xff]
      %v99 = vld [vmem:[#allocation12] sm:$0x3]
      %v101 = vlaneseq
      %v102 = vshrl.u32 %v101, 7
      %v103 = vsub.s32 0, %v102
      %v104 = vrot.slane %v99, %v103
      %v105 = vlaneseq
      %v106 = vshrl.u32 %v105, 7
      %v107 = vsub.s32 1, %v106
      %v108 = vrot.slane %v99, %v107
      %vm111 = vcmask 130048
      %v113 = vsel %vm111, %v94, 0
      %115 = vmatprep.subr.mxu0 %v96
      %116 = vmatpush1.msra.mxu0 %v95
      %117 = vmatprep.subr.mxu0 %v98
      %118 = vmatpush1.msra.mxu0 %v97
      %119 = vmatprep.subr.mxu0 0.0
      %120 = vmatpush1.msra.mxu0 0.0
      %121 = vmatprep.subr.mxu0 0.0
      %122 = vmatpush1.msra.mxu0 0.0
      %123 = vmatprep.subr.mxu0 0.0
      %124 = vmatpush1.msra.mxu0 0.0
      %125 = vmatprep.subr.mxu0 0.0
      %126 = vmatpush1.msra.mxu0 0.0
      %127 = vmatprep.subr.mxu0 0.0
      %128 = vmatpush1.msra.mxu0 0.0
      %129 = vmatprep.subr.mxu0 0.0
      %130 = vmatpush1.msra.mxu0 0.0
      %131 = vmatprep.subr.mxu0 0.0
      %132 = vmatpush1.msra.mxu0 0.0
      %133 = vmatprep.subr.mxu0 0.0
      %134 = vmatpush1.msra.mxu0 0.0
      %135 = vmatprep.subr.mxu0 0.0
      %136 = vmatpush1.msra.mxu0 0.0
      %137 = vmatprep.subr.mxu0 0.0
      %138 = vmatpush1.msra.mxu0 0.0
      %139 = vmatprep.subr.mxu0 0.0
      %140 = vmatpush1.msra.mxu0 0.0
      %141 = vmatprep.subr.mxu0 0.0
      %142 = vmatpush1.msra.mxu0 0.0
      %143 = vmatprep.subr.mxu0 0.0
      %144 = vmatpush1.msra.mxu0 0.0
      %145 = vmatprep.subr.mxu0 0.0
      %146 = vmatpush1.msra.mxu0 0.0
      %147 = vmatprep.subr.mxu0 0.0
      %148 = vmatpush1.msra.mxu0 0.0
      %149 = vmatprep.subr.mxu0 0.0
      %150 = vmatpush1.msra.mxu0 0.0
      %151 = vmatprep.subr.mxu0 0.0
      %152 = vmatpush1.msra.mxu0 0.0
      %153 = vmatprep.subr.mxu0 0.0
      %154 = vmatpush1.msra.mxu0 0.0
      %155 = vmatprep.subr.mxu0 0.0
      %156 = vmatpush1.msra.mxu0 0.0
      %157 = vmatprep.subr.mxu0 0.0
      %158 = vmatpush1.msra.mxu0 0.0
      %159 = vmatprep.subr.mxu0 0.0
      %160 = vmatpush1.msra.mxu0 0.0
      %161 = vmatprep.subr.mxu0 0.0
      %162 = vmatpush1.msra.mxu0 0.0
      %163 = vmatprep.subr.mxu0 0.0
      %164 = vmatpush1.msra.mxu0 0.0
      %165 = vmatprep.subr.mxu0 0.0
      %166 = vmatpush1.msra.mxu0 0.0
      %167 = vmatprep.subr.mxu0 0.0
      %168 = vmatpush1.msra.mxu0 0.0
      %169 = vmatprep.subr.mxu0 0.0
      %170 = vmatpush1.msra.mxu0 0.0
      %171 = vmatprep.subr.mxu0 0.0
      %172 = vmatpush1.msra.mxu0 0.0
      %173 = vmatprep.subr.mxu0 0.0
      %174 = vmatpush1.msra.mxu0 0.0
      %175 = vmatprep.subr.mxu0 0.0
      %176 = vmatpush1.msra.mxu0 0.0
      %177 = vmatprep.subr.mxu0 0.0
      %178 = vmatpush1.msra.mxu0 0.0
      %179 = vmatprep.mubr.f32.mxu0 0.0
      %180 = vmatmul.mubr.f32.gmra.mrb[0].mxu0 %v113
      %v181 = vpop.f32.mrb[0].mxu0
      %v182 = vadd.f32 %v104, %v181
      %v183 = vpop.f32.mrb[0].mxu0
      %v184 = vadd.f32 %v108, %v183
      %185 = vdwg.mxu0
      %186 = vst [vmem:[#allocation2] sm:$0xff] %v182
      %187 = vst [vmem:[#allocation3] sm:$0xff] %v184
    $region53: #{rnn_decoder_forward.2} parent=1 // pred_fallthru
      _
    %v188 = vld [vmem:[%s0] sm:$0xff]
    %v189 = vld [vmem:[%s0 + $0x8] sm:$0xff]
    %v190 = vld [vmem:[%s0 + $0x10] sm:$0xff]
    %v191 = vld [vmem:[%s0 + $0x18] sm:$0xff]
    %v192 = vld [vmem:[%s0 + $0x20] sm:$0xff]
    %v193 = vld [vmem:[%s0 + $0x28] sm:$0xff]
    %v194 = vld [vmem:[%s0 + $0x30] sm:$0xff]
    %v195 = vld [vmem:[%s0 + $0x38] sm:$0xff]
    %v196 = vld [vmem:[#allocation5] sm:$0xff]
    %v197 = vld [vmem:[#allocation5 + $0x8] sm:$0xff]
    %v198 = vld [vmem:[#allocation5 + $0x10] sm:$0xff]
    %v199 = vld [vmem:[#allocation5 + $0x18] sm:$0xff]
    %v200 = vld [vmem:[#allocation5 + $0x20] sm:$0xff]
    %v201 = vld [vmem:[#allocation5 + $0x28] sm:$0xff]
    %v202 = vld [vmem:[#allocation5 + $0x30] sm:$0xff]
    %v203 = vld [vmem:[#allocation5 + $0x38] sm:$0xff]
    %v204 = vld [vmem:[#allocation5 + $0x40] sm:$0xff]
    %v205 = vld [vmem:[#allocation5 + $0x48] sm:$0xff]
    %v206 = vld [vmem:[#allocation5 + $0x50] sm:$0xff]
    %v207 = vld [vmem:[#allocation5 + $0x58] sm:$0xff]
    %v208 = vld [vmem:[#allocation5 + $0x60] sm:$0xff]
    %v209 = vld [vmem:[#allocation5 + $0x68] sm:$0xff]
    %v210 = vld [vmem:[#allocation5 + $0x70] sm:$0xff]
    %v211 = vld [vmem:[#allocation5 + $0x78] sm:$0xff]
    %v212 = vld [vmem:[#allocation9] sm:$0xf]
    %v214 = vlaneseq
    %v215 = vshrl.u32 %v214, 7
    %v216 = vsub.s32 0, %v215
    %v217 = vrot.slane %v212, %v216
    %v218 = vlaneseq
    %v219 = vshrl.u32 %v218, 7
    %v220 = vsub.s32 1, %v219
    %v221 = vrot.slane %v212, %v220
    %v222 = vlaneseq
    %v223 = vshrl.u32 %v222, 7
    %v224 = vsub.s32 2, %v223
    %v225 = vrot.slane %v212, %v224
    %v226 = vlaneseq
    %v227 = vshrl.u32 %v226, 7
    %v228 = vsub.s32 3, %v227
    %v229 = vrot.slane %v212, %v228
    %vm234 = vcmask 261120
    %v236 = vsel %vm234, %v188, 0
    %v239 = vsel %vm234, %v189, 0
    %v242 = vsel %vm234, %v190, 0
    %v245 = vsel %vm234, %v191, 0
    %v248 = vsel %vm234, %v192, 0
    %v251 = vsel %vm234, %v193, 0
    %v254 = vsel %vm234, %v194, 0
    %v257 = vsel %vm234, %v195, 0
    %259 = vmatprep.subr.mxu0 %v197
    %260 = vmatpush1.msra.mxu0 %v196
    %261 = vmatprep.subr.mxu0 %v201
    %262 = vmatpush1.msra.mxu0 %v200
    %263 = vmatprep.subr.mxu0 %v205
    %264 = vmatpush1.msra.mxu0 %v204
    %265 = vmatprep.subr.mxu0 %v209
    %266 = vmatpush1.msra.mxu0 %v208
    %267 = vmatprep.subr.mxu0 0.0
    %268 = vmatpush1.msra.mxu0 0.0
    %269 = vmatprep.subr.mxu0 0.0
    %270 = vmatpush1.msra.mxu0 0.0
    %271 = vmatprep.subr.mxu0 0.0
    %272 = vmatpush1.msra.mxu0 0.0
    %273 = vmatprep.subr.mxu0 0.0
    %274 = vmatpush1.msra.mxu0 0.0
    %275 = vmatprep.subr.mxu0 0.0
    %276 = vmatpush1.msra.mxu0 0.0
    %277 = vmatprep.subr.mxu0 0.0
    %278 = vmatpush1.msra.mxu0 0.0
    %279 = vmatprep.subr.mxu0 0.0
    %280 = vmatpush1.msra.mxu0 0.0
    %281 = vmatprep.subr.mxu0 0.0
    %282 = vmatpush1.msra.mxu0 0.0
    %283 = vmatprep.subr.mxu0 0.0
    %284 = vmatpush1.msra.mxu0 0.0
    %285 = vmatprep.subr.mxu0 0.0
    %286 = vmatpush1.msra.mxu0 0.0
    %287 = vmatprep.subr.mxu0 0.0
    %288 = vmatpush1.msra.mxu0 0.0
    %289 = vmatprep.subr.mxu0 0.0
    %290 = vmatpush1.msra.mxu0 0.0
    %291 = vmatprep.subr.mxu0 0.0
    %292 = vmatpush1.msra.mxu0 0.0
    %293 = vmatprep.subr.mxu0 0.0
    %294 = vmatpush1.msra.mxu0 0.0
    %295 = vmatprep.subr.mxu0 0.0
    %296 = vmatpush1.msra.mxu0 0.0
    %297 = vmatprep.subr.mxu0 0.0
    %298 = vmatpush1.msra.mxu0 0.0
    %299 = vmatprep.subr.mxu0 0.0
    %300 = vmatpush1.msra.mxu0 0.0
    %301 = vmatprep.subr.mxu0 0.0
    %302 = vmatpush1.msra.mxu0 0.0
    %303 = vmatprep.subr.mxu0 0.0
    %304 = vmatpush1.msra.mxu0 0.0
    %305 = vmatprep.subr.mxu0 0.0
    %306 = vmatpush1.msra.mxu0 0.0
    %307 = vmatprep.subr.mxu0 0.0
    %308 = vmatpush1.msra.mxu0 0.0
    %309 = vmatprep.subr.mxu0 0.0
    %310 = vmatpush1.msra.mxu0 0.0
    %311 = vmatprep.subr.mxu0 0.0
    %312 = vmatpush1.msra.mxu0 0.0
    %313 = vmatprep.subr.mxu0 0.0
    %314 = vmatpush1.msra.mxu0 0.0
    %315 = vmatprep.subr.mxu0 0.0
    %316 = vmatpush1.msra.mxu0 0.0
    %317 = vmatprep.subr.mxu0 0.0
    %318 = vmatpush1.msra.mxu0 0.0
    %319 = vmatprep.subr.mxu0 0.0
    %320 = vmatpush1.msra.mxu0 0.0
    %321 = vmatprep.subr.mxu0 0.0
    %322 = vmatpush1.msra.mxu0 0.0
    %323 = vmatprep.mubr.f32.mxu0 0.0
    %324 = vmatmul.mubr.f32.gmra.mrb[0].mxu0 %v236
    %v325 = vpop.f32.mrb[0].mxu0
    %v326 = vadd.f32 %v217, %v325
    %v327 = vpop.f32.mrb[0].mxu0
    %v328 = vadd.f32 %v221, %v327
    %329 = vmatprep.mubr.f32.mxu0 0.0
    %330 = vmatmul.mubr.f32.gmra.mrb[0].mxu0 %v239
    %v331 = vpop.f32.mrb[0].mxu0
    %v332 = vadd.f32 %v217, %v331
    %v333 = vpop.f32.mrb[0].mxu0
    %v334 = vadd.f32 %v221, %v333
    %335 = vmatprep.mubr.f32.mxu0 0.0
    %336 = vmatmul.mubr.f32.gmra.mrb[0].mxu0 %v242
    %v337 = vpop.f32.mrb[0].mxu0
    %v338 = vadd.f32 %v217, %v337
    %v339 = vpop.f32.mrb[0].mxu0
    %v340 = vadd.f32 %v221, %v339
    %341 = vmatprep.mubr.f32.mxu0 0.0
    %342 = vmatmul.mubr.f32.gmra.mrb[0].mxu0 %v245
    %v343 = vpop.f32.mrb[0].mxu0
    %v344 = vadd.f32 %v217, %v343
    %v345 = vpop.f32.mrb[0].mxu0
    %v346 = vadd.f32 %v221, %v345
    %347 = vmatprep.mubr.f32.mxu0 0.0
    %348 = vmatmul.mubr.f32.gmra.mrb[0].mxu0 %v248
    %v349 = vpop.f32.mrb[0].mxu0
    %v350 = vadd.f32 %v217, %v349
    %v351 = vpop.f32.mrb[0].mxu0
    %v352 = vadd.f32 %v221, %v351
    %353 = vmatprep.mubr.f32.mxu0 0.0
    %354 = vmatmul.mubr.f32.gmra.mrb[0].mxu0 %v251
    %v355 = vpop.f32.mrb[0].mxu0
    %v356 = vadd.f32 %v217, %v355
    %v357 = vpop.f32.mrb[0].mxu0
    %v358 = vadd.f32 %v221, %v357
    %359 = vmatprep.mubr.f32.mxu0 0.0
    %360 = vmatmul.mubr.f32.gmra.mrb[0].mxu0 %v254
    %v361 = vpop.f32.mrb[0].mxu0
    %v362 = vadd.f32 %v217, %v361
    %v363 = vpop.f32.mrb[0].mxu0
    %v364 = vadd.f32 %v221, %v363
    %365 = vmatprep.mubr.f32.mxu0 0.0
    %366 = vmatmul.mubr.f32.gmra.mrb[0].mxu0 %v257
    %v367 = vpop.f32.mrb[0].mxu0
    %v368 = vadd.f32 %v217, %v367
    %v369 = vpop.f32.mrb[0].mxu0
    %v370 = vadd.f32 %v221, %v369
    %371 = vdwg.mxu0
    %372 = vmatprep.subr.mxu0 %v199
    %373 = vmatpush1.msra.mxu0 %v198
    %374 = vmatprep.subr.mxu0 %v203
    %375 = vmatpush1.msra.mxu0 %v202
    %376 = vmatprep.subr.mxu0 %v207
    %377 = vmatpush1.msra.mxu0 %v206
    %378 = vmatprep.subr.mxu0 %v211
    %379 = vmatpush1.msra.mxu0 %v210
    %380 = vmatprep.subr.mxu0 0.0
    %381 = vmatpush1.msra.mxu0 0.0
    %382 = vmatprep.subr.mxu0 0.0
    %383 = vmatpush1.msra.mxu0 0.0
    %384 = vmatprep.subr.mxu0 0.0
    %385 = vmatpush1.msra.mxu0 0.0
    %386 = vmatprep.subr.mxu0 0.0
    %387 = vmatpush1.msra.mxu0 0.0
    %388 = vmatprep.subr.mxu0 0.0
    %389 = vmatpush1.msra.mxu0 0.0
    %390 = vmatprep.subr.mxu0 0.0
    %391 = vmatpush1.msra.mxu0 0.0
    %392 = vmatprep.subr.mxu0 0.0
    %393 = vmatpush1.msra.mxu0 0.0
    %394 = vmatprep.subr.mxu0 0.0
    %395 = vmatpush1.msra.mxu0 0.0
    %396 = vmatprep.subr.mxu0 0.0
    %397 = vmatpush1.msra.mxu0 0.0
    %398 = vmatprep.subr.mxu0 0.0
    %399 = vmatpush1.msra.mxu0 0.0
    %400 = vmatprep.subr.mxu0 0.0
    %401 = vmatpush1.msra.mxu0 0.0
    %402 = vmatprep.subr.mxu0 0.0
    %403 = vmatpush1.msra.mxu0 0.0
    %404 = vmatprep.subr.mxu0 0.0
    %405 = vmatpush1.msra.mxu0 0.0
    %406 = vmatprep.subr.mxu0 0.0
    %407 = vmatpush1.msra.mxu0 0.0
    %408 = vmatprep.subr.mxu0 0.0
    %409 = vmatpush1.msra.mxu0 0.0
    %410 = vmatprep.subr.mxu0 0.0
    %411 = vmatpush1.msra.mxu0 0.0
    %412 = vmatprep.subr.mxu0 0.0
    %413 = vmatpush1.msra.mxu0 0.0
    %414 = vmatprep.subr.mxu0 0.0
    %415 = vmatpush1.msra.mxu0 0.0
    %416 = vmatprep.subr.mxu0 0.0
    %417 = vmatpush1.msra.mxu0 0.0
    %418 = vmatprep.subr.mxu0 0.0
    %419 = vmatpush1.msra.mxu0 0.0
    %420 = vmatprep.subr.mxu0 0.0
    %421 = vmatpush1.msra.mxu0 0.0
    %422 = vmatprep.subr.mxu0 0.0
    %423 = vmatpush1.msra.mxu0 0.0
    %424 = vmatprep.subr.mxu0 0.0
    %425 = vmatpush1.msra.mxu0 0.0
    %426 = vmatprep.subr.mxu0 0.0
    %427 = vmatpush1.msra.mxu0 0.0
    %428 = vmatprep.subr.mxu0 0.0
    %429 = vmatpush1.msra.mxu0 0.0
    %430 = vmatprep.subr.mxu0 0.0
    %431 = vmatpush1.msra.mxu0 0.0
    %432 = vmatprep.subr.mxu0 0.0
    %433 = vmatpush1.msra.mxu0 0.0
    %434 = vmatprep.subr.mxu0 0.0
    %435 = vmatpush1.msra.mxu0 0.0
    %436 = vmatprep.mubr.f32.mxu0 0.0
    %437 = vmatmul.mubr.f32.gmra.mrb[0].mxu0 %v236
    %v438 = vpop.f32.mrb[0].mxu0
    %v439 = vadd.f32 %v225, %v438
    %v440 = vpop.f32.mrb[0].mxu0
    %v441 = vadd.f32 %v229, %v440
    %442 = vmatprep.mubr.f32.mxu0 0.0
    %443 = vmatmul.mubr.f32.gmra.mrb[0].mxu0 %v239
    %v444 = vpop.f32.mrb[0].mxu0
    %v445 = vadd.f32 %v225, %v444
    %v446 = vpop.f32.mrb[0].mxu0
    %v447 = vadd.f32 %v229, %v446
    %448 = vmatprep.mubr.f32.mxu0 0.0
    %449 = vmatmul.mubr.f32.gmra.mrb[0].mxu0 %v242
    %v450 = vpop.f32.mrb[0].mxu0
    %v451 = vadd.f32 %v225, %v450
    %v452 = vpop.f32.mrb[0].mxu0
    %v453 = vadd.f32 %v229, %v452
    %454 = vmatprep.mubr.f32.mxu0 0.0
    %455 = vmatmul.mubr.f32.gmra.mrb[0].mxu0 %v245
    %v456 = vpop.f32.mrb[0].mxu0
    %v457 = vadd.f32 %v225, %v456
    %v458 = vpop.f32.mrb[0].mxu0
    %v459 = vadd.f32 %v229, %v458
    %460 = vmatprep.mubr.f32.mxu0 0.0
    %461 = vmatmul.mubr.f32.gmra.mrb[0].mxu0 %v248
    %v462 = vpop.f32.mrb[0].mxu0
    %v463 = vadd.f32 %v225, %v462
    %v464 = vpop.f32.mrb[0].mxu0
    %v465 = vadd.f32 %v229, %v464
    %466 = vmatprep.mubr.f32.mxu0 0.0
    %467 = vmatmul.mubr.f32.gmra.mrb[0].mxu0 %v251
    %v468 = vpop.f32.mrb[0].mxu0
    %v469 = vadd.f32 %v225, %v468
    %v470 = vpop.f32.mrb[0].mxu0
    %v471 = vadd.f32 %v229, %v470
    %472 = vmatprep.mubr.f32.mxu0 0.0
    %473 = vmatmul.mubr.f32.gmra.mrb[0].mxu0 %v254
    %v474 = vpop.f32.mrb[0].mxu0
    %v475 = vadd.f32 %v225, %v474
    %v476 = vpop.f32.mrb[0].mxu0
    %v477 = vadd.f32 %v229, %v476
    %478 = vmatprep.mubr.f32.mxu0 0.0
    %479 = vmatmul.mubr.f32.gmra.mrb[0].mxu0 %v257
    %v480 = vpop.f32.mrb[0].mxu0
    %v481 = vadd.f32 %v225, %v480
    %v482 = vpop.f32.mrb[0].mxu0
    %v483 = vadd.f32 %v229, %v482
    %484 = vdwg.mxu0
    %485 = vst [vmem:[#allocation4] sm:$0xff] %v326
    %486 = vst [vmem:[#allocation4 + $0x8] sm:$0xff] %v328
    %487 = vst [vmem:[#allocation4 + $0x10] sm:$0xff] %v439
    %488 = vst [vmem:[#allocation4 + $0x18] sm:$0xff] %v441
    %489 = vst [vmem:[#allocation4 + $0x20] sm:$0xff] %v332
    %490 = vst [vmem:[#allocation4 + $0x28] sm:$0xff] %v334
    %491 = vst [vmem:[#allocation4 + $0x30] sm:$0xff] %v445
    %492 = vst [vmem:[#allocation4 + $0x38] sm:$0xff] %v447
    %493 = vst [vmem:[#allocation4 + $0x40] sm:$0xff] %v338
    %494 = vst [vmem:[#allocation4 + $0x48] sm:$0xff] %v340
    %495 = vst [vmem:[#allocation4 + $0x50] sm:$0xff] %v451
    %496 = vst [vmem:[#allocation4 + $0x58] sm:$0xff] %v453
    %497 = vst [vmem:[#allocation4 + $0x60] sm:$0xff] %v344
    %498 = vst [vmem:[#allocation4 + $0x68] sm:$0xff] %v346
    %499 = vst [vmem:[#allocation4 + $0x70] sm:$0xff] %v457
    %500 = vst [vmem:[#allocation4 + $0x78] sm:$0xff] %v459
    %501 = vst [vmem:[#allocation4 + $0x80] sm:$0xff] %v350
    %502 = vst [vmem:[#allocation4 + $0x88] sm:$0xff] %v352
    %503 = vst [vmem:[#allocation4 + $0x90] sm:$0xff] %v463
    %504 = vst [vmem:[#allocation4 + $0x98] sm:$0xff] %v465
    %505 = vst [vmem:[#allocation4 + $0xa0] sm:$0xff] %v356
    %506 = vst [vmem:[#allocation4 + $0xa8] sm:$0xff] %v358
    %507 = vst [vmem:[#allocation4 + $0xb0] sm:$0xff] %v469
    %508 = vst [vmem:[#allocation4 + $0xb8] sm:$0xff] %v471
    %509 = vst [vmem:[#allocation4 + $0xc0] sm:$0xff] %v362
    %510 = vst [vmem:[#allocation4 + $0xc8] sm:$0xff] %v364
    %511 = vst [vmem:[#allocation4 + $0xd0] sm:$0xff] %v475
    %512 = vst [vmem:[#allocation4 + $0xd8] sm:$0xff] %v477
    %513 = vst [vmem:[#allocation4 + $0xe0] sm:$0xff] %v368
    %514 = vst [vmem:[#allocation4 + $0xe8] sm:$0xff] %v370
    %515 = vst [vmem:[#allocation4 + $0xf0] sm:$0xff] %v481
    %516 = vst [vmem:[#allocation4 + $0xf8] sm:$0xff] %v483
    %v517 = vld [vmem:[#allocation7] sm:$0xff]
    %v518 = vld [vmem:[#allocation7 + $0x8] sm:$0xff]
    %v519 = vld [vmem:[#allocation7 + $0x10] sm:$0xff]
    %v520 = vld [vmem:[#allocation7 + $0x18] sm:$0xff]
    %v521 = vld [vmem:[#allocation7 + $0x20] sm:$0xff]
    %v522 = vld [vmem:[#allocation7 + $0x28] sm:$0xff]
    %v523 = vld [vmem:[#allocation7 + $0x30] sm:$0xff]
    %v524 = vld [vmem:[#allocation7 + $0x38] sm:$0xff]
    %v525 = vld [vmem:[#allocation7 + $0x40] sm:$0xff]
    %v526 = vld [vmem:[#allocation7 + $0x48] sm:$0xff]
    %v527 = vld [vmem:[#allocation7 + $0x50] sm:$0xff]
    %v528 = vld [vmem:[#allocation7 + $0x58] sm:$0xff]
    %v529 = vld [vmem:[#allocation7 + $0x60] sm:$0xff]
    %v530 = vld [vmem:[#allocation7 + $0x68] sm:$0xff]
    %v531 = vld [vmem:[#allocation7 + $0x70] sm:$0xff]
    %v532 = vld [vmem:[#allocation7 + $0x78] sm:$0xff]
    %v533 = vld [vmem:[#allocation7 + $0x80] sm:$0xff]
    %v534 = vld [vmem:[#allocation7 + $0x88] sm:$0xff]
    %v535 = vld [vmem:[#allocation7 + $0x90] sm:$0xff]
    %v536 = vld [vmem:[#allocation7 + $0x98] sm:$0xff]
    %v537 = vld [vmem:[#allocation7 + $0xa0] sm:$0xff]
    %v538 = vld [vmem:[#allocation7 + $0xa8] sm:$0xff]
    %v539 = vld [vmem:[#allocation7 + $0xb0] sm:$0xff]
    %v540 = vld [vmem:[#allocation7 + $0xb8] sm:$0xff]
    %v541 = vld [vmem:[#allocation7 + $0xc0] sm:$0xff]
    %v542 = vld [vmem:[#allocation7 + $0xc8] sm:$0xff]
    %v543 = vld [vmem:[#allocation7 + $0xd0] sm:$0xff]
    %v544 = vld [vmem:[#allocation7 + $0xd8] sm:$0xff]
    %v545 = vld [vmem:[#allocation7 + $0xe0] sm:$0xff]
    %v546 = vld [vmem:[#allocation7 + $0xe8] sm:$0xff]
    %v547 = vld [vmem:[#allocation7 + $0xf0] sm:$0xff]
    %v548 = vld [vmem:[#allocation7 + $0xf8] sm:$0xff]
    %v549 = vld [vmem:[#allocation7 + $0x100] sm:$0xff]
    %v550 = vld [vmem:[#allocation7 + $0x108] sm:$0xff]
    %v551 = vld [vmem:[#allocation7 + $0x110] sm:$0xff]
    %v552 = vld [vmem:[#allocation7 + $0x118] sm:$0xff]
    %v553 = vld [vmem:[#allocation7 + $0x120] sm:$0xff]
    %v554 = vld [vmem:[#allocation7 + $0x128] sm:$0xff]
    %v555 = vld [vmem:[#allocation7 + $0x130] sm:$0xff]
    %v556 = vld [vmem:[#allocation7 + $0x138] sm:$0xff]
    %v557 = vld [vmem:[#allocation7 + $0x140] sm:$0xff]
    %v558 = vld [vmem:[#allocation7 + $0x148] sm:$0xff]
    %v559 = vld [vmem:[#allocation7 + $0x150] sm:$0xff]
    %v560 = vld [vmem:[#allocation7 + $0x158] sm:$0xff]
    %v561 = vld [vmem:[#allocation7 + $0x160] sm:$0xff]
    %v562 = vld [vmem:[#allocation7 + $0x168] sm:$0xff]
    %v563 = vld [vmem:[#allocation7 + $0x170] sm:$0xff]
    %v564 = vld [vmem:[#allocation7 + $0x178] sm:$0xff]
    %v565 = vld [vmem:[#allocation7 + $0x180] sm:$0xff]
    %v566 = vld [vmem:[#allocation7 + $0x188] sm:$0xff]
    %v567 = vld [vmem:[#allocation7 + $0x190] sm:$0xff]
    %v568 = vld [vmem:[#allocation7 + $0x198] sm:$0xff]
    %v569 = vld [vmem:[#allocation7 + $0x1a0] sm:$0xff]
    %v570 = vld [vmem:[#allocation7 + $0x1a8] sm:$0xff]
    %v571 = vld [vmem:[#allocation7 + $0x1b0] sm:$0xff]
    %v572 = vld [vmem:[#allocation7 + $0x1b8] sm:$0xff]
    %v573 = vld [vmem:[#allocation7 + $0x1c0] sm:$0xff]
    %v574 = vld [vmem:[#allocation7 + $0x1c8] sm:$0xff]
    %v575 = vld [vmem:[#allocation7 + $0x1d0] sm:$0xff]
    %v576 = vld [vmem:[#allocation7 + $0x1d8] sm:$0xff]
    %v577 = vld [vmem:[#allocation7 + $0x1e0] sm:$0xff]
    %v578 = vld [vmem:[#allocation7 + $0x1e8] sm:$0xff]
    %v579 = vld [vmem:[#allocation7 + $0x1f0] sm:$0xff]
    %v580 = vld [vmem:[#allocation7 + $0x1f8] sm:$0xff]
    %v581 = vld [vmem:[#allocation2] sm:$0xff]
    %v582 = vld [vmem:[#allocation3] sm:$0xff]
    %s583 = smul.u32 0, 4
    %s584 = smul.addr %s583, 8
    %s585 = scalar_lea.vmem [#allocation4], %s584
    %v586 = vld [vmem:[%s585] sm:$0xff]
    %v587 = vld [vmem:[%s585 + $0x8] sm:$0xff]
    %v588 = vld [vmem:[%s585 + $0x10] sm:$0xff]
    %v589 = vld [vmem:[%s585 + $0x18] sm:$0xff]
    %590 = vmatprep.subr.mxu0 %v518
    %591 = vmatpush1.msra.mxu0 %v517
    %592 = vmatprep.subr.mxu0 %v522
    %593 = vmatpush1.msra.mxu0 %v521
    %594 = vmatprep.subr.mxu0 %v526
    %595 = vmatpush1.msra.mxu0 %v525
    %596 = vmatprep.subr.mxu0 %v530
    %597 = vmatpush1.msra.mxu0 %v529
    %598 = vmatprep.subr.mxu0 %v534
    %599 = vmatpush1.msra.mxu0 %v533
    %600 = vmatprep.subr.mxu0 %v538
    %601 = vmatpush1.msra.mxu0 %v537
    %602 = vmatprep.subr.mxu0 %v542
    %603 = vmatpush1.msra.mxu0 %v541
    %604 = vmatprep.subr.mxu0 %v546
    %605 = vmatpush1.msra.mxu0 %v545
    %606 = vmatprep.subr.mxu0 %v550
    %607 = vmatpush1.msra.mxu0 %v549
    %608 = vmatprep.subr.mxu0 %v554
    %609 = vmatpush1.msra.mxu0 %v553
    %610 = vmatprep.subr.mxu0 %v558
    %611 = vmatpush1.msra.mxu0 %v557
    %612 = vmatprep.subr.mxu0 %v562
    %613 = vmatpush1.msra.mxu0 %v561
    %614 = vmatprep.subr.mxu0 %v566
    %615 = vmatpush1.msra.mxu0 %v565
    %616 = vmatprep.subr.mxu0 %v570
    %617 = vmatpush1.msra.mxu0 %v569
    %618 = vmatprep.subr.mxu0 %v574
    %619 = vmatpush1.msra.mxu0 %v573
    %620 = vmatprep.subr.mxu0 %v578
    %621 = vmatpush1.msra.mxu0 %v577
    %622 = vmatprep.subr.mxu0 0.0
    %623 = vmatpush1.msra.mxu0 0.0
    %624 = vmatprep.subr.mxu0 0.0
    %625 = vmatpush1.msra.mxu0 0.0
    %626 = vmatprep.subr.mxu0 0.0
    %627 = vmatpush1.msra.mxu0 0.0
    %628 = vmatprep.subr.mxu0 0.0
    %629 = vmatpush1.msra.mxu0 0.0
    %630 = vmatprep.subr.mxu0 0.0
    %631 = vmatpush1.msra.mxu0 0.0
    %632 = vmatprep.subr.mxu0 0.0
    %633 = vmatpush1.msra.mxu0 0.0
    %634 = vmatprep.subr.mxu0 0.0
    %635 = vmatpush1.msra.mxu0 0.0
    %636 = vmatprep.subr.mxu0 0.0
    %637 = vmatpush1.msra.mxu0 0.0
    %638 = vmatprep.subr.mxu0 0.0
    %639 = vmatpush1.msra.mxu0 0.0
    %640 = vmatprep.subr.mxu0 0.0
    %641 = vmatpush1.msra.mxu0 0.0
    %642 = vmatprep.subr.mxu0 0.0
    %643 = vmatpush1.msra.mxu0 0.0
    %644 = vmatprep.subr.mxu0 0.0
    %645 = vmatpush1.msra.mxu0 0.0
    %646 = vmatprep.subr.mxu0 0.0
    %647 = vmatpush1.msra.mxu0 0.0
    %648 = vmatprep.subr.mxu0 0.0
    %649 = vmatpush1.msra.mxu0 0.0
    %650 = vmatprep.subr.mxu0 0.0
    %651 = vmatpush1.msra.mxu0 0.0
    %652 = vmatprep.subr.mxu0 0.0
    %653 = vmatpush1.msra.mxu0 0.0
    %654 = vmatprep.mubr.f32.mxu0 0.0
    %655 = vmatmul.mubr.f32.gmra.mrb[0].mxu0 %v581
    %v656 = vpop.f32.mrb[0].mxu0
    %v657 = vadd.f32 0.0, %v656
    %v658 = vpop.f32.mrb[0].mxu0
    %v659 = vadd.f32 0.0, %v658
    %660 = vdwg.mxu0
    %661 = vmatprep.subr.mxu0 %v520
    %662 = vmatpush1.msra.mxu0 %v519
    %663 = vmatprep.subr.mxu0 %v524
    %664 = vmatpush1.msra.mxu0 %v523
    %665 = vmatprep.subr.mxu0 %v528
    %666 = vmatpush1.msra.mxu0 %v527
    %667 = vmatprep.subr.mxu0 %v532
    %668 = vmatpush1.msra.mxu0 %v531
    %669 = vmatprep.subr.mxu0 %v536
    %670 = vmatpush1.msra.mxu0 %v535
    %671 = vmatprep.subr.mxu0 %v540
    %672 = vmatpush1.msra.mxu0 %v539
    %673 = vmatprep.subr.mxu0 %v544
    %674 = vmatpush1.msra.mxu0 %v543
    %675 = vmatprep.subr.mxu0 %v548
    %676 = vmatpush1.msra.mxu0 %v547
    %677 = vmatprep.subr.mxu0 %v552
    %678 = vmatpush1.msra.mxu0 %v551
    %679 = vmatprep.subr.mxu0 %v556
    %680 = vmatpush1.msra.mxu0 %v555
    %681 = vmatprep.subr.mxu0 %v560
    %682 = vmatpush1.msra.mxu0 %v559
    %683 = vmatprep.subr.mxu0 %v564
    %684 = vmatpush1.msra.mxu0 %v563
    %685 = vmatprep.subr.mxu0 %v568
    %686 = vmatpush1.msra.mxu0 %v567
    %687 = vmatprep.subr.mxu0 %v572
    %688 = vmatpush1.msra.mxu0 %v571
    %689 = vmatprep.subr.mxu0 %v576
    %690 = vmatpush1.msra.mxu0 %v575
    %691 = vmatprep.subr.mxu0 %v580
    %692 = vmatpush1.msra.mxu0 %v579
    %693 = vmatprep.subr.mxu0 0.0
    %694 = vmatpush1.msra.mxu0 0.0
    %695 = vmatprep.subr.mxu0 0.0
    %696 = vmatpush1.msra.mxu0 0.0
    %697 = vmatprep.subr.mxu0 0.0
    %698 = vmatpush1.msra.mxu0 0.0
    %699 = vmatprep.subr.mxu0 0.0
    %700 = vmatpush1.msra.mxu0 0.0
    %701 = vmatprep.subr.mxu0 0.0
    %702 = vmatpush1.msra.mxu0 0.0
    %703 = vmatprep.subr.mxu0 0.0
    %704 = vmatpush1.msra.mxu0 0.0
    %705 = vmatprep.subr.mxu0 0.0
    %706 = vmatpush1.msra.mxu0 0.0
    %707 = vmatprep.subr.mxu0 0.0
    %708 = vmatpush1.msra.mxu0 0.0
    %709 = vmatprep.subr.mxu0 0.0
    %710 = vmatpush1.msra.mxu0 0.0
    %711 = vmatprep.subr.mxu0 0.0
    %712 = vmatpush1.msra.mxu0 0.0
    %713 = vmatprep.subr.mxu0 0.0
    %714 = vmatpush1.msra.mxu0 0.0
    %715 = vmatprep.subr.mxu0 0.0
    %716 = vmatpush1.msra.mxu0 0.0
    %717 = vmatprep.subr.mxu0 0.0
    %718 = vmatpush1.msra.mxu0 0.0
    %719 = vmatprep.subr.mxu0 0.0
    %720 = vmatpush1.msra.mxu0 0.0
    %721 = vmatprep.subr.mxu0 0.0
    %722 = vmatpush1.msra.mxu0 0.0
    %723 = vmatprep.subr.mxu0 0.0
    %724 = vmatpush1.msra.mxu0 0.0
    %725 = vmatprep.mubr.f32.mxu0 0.0
    %726 = vmatmul.mubr.f32.gmra.mrb[0].mxu0 %v581
    %v727 = vpop.f32.mrb[0].mxu0
    %v728 = vadd.f32 0.0, %v727
    %v729 = vpop.f32.mrb[0].mxu0
    %v730 = vadd.f32 0.0, %v729
    %731 = vdwg.mxu0
    %v732 = vadd.f32 %v586, %v657
    %v733 = vadd.f32 %v587, %v659
    %v734 = vadd.f32 %v588, %v728
    %v735 = vadd.f32 %v589, %v730
    %v736 = vxor.u32 %v732, 2147483648
    %v737 = vxor.u32 %v733, 2147483648
    %v738 = vxor.u32 %v734, 2147483648
    %v739 = vmul.f32 %v736, 1.442695
    %v740 = vpow.pop %v739
    %v741 = vmul.f32 %v737, 1.442695
    %v742 = vpow.pop %v741
    %v743 = vmul.f32 %v738, 1.442695
    %v744 = vpow.pop %v743
    %v745 = vadd.f32 %v740, 1.0
    %v746 = vadd.f32 %v742, 1.0
    %v747 = vadd.f32 %v744, 1.0
    %v748 = vrcp.pop %v745
    %v749 = vmul.f32 1.0, %v748
    %v750 = vrcp.pop %v746
    %v751 = vmul.f32 1.0, %v750
    %v752 = vrcp.pop %v747
    %v753 = vmul.f32 1.0, %v752
    %v754 = vtanh.pop %v735
    %v755 = vmul.f32 %v751, %v582
    %v756 = vmul.f32 %v749, %v754
    %v757 = vadd.f32 %v755, %v756
    %v758 = vtanh.pop %v757
    %v759 = vmul.f32 %v753, %v758
    %760 = vst [vmem:[%s7] sm:$0xff] %v759
    %s761 = smul.u32 1, 4
    %s762 = smul.addr %s761, 8
    %s763 = scalar_lea.vmem [#allocation4], %s762
    %v764 = vld [vmem:[%s763] sm:$0xff]
    %v765 = vld [vmem:[%s763 + $0x8] sm:$0xff]
    %v766 = vld [vmem:[%s763 + $0x10] sm:$0xff]
    %v767 = vld [vmem:[%s763 + $0x18] sm:$0xff]
    %768 = vmatprep.subr.mxu0 %v518
    %769 = vmatpush1.msra.mxu0 %v517
    %770 = vmatprep.subr.mxu0 %v522
    %771 = vmatpush1.msra.mxu0 %v521
    %772 = vmatprep.subr.mxu0 %v526
    %773 = vmatpush1.msra.mxu0 %v525
    %774 = vmatprep.subr.mxu0 %v530
    %775 = vmatpush1.msra.mxu0 %v529
    %776 = vmatprep.subr.mxu0 %v534
    %777 = vmatpush1.msra.mxu0 %v533
    %778 = vmatprep.subr.mxu0 %v538
    %779 = vmatpush1.msra.mxu0 %v537
    %780 = vmatprep.subr.mxu0 %v542
    %781 = vmatpush1.msra.mxu0 %v541
    %782 = vmatprep.subr.mxu0 %v546
    %783 = vmatpush1.msra.mxu0 %v545
    %784 = vmatprep.subr.mxu0 %v550
    %785 = vmatpush1.msra.mxu0 %v549
    %786 = vmatprep.subr.mxu0 %v554
    %787 = vmatpush1.msra.mxu0 %v553
    %788 = vmatprep.subr.mxu0 %v558
    %789 = vmatpush1.msra.mxu0 %v557
    %790 = vmatprep.subr.mxu0 %v562
    %791 = vmatpush1.msra.mxu0 %v561
    %792 = vmatprep.subr.mxu0 %v566
    %793 = vmatpush1.msra.mxu0 %v565
    %794 = vmatprep.subr.mxu0 %v570
    %795 = vmatpush1.msra.mxu0 %v569
    %796 = vmatprep.subr.mxu0 %v574
    %797 = vmatpush1.msra.mxu0 %v573
    %798 = vmatprep.subr.mxu0 %v578
    %799 = vmatpush1.msra.mxu0 %v577
    %800 = vmatprep.subr.mxu0 0.0
    %801 = vmatpush1.msra.mxu0 0.0
    %802 = vmatprep.subr.mxu0 0.0
    %803 = vmatpush1.msra.mxu0 0.0
    %804 = vmatprep.subr.mxu0 0.0
    %805 = vmatpush1.msra.mxu0 0.0
    %806 = vmatprep.subr.mxu0 0.0
    %807 = vmatpush1.msra.mxu0 0.0
    %808 = vmatprep.subr.mxu0 0.0
    %809 = vmatpush1.msra.mxu0 0.0
    %810 = vmatprep.subr.mxu0 0.0
    %811 = vmatpush1.msra.mxu0 0.0
    %812 = vmatprep.subr.mxu0 0.0
    %813 = vmatpush1.msra.mxu0 0.0
    %814 = vmatprep.subr.mxu0 0.0
    %815 = vmatpush1.msra.mxu0 0.0
    %816 = vmatprep.subr.mxu0 0.0
    %817 = vmatpush1.msra.mxu0 0.0
    %818 = vmatprep.subr.mxu0 0.0
    %819 = vmatpush1.msra.mxu0 0.0
    %820 = vmatprep.subr.mxu0 0.0
    %821 = vmatpush1.msra.mxu0 0.0
    %822 = vmatprep.subr.mxu0 0.0
    %823 = vmatpush1.msra.mxu0 0.0
    %824 = vmatprep.subr.mxu0 0.0
    %825 = vmatpush1.msra.mxu0 0.0
    %826 = vmatprep.subr.mxu0 0.0
    %827 = vmatpush1.msra.mxu0 0.0
    %828 = vmatprep.subr.mxu0 0.0
    %829 = vmatpush1.msra.mxu0 0.0
    %830 = vmatprep.subr.mxu0 0.0
    %831 = vmatpush1.msra.mxu0 0.0
    %832 = vmatprep.mubr.f32.mxu0 0.0
    %833 = vmatmul.mubr.f32.gmra.mrb[0].mxu0 %v759
    %v834 = vpop.f32.mrb[0].mxu0
    %v835 = vadd.f32 0.0, %v834
    %v836 = vpop.f32.mrb[0].mxu0
    %v837 = vadd.f32 0.0, %v836
    %838 = vdwg.mxu0
    %839 = vmatprep.subr.mxu0 %v520
    %840 = vmatpush1.msra.mxu0 %v519
    %841 = vmatprep.subr.mxu0 %v524
    %842 = vmatpush1.msra.mxu0 %v523
    %843 = vmatprep.subr.mxu0 %v528
    %844 = vmatpush1.msra.mxu0 %v527
    %845 = vmatprep.subr.mxu0 %v532
    %846 = vmatpush1.msra.mxu0 %v531
    %847 = vmatprep.subr.mxu0 %v536
    %848 = vmatpush1.msra.mxu0 %v535
    %849 = vmatprep.subr.mxu0 %v540
    %850 = vmatpush1.msra.mxu0 %v539
    %851 = vmatprep.subr.mxu0 %v544
    %852 = vmatpush1.msra.mxu0 %v543
    %853 = vmatprep.subr.mxu0 %v548
    %854 = vmatpush1.msra.mxu0 %v547
    %855 = vmatprep.subr.mxu0 %v552
    %856 = vmatpush1.msra.mxu0 %v551
    %857 = vmatprep.subr.mxu0 %v556
    %858 = vmatpush1.msra.mxu0 %v555
    %859 = vmatprep.subr.mxu0 %v560
    %860 = vmatpush1.msra.mxu0 %v559
    %861 = vmatprep.subr.mxu0 %v564
    %862 = vmatpush1.msra.mxu0 %v563
    %863 = vmatprep.subr.mxu0 %v568
    %864 = vmatpush1.msra.mxu0 %v567
    %865 = vmatprep.subr.mxu0 %v572
    %866 = vmatpush1.msra.mxu0 %v571
    %867 = vmatprep.subr.mxu0 %v576
    %868 = vmatpush1.msra.mxu0 %v575
    %869 = vmatprep.subr.mxu0 %v580
    %870 = vmatpush1.msra.mxu0 %v579
    %871 = vmatprep.subr.mxu0 0.0
    %872 = vmatpush1.msra.mxu0 0.0
    %873 = vmatprep.subr.mxu0 0.0
    %874 = vmatpush1.msra.mxu0 0.0
    %875 = vmatprep.subr.mxu0 0.0
    %876 = vmatpush1.msra.mxu0 0.0
    %877 = vmatprep.subr.mxu0 0.0
    %878 = vmatpush1.msra.mxu0 0.0
    %879 = vmatprep.subr.mxu0 0.0
    %880 = vmatpush1.msra.mxu0 0.0
    %881 = vmatprep.subr.mxu0 0.0
    %882 = vmatpush1.msra.mxu0 0.0
    %883 = vmatprep.subr.mxu0 0.0
    %884 = vmatpush1.msra.mxu0 0.0
    %885 = vmatprep.subr.mxu0 0.0
    %886 = vmatpush1.msra.mxu0 0.0
    %887 = vmatprep.subr.mxu0 0.0
    %888 = vmatpush1.msra.mxu0 0.0
    %889 = vmatprep.subr.mxu0 0.0
    %890 = vmatpush1.msra.mxu0 0.0
    %891 = vmatprep.subr.mxu0 0.0
    %892 = vmatpush1.msra.mxu0 0.0
    %893 = vmatprep.subr.mxu0 0.0
    %894 = vmatpush1.msra.mxu0 0.0
    %895 = vmatprep.subr.mxu0 0.0
    %896 = vmatpush1.msra.mxu0 0.0
    %897 = vmatprep.subr.mxu0 0.0
    %898 = vmatpush1.msra.mxu0 0.0
    %899 = vmatprep.subr.mxu0 0.0
    %900 = vmatpush1.msra.mxu0 0.0
    %901 = vmatprep.subr.mxu0 0.0
    %902 = vmatpush1.msra.mxu0 0.0
    %903 = vmatprep.mubr.f32.mxu0 0.0
    %904 = vmatmul.mubr.f32.gmra.mrb[0].mxu0 %v759
    %v905 = vpop.f32.mrb[0].mxu0
    %v906 = vadd.f32 0.0, %v905
    %v907 = vpop.f32.mrb[0].mxu0
    %v908 = vadd.f32 0.0, %v907
    %909 = vdwg.mxu0
    %v910 = vadd.f32 %v764, %v835
    %v911 = vadd.f32 %v765, %v837
    %v912 = vadd.f32 %v766, %v906
    %v913 = vadd.f32 %v767, %v908
    %v914 = vxor.u32 %v910, 2147483648
    %v915 = vxor.u32 %v911, 2147483648
    %v916 = vxor.u32 %v912, 2147483648
    %v917 = vmul.f32 %v914, 1.442695
    %v918 = vpow.pop %v917
    %v919 = vmul.f32 %v915, 1.442695
    %v920 = vpow.pop %v919
    %v921 = vmul.f32 %v916, 1.442695
    %v922 = vpow.pop %v921
    %v923 = vadd.f32 %v918, 1.0
    %v924 = vadd.f32 %v920, 1.0
    %v925 = vadd.f32 %v922, 1.0
    %v926 = vrcp.pop %v923
    %v927 = vmul.f32 1.0, %v926
    %v928 = vrcp.pop %v924
    %v929 = vmul.f32 1.0, %v928
    %v930 = vrcp.pop %v925
    %v931 = vmul.f32 1.0, %v930
    %v932 = vtanh.pop %v913
    %v933 = vmul.f32 %v929, %v757
    %v934 = vmul.f32 %v927, %v932
    %v935 = vadd.f32 %v933, %v934
    %v936 = vtanh.pop %v935
    %v937 = vmul.f32 %v931, %v936
    %s938 = scalar_lea.vmem %s7, 8
    %939 = vst [vmem:[%s938] sm:$0xff] %v937
    %s940 = smul.u32 2, 4
    %s941 = smul.addr %s940, 8
    %s942 = scalar_lea.vmem [#allocation4], %s941
    %v943 = vld [vmem:[%s942] sm:$0xff]
    %v944 = vld [vmem:[%s942 + $0x8] sm:$0xff]
    %v945 = vld [vmem:[%s942 + $0x10] sm:$0xff]
    %v946 = vld [vmem:[%s942 + $0x18] sm:$0xff]
    %947 = vmatprep.subr.mxu0 %v518
    %948 = vmatpush1.msra.mxu0 %v517
    %949 = vmatprep.subr.mxu0 %v522
    %950 = vmatpush1.msra.mxu0 %v521
    %951 = vmatprep.subr.mxu0 %v526
    %952 = vmatpush1.msra.mxu0 %v525
    %953 = vmatprep.subr.mxu0 %v530
    %954 = vmatpush1.msra.mxu0 %v529
    %955 = vmatprep.subr.mxu0 %v534
    %956 = vmatpush1.msra.mxu0 %v533
    %957 = vmatprep.subr.mxu0 %v538
    %958 = vmatpush1.msra.mxu0 %v537
    %959 = vmatprep.subr.mxu0 %v542
    %960 = vmatpush1.msra.mxu0 %v541
    %961 = vmatprep.subr.mxu0 %v546
    %962 = vmatpush1.msra.mxu0 %v545
    %963 = vmatprep.subr.mxu0 %v550
    %964 = vmatpush1.msra.mxu0 %v549
    %965 = vmatprep.subr.mxu0 %v554
    %966 = vmatpush1.msra.mxu0 %v553
    %967 = vmatprep.subr.mxu0 %v558
    %968 = vmatpush1.msra.mxu0 %v557
    %969 = vmatprep.subr.mxu0 %v562
    %970 = vmatpush1.msra.mxu0 %v561
    %971 = vmatprep.subr.mxu0 %v566
    %972 = vmatpush1.msra.mxu0 %v565
    %973 = vmatprep.subr.mxu0 %v570
    %974 = vmatpush1.msra.mxu0 %v569
    %975 = vmatprep.subr.mxu0 %v574
    %976 = vmatpush1.msra.mxu0 %v573
    %977 = vmatprep.subr.mxu0 %v578
    %978 = vmatpush1.msra.mxu0 %v577
    %979 = vmatprep.subr.mxu0 0.0
    %980 = vmatpush1.msra.mxu0 0.0
    %981 = vmatprep.subr.mxu0 0.0
    %982 = vmatpush1.msra.mxu0 0.0
    %983 = vmatprep.subr.mxu0 0.0
    %984 = vmatpush1.msra.mxu0 0.0
    %985 = vmatprep.subr.mxu0 0.0
    %986 = vmatpush1.msra.mxu0 0.0
    %987 = vmatprep.subr.mxu0 0.0
    %988 = vmatpush1.msra.mxu0 0.0
    %989 = vmatprep.subr.mxu0 0.0
    %990 = vmatpush1.msra.mxu0 0.0
    %991 = vmatprep.subr.mxu0 0.0
    %992 = vmatpush1.msra.mxu0 0.0
    %993 = vmatprep.subr.mxu0 0.0
    %994 = vmatpush1.msra.mxu0 0.0
    %995 = vmatprep.subr.mxu0 0.0
    %996 = vmatpush1.msra.mxu0 0.0
    %997 = vmatprep.subr.mxu0 0.0
    %998 = vmatpush1.msra.mxu0 0.0
    %999 = vmatprep.subr.mxu0 0.0
    %1000 = vmatpush1.msra.mxu0 0.0
    %1001 = vmatprep.subr.mxu0 0.0
    %1002 = vmatpush1.msra.mxu0 0.0
    %1003 = vmatprep.subr.mxu0 0.0
    %1004 = vmatpush1.msra.mxu0 0.0
    %1005 = vmatprep.subr.mxu0 0.0
    %1006 = vmatpush1.msra.mxu0 0.0
    %1007 = vmatprep.subr.mxu0 0.0
    %1008 = vmatpush1.msra.mxu0 0.0
    %1009 = vmatprep.subr.mxu0 0.0
    %1010 = vmatpush1.msra.mxu0 0.0
    %1011 = vmatprep.mubr.f32.mxu0 0.0
    %1012 = vmatmul.mubr.f32.gmra.mrb[0].mxu0 %v937
    %v1013 = vpop.f32.mrb[0].mxu0
    %v1014 = vadd.f32 0.0, %v1013
    %v1015 = vpop.f32.mrb[0].mxu0
    %v1016 = vadd.f32 0.0, %v1015
    %1017 = vdwg.mxu0
    %1018 = vmatprep.subr.mxu0 %v520
    %1019 = vmatpush1.msra.mxu0 %v519
    %1020 = vmatprep.subr.mxu0 %v524
    %1021 = vmatpush1.msra.mxu0 %v523
    %1022 = vmatprep.subr.mxu0 %v528
    %1023 = vmatpush1.msra.mxu0 %v527
    %1024 = vmatprep.subr.mxu0 %v532
    %1025 = vmatpush1.msra.mxu0 %v531
    %1026 = vmatprep.subr.mxu0 %v536
    %1027 = vmatpush1.msra.mxu0 %v535
    %1028 = vmatprep.subr.mxu0 %v540
    %1029 = vmatpush1.msra.mxu0 %v539
    %1030 = vmatprep.subr.mxu0 %v544
    %1031 = vmatpush1.msra.mxu0 %v543
    %1032 = vmatprep.subr.mxu0 %v548
    %1033 = vmatpush1.msra.mxu0 %v547
    %1034 = vmatprep.subr.mxu0 %v552
    %1035 = vmatpush1.msra.mxu0 %v551
    %1036 = vmatprep.subr.mxu0 %v556
    %1037 = vmatpush1.msra.mxu0 %v555
    %1038 = vmatprep.subr.mxu0 %v560
    %1039 = vmatpush1.msra.mxu0 %v559
    %1040 = vmatprep.subr.mxu0 %v564
    %1041 = vmatpush1.msra.mxu0 %v563
    %1042 = vmatprep.subr.mxu0 %v568
    %1043 = vmatpush1.msra.mxu0 %v567
    %1044 = vmatprep.subr.mxu0 %v572
    %1045 = vmatpush1.msra.mxu0 %v571
    %1046 = vmatprep.subr.mxu0 %v576
    %1047 = vmatpush1.msra.mxu0 %v575
    %1048 = vmatprep.subr.mxu0 %v580
    %1049 = vmatpush1.msra.mxu0 %v579
    %1050 = vmatprep.subr.mxu0 0.0
    %1051 = vmatpush1.msra.mxu0 0.0
    %1052 = vmatprep.subr.mxu0 0.0
    %1053 = vmatpush1.msra.mxu0 0.0
    %1054 = vmatprep.subr.mxu0 0.0
    %1055 = vmatpush1.msra.mxu0 0.0
    %1056 = vmatprep.subr.mxu0 0.0
    %1057 = vmatpush1.msra.mxu0 0.0
    %1058 = vmatprep.subr.mxu0 0.0
    %1059 = vmatpush1.msra.mxu0 0.0
    %1060 = vmatprep.subr.mxu0 0.0
    %1061 = vmatpush1.msra.mxu0 0.0
    %1062 = vmatprep.subr.mxu0 0.0
    %1063 = vmatpush1.msra.mxu0 0.0
    %1064 = vmatprep.subr.mxu0 0.0
    %1065 = vmatpush1.msra.mxu0 0.0
    %1066 = vmatprep.subr.mxu0 0.0
    %1067 = vmatpush1.msra.mxu0 0.0
    %1068 = vmatprep.subr.mxu0 0.0
    %1069 = vmatpush1.msra.mxu0 0.0
    %1070 = vmatprep.subr.mxu0 0.0
    %1071 = vmatpush1.msra.mxu0 0.0
    %1072 = vmatprep.subr.mxu0 0.0
    %1073 = vmatpush1.msra.mxu0 0.0
    %1074 = vmatprep.subr.mxu0 0.0
    %1075 = vmatpush1.msra.mxu0 0.0
    %1076 = vmatprep.subr.mxu0 0.0
    %1077 = vmatpush1.msra.mxu0 0.0
    %1078 = vmatprep.subr.mxu0 0.0
    %1079 = vmatpush1.msra.mxu0 0.0
    %1080 = vmatprep.subr.mxu0 0.0
    %1081 = vmatpush1.msra.mxu0 0.0
    %1082 = vmatprep.mubr.f32.mxu0 0.0
    %1083 = vmatmul.mubr.f32.gmra.mrb[0].mxu0 %v937
    %v1084 = vpop.f32.mrb[0].mxu0
    %v1085 = vadd.f32 0.0, %v1084
    %v1086 = vpop.f32.mrb[0].mxu0
    %v1087 = vadd.f32 0.0, %v1086
    %1088 = vdwg.mxu0
    %v1089 = vadd.f32 %v943, %v1014
    %v1090 = vadd.f32 %v944, %v1016
    %v1091 = vadd.f32 %v945, %v1085
    %v1092 = vadd.f32 %v946, %v1087
    %v1093 = vxor.u32 %v1089, 2147483648
    %v1094 = vxor.u32 %v1090, 2147483648
    %v1095 = vxor.u32 %v1091, 2147483648
    %v1096 = vmul.f32 %v1093, 1.442695
    %v1097 = vpow.pop %v1096
    %v1098 = vmul.f32 %v1094, 1.442695
    %v1099 = vpow.pop %v1098
    %v1100 = vmul.f32 %v1095, 1.442695
    %v1101 = vpow.pop %v1100
    %v1102 = vadd.f32 %v1097, 1.0
    %v1103 = vadd.f32 %v1099, 1.0
    %v1104 = vadd.f32 %v1101, 1.0
    %v1105 = vrcp.pop %v1102
    %v1106 = vmul.f32 1.0, %v1105
    %v1107 = vrcp.pop %v1103
    %v1108 = vmul.f32 1.0, %v1107
    %v1109 = vrcp.pop %v1104
    %v1110 = vmul.f32 1.0, %v1109
    %v1111 = vtanh.pop %v1092
    %v1112 = vmul.f32 %v1108, %v935
    %v1113 = vmul.f32 %v1106, %v1111
    %v1114 = vadd.f32 %v1112, %v1113
    %v1115 = vtanh.pop %v1114
    %v1116 = vmul.f32 %v1110, %v1115
    %s1117 = scalar_lea.vmem %s7, 16
    %1118 = vst [vmem:[%s1117] sm:$0xff] %v1116
    %s1119 = smul.u32 3, 4
    %s1120 = smul.addr %s1119, 8
    %s1121 = scalar_lea.vmem [#allocation4], %s1120
    %v1122 = vld [vmem:[%s1121] sm:$0xff]
    %v1123 = vld [vmem:[%s1121 + $0x8] sm:$0xff]
    %v1124 = vld [vmem:[%s1121 + $0x10] sm:$0xff]
    %v1125 = vld [vmem:[%s1121 + $0x18] sm:$0xff]
    %1126 = vmatprep.subr.mxu0 %v518
    %1127 = vmatpush1.msra.mxu0 %v517
    %1128 = vmatprep.subr.mxu0 %v522
    %1129 = vmatpush1.msra.mxu0 %v521
    %1130 = vmatprep.subr.mxu0 %v526
    %1131 = vmatpush1.msra.mxu0 %v525
    %1132 = vmatprep.subr.mxu0 %v530
    %1133 = vmatpush1.msra.mxu0 %v529
    %1134 = vmatprep.subr.mxu0 %v534
    %1135 = vmatpush1.msra.mxu0 %v533
    %1136 = vmatprep.subr.mxu0 %v538
    %1137 = vmatpush1.msra.mxu0 %v537
    %1138 = vmatprep.subr.mxu0 %v542
    %1139 = vmatpush1.msra.mxu0 %v541
    %1140 = vmatprep.subr.mxu0 %v546
    %1141 = vmatpush1.msra.mxu0 %v545
    %1142 = vmatprep.subr.mxu0 %v550
    %1143 = vmatpush1.msra.mxu0 %v549
    %1144 = vmatprep.subr.mxu0 %v554
    %1145 = vmatpush1.msra.mxu0 %v553
    %1146 = vmatprep.subr.mxu0 %v558
    %1147 = vmatpush1.msra.mxu0 %v557
    %1148 = vmatprep.subr.mxu0 %v562
    %1149 = vmatpush1.msra.mxu0 %v561
    %1150 = vmatprep.subr.mxu0 %v566
    %1151 = vmatpush1.msra.mxu0 %v565
    %1152 = vmatprep.subr.mxu0 %v570
    %1153 = vmatpush1.msra.mxu0 %v569
    %1154 = vmatprep.subr.mxu0 %v574
    %1155 = vmatpush1.msra.mxu0 %v573
    %1156 = vmatprep.subr.mxu0 %v578
    %1157 = vmatpush1.msra.mxu0 %v577
    %1158 = vmatprep.subr.mxu0 0.0
    %1159 = vmatpush1.msra.mxu0 0.0
    %1160 = vmatprep.subr.mxu0 0.0
    %1161 = vmatpush1.msra.mxu0 0.0
    %1162 = vmatprep.subr.mxu0 0.0
    %1163 = vmatpush1.msra.mxu0 0.0
    %1164 = vmatprep.subr.mxu0 0.0
    %1165 = vmatpush1.msra.mxu0 0.0
    %1166 = vmatprep.subr.mxu0 0.0
    %1167 = vmatpush1.msra.mxu0 0.0
    %1168 = vmatprep.subr.mxu0 0.0
    %1169 = vmatpush1.msra.mxu0 0.0
    %1170 = vmatprep.subr.mxu0 0.0
    %1171 = vmatpush1.msra.mxu0 0.0
    %1172 = vmatprep.subr.mxu0 0.0
    %1173 = vmatpush1.msra.mxu0 0.0
    %1174 = vmatprep.subr.mxu0 0.0
    %1175 = vmatpush1.msra.mxu0 0.0
    %1176 = vmatprep.subr.mxu0 0.0
    %1177 = vmatpush1.msra.mxu0 0.0
    %1178 = vmatprep.subr.mxu0 0.0
    %1179 = vmatpush1.msra.mxu0 0.0
    %1180 = vmatprep.subr.mxu0 0.0
    %1181 = vmatpush1.msra.mxu0 0.0
    %1182 = vmatprep.subr.mxu0 0.0
    %1183 = vmatpush1.msra.mxu0 0.0
    %1184 = vmatprep.subr.mxu0 0.0
    %1185 = vmatpush1.msra.mxu0 0.0
    %1186 = vmatprep.subr.mxu0 0.0
    %1187 = vmatpush1.msra.mxu0 0.0
    %1188 = vmatprep.subr.mxu0 0.0
    %1189 = vmatpush1.msra.mxu0 0.0
    %1190 = vmatprep.mubr.f32.mxu0 0.0
    %1191 = vmatmul.mubr.f32.gmra.mrb[0].mxu0 %v1116
    %v1192 = vpop.f32.mrb[0].mxu0
    %v1193 = vadd.f32 0.0, %v1192
    %v1194 = vpop.f32.mrb[0].mxu0
    %v1195 = vadd.f32 0.0, %v1194
    %1196 = vdwg.mxu0
    %1197 = vmatprep.subr.mxu0 %v520
    %1198 = vmatpush1.msra.mxu0 %v519
    %1199 = vmatprep.subr.mxu0 %v524
    %1200 = vmatpush1.msra.mxu0 %v523
    %1201 = vmatprep.subr.mxu0 %v528
    %1202 = vmatpush1.msra.mxu0 %v527
    %1203 = vmatprep.subr.mxu0 %v532
    %1204 = vmatpush1.msra.mxu0 %v531
    %1205 = vmatprep.subr.mxu0 %v536
    %1206 = vmatpush1.msra.mxu0 %v535
    %1207 = vmatprep.subr.mxu0 %v540
    %1208 = vmatpush1.msra.mxu0 %v539
    %1209 = vmatprep.subr.mxu0 %v544
    %1210 = vmatpush1.msra.mxu0 %v543
    %1211 = vmatprep.subr.mxu0 %v548
    %1212 = vmatpush1.msra.mxu0 %v547
    %1213 = vmatprep.subr.mxu0 %v552
    %1214 = vmatpush1.msra.mxu0 %v551
    %1215 = vmatprep.subr.mxu0 %v556
    %1216 = vmatpush1.msra.mxu0 %v555
    %1217 = vmatprep.subr.mxu0 %v560
    %1218 = vmatpush1.msra.mxu0 %v559
    %1219 = vmatprep.subr.mxu0 %v564
    %1220 = vmatpush1.msra.mxu0 %v563
    %1221 = vmatprep.subr.mxu0 %v568
    %1222 = vmatpush1.msra.mxu0 %v567
    %1223 = vmatprep.subr.mxu0 %v572
    %1224 = vmatpush1.msra.mxu0 %v571
    %1225 = vmatprep.subr.mxu0 %v576
    %1226 = vmatpush1.msra.mxu0 %v575
    %1227 = vmatprep.subr.mxu0 %v580
    %1228 = vmatpush1.msra.mxu0 %v579
    %1229 = vmatprep.subr.mxu0 0.0
    %1230 = vmatpush1.msra.mxu0 0.0
    %1231 = vmatprep.subr.mxu0 0.0
    %1232 = vmatpush1.msra.mxu0 0.0
    %1233 = vmatprep.subr.mxu0 0.0
    %1234 = vmatpush1.msra.mxu0 0.0
    %1235 = vmatprep.subr.mxu0 0.0
    %1236 = vmatpush1.msra.mxu0 0.0
    %1237 = vmatprep.subr.mxu0 0.0
    %1238 = vmatpush1.msra.mxu0 0.0
    %1239 = vmatprep.subr.mxu0 0.0
    %1240 = vmatpush1.msra.mxu0 0.0
    %1241 = vmatprep.subr.mxu0 0.0
    %1242 = vmatpush1.msra.mxu0 0.0
    %1243 = vmatprep.subr.mxu0 0.0
    %1244 = vmatpush1.msra.mxu0 0.0
    %1245 = vmatprep.subr.mxu0 0.0
    %1246 = vmatpush1.msra.mxu0 0.0
    %1247 = vmatprep.subr.mxu0 0.0
    %1248 = vmatpush1.msra.mxu0 0.0
    %1249 = vmatprep.subr.mxu0 0.0
    %1250 = vmatpush1.msra.mxu0 0.0
    %1251 = vmatprep.subr.mxu0 0.0
    %1252 = vmatpush1.msra.mxu0 0.0
    %1253 = vmatprep.subr.mxu0 0.0
    %1254 = vmatpush1.msra.mxu0 0.0
    %1255 = vmatprep.subr.mxu0 0.0
    %1256 = vmatpush1.msra.mxu0 0.0
    %1257 = vmatprep.subr.mxu0 0.0
    %1258 = vmatpush1.msra.mxu0 0.0
    %1259 = vmatprep.subr.mxu0 0.0
    %1260 = vmatpush1.msra.mxu0 0.0
    %1261 = vmatprep.mubr.f32.mxu0 0.0
    %1262 = vmatmul.mubr.f32.gmra.mrb[0].mxu0 %v1116
    %v1263 = vpop.f32.mrb[0].mxu0
    %v1264 = vadd.f32 0.0, %v1263
    %v1265 = vpop.f32.mrb[0].mxu0
    %v1266 = vadd.f32 0.0, %v1265
    %1267 = vdwg.mxu0
    %v1268 = vadd.f32 %v1122, %v1193
    %v1269 = vadd.f32 %v1123, %v1195
    %v1270 = vadd.f32 %v1124, %v1264
    %v1271 = vadd.f32 %v1125, %v1266
    %v1272 = vxor.u32 %v1268, 2147483648
    %v1273 = vxor.u32 %v1269, 2147483648
    %v1274 = vxor.u32 %v1270, 2147483648
    %v1275 = vmul.f32 %v1272, 1.442695
    %v1276 = vpow.pop %v1275
    %v1277 = vmul.f32 %v1273, 1.442695
    %v1278 = vpow.pop %v1277
    %v1279 = vmul.f32 %v1274, 1.442695
    %v1280 = vpow.pop %v1279
    %v1281 = vadd.f32 %v1276, 1.0
    %v1282 = vadd.f32 %v1278, 1.0
    %v1283 = vadd.f32 %v1280, 1.0
    %v1284 = vrcp.pop %v1281
    %v1285 = vmul.f32 1.0, %v1284
    %v1286 = vrcp.pop %v1282
    %v1287 = vmul.f32 1.0, %v1286
    %v1288 = vrcp.pop %v1283
    %v1289 = vmul.f32 1.0, %v1288
    %v1290 = vtanh.pop %v1271
    %v1291 = vmul.f32 %v1287, %v1114
    %v1292 = vmul.f32 %v1285, %v1290
    %v1293 = vadd.f32 %v1291, %v1292
    %v1294 = vtanh.pop %v1293
    %v1295 = vmul.f32 %v1289, %v1294
    %s1296 = scalar_lea.vmem %s7, 24
    %1297 = vst [vmem:[%s1296] sm:$0xff] %v1295
    %s1298 = smul.u32 4, 4
    %s1299 = smul.addr %s1298, 8
    %s1300 = scalar_lea.vmem [#allocation4], %s1299
    %v1301 = vld [vmem:[%s1300] sm:$0xff]
    %v1302 = vld [vmem:[%s1300 + $0x8] sm:$0xff]
    %v1303 = vld [vmem:[%s1300 + $0x10] sm:$0xff]
    %v1304 = vld [vmem:[%s1300 + $0x18] sm:$0xff]
    %1305 = vmatprep.subr.mxu0 %v518
    %1306 = vmatpush1.msra.mxu0 %v517
    %1307 = vmatprep.subr.mxu0 %v522
    %1308 = vmatpush1.msra.mxu0 %v521
    %1309 = vmatprep.subr.mxu0 %v526
    %1310 = vmatpush1.msra.mxu0 %v525
    %1311 = vmatprep.subr.mxu0 %v530
    %1312 = vmatpush1.msra.mxu0 %v529
    %1313 = vmatprep.subr.mxu0 %v534
    %1314 = vmatpush1.msra.mxu0 %v533
    %1315 = vmatprep.subr.mxu0 %v538
    %1316 = vmatpush1.msra.mxu0 %v537
    %1317 = vmatprep.subr.mxu0 %v542
    %1318 = vmatpush1.msra.mxu0 %v541
    %1319 = vmatprep.subr.mxu0 %v546
    %1320 = vmatpush1.msra.mxu0 %v545
    %1321 = vmatprep.subr.mxu0 %v550
    %1322 = vmatpush1.msra.mxu0 %v549
    %1323 = vmatprep.subr.mxu0 %v554
    %1324 = vmatpush1.msra.mxu0 %v553
    %1325 = vmatprep.subr.mxu0 %v558
    %1326 = vmatpush1.msra.mxu0 %v557
    %1327 = vmatprep.subr.mxu0 %v562
    %1328 = vmatpush1.msra.mxu0 %v561
    %1329 = vmatprep.subr.mxu0 %v566
    %1330 = vmatpush1.msra.mxu0 %v565
    %1331 = vmatprep.subr.mxu0 %v570
    %1332 = vmatpush1.msra.mxu0 %v569
    %1333 = vmatprep.subr.mxu0 %v574
    %1334 = vmatpush1.msra.mxu0 %v573
    %1335 = vmatprep.subr.mxu0 %v578
    %1336 = vmatpush1.msra.mxu0 %v577
    %1337 = vmatprep.subr.mxu0 0.0
    %1338 = vmatpush1.msra.mxu0 0.0
    %1339 = vmatprep.subr.mxu0 0.0
    %1340 = vmatpush1.msra.mxu0 0.0
    %1341 = vmatprep.subr.mxu0 0.0
    %1342 = vmatpush1.msra.mxu0 0.0
    %1343 = vmatprep.subr.mxu0 0.0
    %1344 = vmatpush1.msra.mxu0 0.0
    %1345 = vmatprep.subr.mxu0 0.0
    %1346 = vmatpush1.msra.mxu0 0.0
    %1347 = vmatprep.subr.mxu0 0.0
    %1348 = vmatpush1.msra.mxu0 0.0
    %1349 = vmatprep.subr.mxu0 0.0
    %1350 = vmatpush1.msra.mxu0 0.0
    %1351 = vmatprep.subr.mxu0 0.0
    %1352 = vmatpush1.msra.mxu0 0.0
    %1353 = vmatprep.subr.mxu0 0.0
    %1354 = vmatpush1.msra.mxu0 0.0
    %1355 = vmatprep.subr.mxu0 0.0
    %1356 = vmatpush1.msra.mxu0 0.0
    %1357 = vmatprep.subr.mxu0 0.0
    %1358 = vmatpush1.msra.mxu0 0.0
    %1359 = vmatprep.subr.mxu0 0.0
    %1360 = vmatpush1.msra.mxu0 0.0
    %1361 = vmatprep.subr.mxu0 0.0
    %1362 = vmatpush1.msra.mxu0 0.0
    %1363 = vmatprep.subr.mxu0 0.0
    %1364 = vmatpush1.msra.mxu0 0.0
    %1365 = vmatprep.subr.mxu0 0.0
    %1366 = vmatpush1.msra.mxu0 0.0
    %1367 = vmatprep.subr.mxu0 0.0
    %1368 = vmatpush1.msra.mxu0 0.0
    %1369 = vmatprep.mubr.f32.mxu0 0.0
    %1370 = vmatmul.mubr.f32.gmra.mrb[0].mxu0 %v1295
    %v1371 = vpop.f32.mrb[0].mxu0
    %v1372 = vadd.f32 0.0, %v1371
    %v1373 = vpop.f32.mrb[0].mxu0
    %v1374 = vadd.f32 0.0, %v1373
    %1375 = vdwg.mxu0
    %1376 = vmatprep.subr.mxu0 %v520
    %1377 = vmatpush1.msra.mxu0 %v519
    %1378 = vmatprep.subr.mxu0 %v524
    %1379 = vmatpush1.msra.mxu0 %v523
    %1380 = vmatprep.subr.mxu0 %v528
    %1381 = vmatpush1.msra.mxu0 %v527
    %1382 = vmatprep.subr.mxu0 %v532
    %1383 = vmatpush1.msra.mxu0 %v531
    %1384 = vmatprep.subr.mxu0 %v536
    %1385 = vmatpush1.msra.mxu0 %v535
    %1386 = vmatprep.subr.mxu0 %v540
    %1387 = vmatpush1.msra.mxu0 %v539
    %1388 = vmatprep.subr.mxu0 %v544
    %1389 = vmatpush1.msra.mxu0 %v543
    %1390 = vmatprep.subr.mxu0 %v548
    %1391 = vmatpush1.msra.mxu0 %v547
    %1392 = vmatprep.subr.mxu0 %v552
    %1393 = vmatpush1.msra.mxu0 %v551
    %1394 = vmatprep.subr.mxu0 %v556
    %1395 = vmatpush1.msra.mxu0 %v555
    %1396 = vmatprep.subr.mxu0 %v560
    %1397 = vmatpush1.msra.mxu0 %v559
    %1398 = vmatprep.subr.mxu0 %v564
    %1399 = vmatpush1.msra.mxu0 %v563
    %1400 = vmatprep.subr.mxu0 %v568
    %1401 = vmatpush1.msra.mxu0 %v567
    %1402 = vmatprep.subr.mxu0 %v572
    %1403 = vmatpush1.msra.mxu0 %v571
    %1404 = vmatprep.subr.mxu0 %v576
    %1405 = vmatpush1.msra.mxu0 %v575
    %1406 = vmatprep.subr.mxu0 %v580
    %1407 = vmatpush1.msra.mxu0 %v579
    %1408 = vmatprep.subr.mxu0 0.0
    %1409 = vmatpush1.msra.mxu0 0.0
    %1410 = vmatprep.subr.mxu0 0.0
    %1411 = vmatpush1.msra.mxu0 0.0
    %1412 = vmatprep.subr.mxu0 0.0
    %1413 = vmatpush1.msra.mxu0 0.0
    %1414 = vmatprep.subr.mxu0 0.0
    %1415 = vmatpush1.msra.mxu0 0.0
    %1416 = vmatprep.subr.mxu0 0.0
    %1417 = vmatpush1.msra.mxu0 0.0
    %1418 = vmatprep.subr.mxu0 0.0
    %1419 = vmatpush1.msra.mxu0 0.0
    %1420 = vmatprep.subr.mxu0 0.0
    %1421 = vmatpush1.msra.mxu0 0.0
    %1422 = vmatprep.subr.mxu0 0.0
    %1423 = vmatpush1.msra.mxu0 0.0
    %1424 = vmatprep.subr.mxu0 0.0
    %1425 = vmatpush1.msra.mxu0 0.0
    %1426 = vmatprep.subr.mxu0 0.0
    %1427 = vmatpush1.msra.mxu0 0.0
    %1428 = vmatprep.subr.mxu0 0.0
    %1429 = vmatpush1.msra.mxu0 0.0
    %1430 = vmatprep.subr.mxu0 0.0
    %1431 = vmatpush1.msra.mxu0 0.0
    %1432 = vmatprep.subr.mxu0 0.0
    %1433 = vmatpush1.msra.mxu0 0.0
    %1434 = vmatprep.subr.mxu0 0.0
    %1435 = vmatpush1.msra.mxu0 0.0
    %1436 = vmatprep.subr.mxu0 0.0
    %1437 = vmatpush1.msra.mxu0 0.0
    %1438 = vmatprep.subr.mxu0 0.0
    %1439 = vmatpush1.msra.mxu0 0.0
    %1440 = vmatprep.mubr.f32.mxu0 0.0
    %1441 = vmatmul.mubr.f32.gmra.mrb[0].mxu0 %v1295
    %v1442 = vpop.f32.mrb[0].mxu0
    %v1443 = vadd.f32 0.0, %v1442
    %v1444 = vpop.f32.mrb[0].mxu0
    %v1445 = vadd.f32 0.0, %v1444
    %1446 = vdwg.mxu0
    %v1447 = vadd.f32 %v1301, %v1372
    %v1448 = vadd.f32 %v1302, %v1374
    %v1449 = vadd.f32 %v1303, %v1443
    %v1450 = vadd.f32 %v1304, %v1445
    %v1451 = vxor.u32 %v1447, 2147483648
    %v1452 = vxor.u32 %v1448, 2147483648
    %v1453 = vxor.u32 %v1449, 2147483648
    %v1454 = vmul.f32 %v1451, 1.442695
    %v1455 = vpow.pop %v1454
    %v1456 = vmul.f32 %v1452, 1.442695
    %v1457 = vpow.pop %v1456
    %v1458 = vmul.f32 %v1453, 1.442695
    %v1459 = vpow.pop %v1458
    %v1460 = vadd.f32 %v1455, 1.0
    %v1461 = vadd.f32 %v1457, 1.0
    %v1462 = vadd.f32 %v1459, 1.0
    %v1463 = vrcp.pop %v1460
    %v1464 = vmul.f32 1.0, %v1463
    %v1465 = vrcp.pop %v1461
    %v1466 = vmul.f32 1.0, %v1465
    %v1467 = vrcp.pop %v1462
    %v1468 = vmul.f32 1.0, %v1467
    %v1469 = vtanh.pop %v1450
    %v1470 = vmul.f32 %v1466, %v1293
    %v1471 = vmul.f32 %v1464, %v1469
    %v1472 = vadd.f32 %v1470, %v1471
    %v1473 = vtanh.pop %v1472
    %v1474 = vmul.f32 %v1468, %v1473
    %s1475 = scalar_lea.vmem %s7, 32
    %1476 = vst [vmem:[%s1475] sm:$0xff] %v1474
    %s1477 = smul.u32 5, 4
    %s1478 = smul.addr %s1477, 8
    %s1479 = scalar_lea.vmem [#allocation4], %s1478
    %v1480 = vld [vmem:[%s1479] sm:$0xff]
    %v1481 = vld [vmem:[%s1479 + $0x8] sm:$0xff]
    %v1482 = vld [vmem:[%s1479 + $0x10] sm:$0xff]
    %v1483 = vld [vmem:[%s1479 + $0x18] sm:$0xff]
    %1484 = vmatprep.subr.mxu0 %v518
    %1485 = vmatpush1.msra.mxu0 %v517
    %1486 = vmatprep.subr.mxu0 %v522
    %1487 = vmatpush1.msra.mxu0 %v521
    %1488 = vmatprep.subr.mxu0 %v526
    %1489 = vmatpush1.msra.mxu0 %v525
    %1490 = vmatprep.subr.mxu0 %v530
    %1491 = vmatpush1.msra.mxu0 %v529
    %1492 = vmatprep.subr.mxu0 %v534
    %1493 = vmatpush1.msra.mxu0 %v533
    %1494 = vmatprep.subr.mxu0 %v538
    %1495 = vmatpush1.msra.mxu0 %v537
    %1496 = vmatprep.subr.mxu0 %v542
    %1497 = vmatpush1.msra.mxu0 %v541
    %1498 = vmatprep.subr.mxu0 %v546
    %1499 = vmatpush1.msra.mxu0 %v545
    %1500 = vmatprep.subr.mxu0 %v550
    %1501 = vmatpush1.msra.mxu0 %v549
    %1502 = vmatprep.subr.mxu0 %v554
    %1503 = vmatpush1.msra.mxu0 %v553
    %1504 = vmatprep.subr.mxu0 %v558
    %1505 = vmatpush1.msra.mxu0 %v557
    %1506 = vmatprep.subr.mxu0 %v562
    %1507 = vmatpush1.msra.mxu0 %v561
    %1508 = vmatprep.subr.mxu0 %v566
    %1509 = vmatpush1.msra.mxu0 %v565
    %1510 = vmatprep.subr.mxu0 %v570
    %1511 = vmatpush1.msra.mxu0 %v569
    %1512 = vmatprep.subr.mxu0 %v574
    %1513 = vmatpush1.msra.mxu0 %v573
    %1514 = vmatprep.subr.mxu0 %v578
    %1515 = vmatpush1.msra.mxu0 %v577
    %1516 = vmatprep.subr.mxu0 0.0
    %1517 = vmatpush1.msra.mxu0 0.0
    %1518 = vmatprep.subr.mxu0 0.0
    %1519 = vmatpush1.msra.mxu0 0.0
    %1520 = vmatprep.subr.mxu0 0.0
    %1521 = vmatpush1.msra.mxu0 0.0
    %1522 = vmatprep.subr.mxu0 0.0
    %1523 = vmatpush1.msra.mxu0 0.0
    %1524 = vmatprep.subr.mxu0 0.0
    %1525 = vmatpush1.msra.mxu0 0.0
    %1526 = vmatprep.subr.mxu0 0.0
    %1527 = vmatpush1.msra.mxu0 0.0
    %1528 = vmatprep.subr.mxu0 0.0
    %1529 = vmatpush1.msra.mxu0 0.0
    %1530 = vmatprep.subr.mxu0 0.0
    %1531 = vmatpush1.msra.mxu0 0.0
    %1532 = vmatprep.subr.mxu0 0.0
    %1533 = vmatpush1.msra.mxu0 0.0
    %1534 = vmatprep.subr.mxu0 0.0
    %1535 = vmatpush1.msra.mxu0 0.0
    %1536 = vmatprep.subr.mxu0 0.0
    %1537 = vmatpush1.msra.mxu0 0.0
    %1538 = vmatprep.subr.mxu0 0.0
    %1539 = vmatpush1.msra.mxu0 0.0
    %1540 = vmatprep.subr.mxu0 0.0
    %1541 = vmatpush1.msra.mxu0 0.0
    %1542 = vmatprep.subr.mxu0 0.0
    %1543 = vmatpush1.msra.mxu0 0.0
    %1544 = vmatprep.subr.mxu0 0.0
    %1545 = vmatpush1.msra.mxu0 0.0
    %1546 = vmatprep.subr.mxu0 0.0
    %1547 = vmatpush1.msra.mxu0 0.0
    %1548 = vmatprep.mubr.f32.mxu0 0.0
    %1549 = vmatmul.mubr.f32.gmra.mrb[0].mxu0 %v1474
    %v1550 = vpop.f32.mrb[0].mxu0
    %v1551 = vadd.f32 0.0, %v1550
    %v1552 = vpop.f32.mrb[0].mxu0
    %v1553 = vadd.f32 0.0, %v1552
    %1554 = vdwg.mxu0
    %1555 = vmatprep.subr.mxu0 %v520
    %1556 = vmatpush1.msra.mxu0 %v519
    %1557 = vmatprep.subr.mxu0 %v524
    %1558 = vmatpush1.msra.mxu0 %v523
    %1559 = vmatprep.subr.mxu0 %v528
    %1560 = vmatpush1.msra.mxu0 %v527
    %1561 = vmatprep.subr.mxu0 %v532
    %1562 = vmatpush1.msra.mxu0 %v531
    %1563 = vmatprep.subr.mxu0 %v536
    %1564 = vmatpush1.msra.mxu0 %v535
    %1565 = vmatprep.subr.mxu0 %v540
    %1566 = vmatpush1.msra.mxu0 %v539
    %1567 = vmatprep.subr.mxu0 %v544
    %1568 = vmatpush1.msra.mxu0 %v543
    %1569 = vmatprep.subr.mxu0 %v548
    %1570 = vmatpush1.msra.mxu0 %v547
    %1571 = vmatprep.subr.mxu0 %v552
    %1572 = vmatpush1.msra.mxu0 %v551
    %1573 = vmatprep.subr.mxu0 %v556
    %1574 = vmatpush1.msra.mxu0 %v555
    %1575 = vmatprep.subr.mxu0 %v560
    %1576 = vmatpush1.msra.mxu0 %v559
    %1577 = vmatprep.subr.mxu0 %v564
    %1578 = vmatpush1.msra.mxu0 %v563
    %1579 = vmatprep.subr.mxu0 %v568
    %1580 = vmatpush1.msra.mxu0 %v567
    %1581 = vmatprep.subr.mxu0 %v572
    %1582 = vmatpush1.msra.mxu0 %v571
    %1583 = vmatprep.subr.mxu0 %v576
    %1584 = vmatpush1.msra.mxu0 %v575
    %1585 = vmatprep.subr.mxu0 %v580
    %1586 = vmatpush1.msra.mxu0 %v579
    %1587 = vmatprep.subr.mxu0 0.0
    %1588 = vmatpush1.msra.mxu0 0.0
    %1589 = vmatprep.subr.mxu0 0.0
    %1590 = vmatpush1.msra.mxu0 0.0
    %1591 = vmatprep.subr.mxu0 0.0
    %1592 = vmatpush1.msra.mxu0 0.0
    %1593 = vmatprep.subr.mxu0 0.0
    %1594 = vmatpush1.msra.mxu0 0.0
    %1595 = vmatprep.subr.mxu0 0.0
    %1596 = vmatpush1.msra.mxu0 0.0
    %1597 = vmatprep.subr.mxu0 0.0
    %1598 = vmatpush1.msra.mxu0 0.0
    %1599 = vmatprep.subr.mxu0 0.0
    %1600 = vmatpush1.msra.mxu0 0.0
    %1601 = vmatprep.subr.mxu0 0.0
    %1602 = vmatpush1.msra.mxu0 0.0
    %1603 = vmatprep.subr.mxu0 0.0
    %1604 = vmatpush1.msra.mxu0 0.0
    %1605 = vmatprep.subr.mxu0 0.0
    %1606 = vmatpush1.msra.mxu0 0.0
    %1607 = vmatprep.subr.mxu0 0.0
    %1608 = vmatpush1.msra.mxu0 0.0
    %1609 = vmatprep.subr.mxu0 0.0
    %1610 = vmatpush1.msra.mxu0 0.0
    %1611 = vmatprep.subr.mxu0 0.0
    %1612 = vmatpush1.msra.mxu0 0.0
    %1613 = vmatprep.subr.mxu0 0.0
    %1614 = vmatpush1.msra.mxu0 0.0
    %1615 = vmatprep.subr.mxu0 0.0
    %1616 = vmatpush1.msra.mxu0 0.0
    %1617 = vmatprep.subr.mxu0 0.0
    %1618 = vmatpush1.msra.mxu0 0.0
    %1619 = vmatprep.mubr.f32.mxu0 0.0
    %1620 = vmatmul.mubr.f32.gmra.mrb[0].mxu0 %v1474
    %v1621 = vpop.f32.mrb[0].mxu0
    %v1622 = vadd.f32 0.0, %v1621
    %v1623 = vpop.f32.mrb[0].mxu0
    %v1624 = vadd.f32 0.0, %v1623
    %1625 = vdwg.mxu0
    %v1626 = vadd.f32 %v1480, %v1551
    %v1627 = vadd.f32 %v1481, %v1553
    %v1628 = vadd.f32 %v1482, %v1622
    %v1629 = vadd.f32 %v1483, %v1624
    %v1630 = vxor.u32 %v1626, 2147483648
    %v1631 = vxor.u32 %v1627, 2147483648
    %v1632 = vxor.u32 %v1628, 2147483648
    %v1633 = vmul.f32 %v1630, 1.442695
    %v1634 = vpow.pop %v1633
    %v1635 = vmul.f32 %v1631, 1.442695
    %v1636 = vpow.pop %v1635
    %v1637 = vmul.f32 %v1632, 1.442695
    %v1638 = vpow.pop %v1637
    %v1639 = vadd.f32 %v1634, 1.0
    %v1640 = vadd.f32 %v1636, 1.0
    %v1641 = vadd.f32 %v1638, 1.0
    %v1642 = vrcp.pop %v1639
    %v1643 = vmul.f32 1.0, %v1642
    %v1644 = vrcp.pop %v1640
    %v1645 = vmul.f32 1.0, %v1644
    %v1646 = vrcp.pop %v1641
    %v1647 = vmul.f32 1.0, %v1646
    %v1648 = vtanh.pop %v1629
    %v1649 = vmul.f32 %v1645, %v1472
    %v1650 = vmul.f32 %v1643, %v1648
    %v1651 = vadd.f32 %v1649, %v1650
    %v1652 = vtanh.pop %v1651
    %v1653 = vmul.f32 %v1647, %v1652
    %s1654 = scalar_lea.vmem %s7, 40
    %1655 = vst [vmem:[%s1654] sm:$0xff] %v1653
    %s1656 = smul.u32 6, 4
    %s1657 = smul.addr %s1656, 8
    %s1658 = scalar_lea.vmem [#allocation4], %s1657
    %v1659 = vld [vmem:[%s1658] sm:$0xff]
    %v1660 = vld [vmem:[%s1658 + $0x8] sm:$0xff]
    %v1661 = vld [vmem:[%s1658 + $0x10] sm:$0xff]
    %v1662 = vld [vmem:[%s1658 + $0x18] sm:$0xff]
    %1663 = vmatprep.subr.mxu0 %v518
    %1664 = vmatpush1.msra.mxu0 %v517
    %1665 = vmatprep.subr.mxu0 %v522
    %1666 = vmatpush1.msra.mxu0 %v521
    %1667 = vmatprep.subr.mxu0 %v526
    %1668 = vmatpush1.msra.mxu0 %v525
    %1669 = vmatprep.subr.mxu0 %v530
    %1670 = vmatpush1.msra.mxu0 %v529
    %1671 = vmatprep.subr.mxu0 %v534
    %1672 = vmatpush1.msra.mxu0 %v533
    %1673 = vmatprep.subr.mxu0 %v538
    %1674 = vmatpush1.msra.mxu0 %v537
    %1675 = vmatprep.subr.mxu0 %v542
    %1676 = vmatpush1.msra.mxu0 %v541
    %1677 = vmatprep.subr.mxu0 %v546
    %1678 = vmatpush1.msra.mxu0 %v545
    %1679 = vmatprep.subr.mxu0 %v550
    %1680 = vmatpush1.msra.mxu0 %v549
    %1681 = vmatprep.subr.mxu0 %v554
    %1682 = vmatpush1.msra.mxu0 %v553
    %1683 = vmatprep.subr.mxu0 %v558
    %1684 = vmatpush1.msra.mxu0 %v557
    %1685 = vmatprep.subr.mxu0 %v562
    %1686 = vmatpush1.msra.mxu0 %v561
    %1687 = vmatprep.subr.mxu0 %v566
    %1688 = vmatpush1.msra.mxu0 %v565
    %1689 = vmatprep.subr.mxu0 %v570
    %1690 = vmatpush1.msra.mxu0 %v569
    %1691 = vmatprep.subr.mxu0 %v574
    %1692 = vmatpush1.msra.mxu0 %v573
    %1693 = vmatprep.subr.mxu0 %v578
    %1694 = vmatpush1.msra.mxu0 %v577
    %1695 = vmatprep.subr.mxu0 0.0
    %1696 = vmatpush1.msra.mxu0 0.0
    %1697 = vmatprep.subr.mxu0 0.0
    %1698 = vmatpush1.msra.mxu0 0.0
    %1699 = vmatprep.subr.mxu0 0.0
    %1700 = vmatpush1.msra.mxu0 0.0
    %1701 = vmatprep.subr.mxu0 0.0
    %1702 = vmatpush1.msra.mxu0 0.0
    %1703 = vmatprep.subr.mxu0 0.0
    %1704 = vmatpush1.msra.mxu0 0.0
    %1705 = vmatprep.subr.mxu0 0.0
    %1706 = vmatpush1.msra.mxu0 0.0
    %1707 = vmatprep.subr.mxu0 0.0
    %1708 = vmatpush1.msra.mxu0 0.0
    %1709 = vmatprep.subr.mxu0 0.0
    %1710 = vmatpush1.msra.mxu0 0.0
    %1711 = vmatprep.subr.mxu0 0.0
    %1712 = vmatpush1.msra.mxu0 0.0
    %1713 = vmatprep.subr.mxu0 0.0
    %1714 = vmatpush1.msra.mxu0 0.0
    %1715 = vmatprep.subr.mxu0 0.0
    %1716 = vmatpush1.msra.mxu0 0.0
    %1717 = vmatprep.subr.mxu0 0.0
    %1718 = vmatpush1.msra.mxu0 0.0
    %1719 = vmatprep.subr.mxu0 0.0
    %1720 = vmatpush1.msra.mxu0 0.0
    %1721 = vmatprep.subr.mxu0 0.0
    %1722 = vmatpush1.msra.mxu0 0.0
    %1723 = vmatprep.subr.mxu0 0.0
    %1724 = vmatpush1.msra.mxu0 0.0
    %1725 = vmatprep.subr.mxu0 0.0
    %1726 = vmatpush1.msra.mxu0 0.0
    %1727 = vmatprep.mubr.f32.mxu0 0.0
    %1728 = vmatmul.mubr.f32.gmra.mrb[0].mxu0 %v1653
    %v1729 = vpop.f32.mrb[0].mxu0
    %v1730 = vadd.f32 0.0, %v1729
    %v1731 = vpop.f32.mrb[0].mxu0
    %v1732 = vadd.f32 0.0, %v1731
    %1733 = vdwg.mxu0
    %1734 = vmatprep.subr.mxu0 %v520
    %1735 = vmatpush1.msra.mxu0 %v519
    %1736 = vmatprep.subr.mxu0 %v524
    %1737 = vmatpush1.msra.mxu0 %v523
    %1738 = vmatprep.subr.mxu0 %v528
    %1739 = vmatpush1.msra.mxu0 %v527
    %1740 = vmatprep.subr.mxu0 %v532
    %1741 = vmatpush1.msra.mxu0 %v531
    %1742 = vmatprep.subr.mxu0 %v536
    %1743 = vmatpush1.msra.mxu0 %v535
    %1744 = vmatprep.subr.mxu0 %v540
    %1745 = vmatpush1.msra.mxu0 %v539
    %1746 = vmatprep.subr.mxu0 %v544
    %1747 = vmatpush1.msra.mxu0 %v543
    %1748 = vmatprep.subr.mxu0 %v548
    %1749 = vmatpush1.msra.mxu0 %v547
    %1750 = vmatprep.subr.mxu0 %v552
    %1751 = vmatpush1.msra.mxu0 %v551
    %1752 = vmatprep.subr.mxu0 %v556
    %1753 = vmatpush1.msra.mxu0 %v555
    %1754 = vmatprep.subr.mxu0 %v560
    %1755 = vmatpush1.msra.mxu0 %v559
    %1756 = vmatprep.subr.mxu0 %v564
    %1757 = vmatpush1.msra.mxu0 %v563
    %1758 = vmatprep.subr.mxu0 %v568
    %1759 = vmatpush1.msra.mxu0 %v567
    %1760 = vmatprep.subr.mxu0 %v572
    %1761 = vmatpush1.msra.mxu0 %v571
    %1762 = vmatprep.subr.mxu0 %v576
    %1763 = vmatpush1.msra.mxu0 %v575
    %1764 = vmatprep.subr.mxu0 %v580
    %1765 = vmatpush1.msra.mxu0 %v579
    %1766 = vmatprep.subr.mxu0 0.0
    %1767 = vmatpush1.msra.mxu0 0.0
    %1768 = vmatprep.subr.mxu0 0.0
    %1769 = vmatpush1.msra.mxu0 0.0
    %1770 = vmatprep.subr.mxu0 0.0
    %1771 = vmatpush1.msra.mxu0 0.0
    %1772 = vmatprep.subr.mxu0 0.0
    %1773 = vmatpush1.msra.mxu0 0.0
    %1774 = vmatprep.subr.mxu0 0.0
    %1775 = vmatpush1.msra.mxu0 0.0
    %1776 = vmatprep.subr.mxu0 0.0
    %1777 = vmatpush1.msra.mxu0 0.0
    %1778 = vmatprep.subr.mxu0 0.0
    %1779 = vmatpush1.msra.mxu0 0.0
    %1780 = vmatprep.subr.mxu0 0.0
    %1781 = vmatpush1.msra.mxu0 0.0
    %1782 = vmatprep.subr.mxu0 0.0
    %1783 = vmatpush1.msra.mxu0 0.0
    %1784 = vmatprep.subr.mxu0 0.0
    %1785 = vmatpush1.msra.mxu0 0.0
    %1786 = vmatprep.subr.mxu0 0.0
    %1787 = vmatpush1.msra.mxu0 0.0
    %1788 = vmatprep.subr.mxu0 0.0
    %1789 = vmatpush1.msra.mxu0 0.0
    %1790 = vmatprep.subr.mxu0 0.0
    %1791 = vmatpush1.msra.mxu0 0.0
    %1792 = vmatprep.subr.mxu0 0.0
    %1793 = vmatpush1.msra.mxu0 0.0
    %1794 = vmatprep.subr.mxu0 0.0
    %1795 = vmatpush1.msra.mxu0 0.0
    %1796 = vmatprep.subr.mxu0 0.0
    %1797 = vmatpush1.msra.mxu0 0.0
    %1798 = vmatprep.mubr.f32.mxu0 0.0
    %1799 = vmatmul.mubr.f32.gmra.mrb[0].mxu0 %v1653
    %v1800 = vpop.f32.mrb[0].mxu0
    %v1801 = vadd.f32 0.0, %v1800
    %v1802 = vpop.f32.mrb[0].mxu0
    %v1803 = vadd.f32 0.0, %v1802
    %1804 = vdwg.mxu0
    %v1805 = vadd.f32 %v1659, %v1730
    %v1806 = vadd.f32 %v1660, %v1732
    %v1807 = vadd.f32 %v1661, %v1801
    %v1808 = vadd.f32 %v1662, %v1803
    %v1809 = vxor.u32 %v1805, 2147483648
    %v1810 = vxor.u32 %v1806, 2147483648
    %v1811 = vxor.u32 %v1807, 2147483648
    %v1812 = vmul.f32 %v1809, 1.442695
    %v1813 = vpow.pop %v1812
    %v1814 = vmul.f32 %v1810, 1.442695
    %v1815 = vpow.pop %v1814
    %v1816 = vmul.f32 %v1811, 1.442695
    %v1817 = vpow.pop %v1816
    %v1818 = vadd.f32 %v1813, 1.0
    %v1819 = vadd.f32 %v1815, 1.0
    %v1820 = vadd.f32 %v1817, 1.0
    %v1821 = vrcp.pop %v1818
    %v1822 = vmul.f32 1.0, %v1821
    %v1823 = vrcp.pop %v1819
    %v1824 = vmul.f32 1.0, %v1823
    %v1825 = vrcp.pop %v1820
    %v1826 = vmul.f32 1.0, %v1825
    %v1827 = vtanh.pop %v1808
    %v1828 = vmul.f32 %v1824, %v1651
    %v1829 = vmul.f32 %v1822, %v1827
    %v1830 = vadd.f32 %v1828, %v1829
    %v1831 = vtanh.pop %v1830
    %v1832 = vmul.f32 %v1826, %v1831
    %s1833 = scalar_lea.vmem %s7, 48
    %1834 = vst [vmem:[%s1833] sm:$0xff] %v1832
    %s1835 = smul.u32 7, 4
    %s1836 = smul.addr %s1835, 8
    %s1837 = scalar_lea.vmem [#allocation4], %s1836
    %v1838 = vld [vmem:[%s1837] sm:$0xff]
    %v1839 = vld [vmem:[%s1837 + $0x8] sm:$0xff]
    %v1840 = vld [vmem:[%s1837 + $0x10] sm:$0xff]
    %v1841 = vld [vmem:[%s1837 + $0x18] sm:$0xff]
    %1842 = vmatprep.subr.mxu0 %v518
    %1843 = vmatpush1.msra.mxu0 %v517
    %1844 = vmatprep.subr.mxu0 %v522
    %1845 = vmatpush1.msra.mxu0 %v521
    %1846 = vmatprep.subr.mxu0 %v526
    %1847 = vmatpush1.msra.mxu0 %v525
    %1848 = vmatprep.subr.mxu0 %v530
    %1849 = vmatpush1.msra.mxu0 %v529
    %1850 = vmatprep.subr.mxu0 %v534
    %1851 = vmatpush1.msra.mxu0 %v533
    %1852 = vmatprep.subr.mxu0 %v538
    %1853 = vmatpush1.msra.mxu0 %v537
    %1854 = vmatprep.subr.mxu0 %v542
    %1855 = vmatpush1.msra.mxu0 %v541
    %1856 = vmatprep.subr.mxu0 %v546
    %1857 = vmatpush1.msra.mxu0 %v545
    %1858 = vmatprep.subr.mxu0 %v550
    %1859 = vmatpush1.msra.mxu0 %v549
    %1860 = vmatprep.subr.mxu0 %v554
    %1861 = vmatpush1.msra.mxu0 %v553
    %1862 = vmatprep.subr.mxu0 %v558
    %1863 = vmatpush1.msra.mxu0 %v557
    %1864 = vmatprep.subr.mxu0 %v562
    %1865 = vmatpush1.msra.mxu0 %v561
    %1866 = vmatprep.subr.mxu0 %v566
    %1867 = vmatpush1.msra.mxu0 %v565
    %1868 = vmatprep.subr.mxu0 %v570
    %1869 = vmatpush1.msra.mxu0 %v569
    %1870 = vmatprep.subr.mxu0 %v574
    %1871 = vmatpush1.msra.mxu0 %v573
    %1872 = vmatprep.subr.mxu0 %v578
    %1873 = vmatpush1.msra.mxu0 %v577
    %1874 = vmatprep.subr.mxu0 0.0
    %1875 = vmatpush1.msra.mxu0 0.0
    %1876 = vmatprep.subr.mxu0 0.0
    %1877 = vmatpush1.msra.mxu0 0.0
    %1878 = vmatprep.subr.mxu0 0.0
    %1879 = vmatpush1.msra.mxu0 0.0
    %1880 = vmatprep.subr.mxu0 0.0
    %1881 = vmatpush1.msra.mxu0 0.0
    %1882 = vmatprep.subr.mxu0 0.0
    %1883 = vmatpush1.msra.mxu0 0.0
    %1884 = vmatprep.subr.mxu0 0.0
    %1885 = vmatpush1.msra.mxu0 0.0
    %1886 = vmatprep.subr.mxu0 0.0
    %1887 = vmatpush1.msra.mxu0 0.0
    %1888 = vmatprep.subr.mxu0 0.0
    %1889 = vmatpush1.msra.mxu0 0.0
    %1890 = vmatprep.subr.mxu0 0.0
    %1891 = vmatpush1.msra.mxu0 0.0
    %1892 = vmatprep.subr.mxu0 0.0
    %1893 = vmatpush1.msra.mxu0 0.0
    %1894 = vmatprep.subr.mxu0 0.0
    %1895 = vmatpush1.msra.mxu0 0.0
    %1896 = vmatprep.subr.mxu0 0.0
    %1897 = vmatpush1.msra.mxu0 0.0
    %1898 = vmatprep.subr.mxu0 0.0
    %1899 = vmatpush1.msra.mxu0 0.0
    %1900 = vmatprep.subr.mxu0 0.0
    %1901 = vmatpush1.msra.mxu0 0.0
    %1902 = vmatprep.subr.mxu0 0.0
    %1903 = vmatpush1.msra.mxu0 0.0
    %1904 = vmatprep.subr.mxu0 0.0
    %1905 = vmatpush1.msra.mxu0 0.0
    %1906 = vmatprep.mubr.f32.mxu0 0.0
    %1907 = vmatmul.mubr.f32.gmra.mrb[0].mxu0 %v1832
    %v1908 = vpop.f32.mrb[0].mxu0
    %v1909 = vadd.f32 0.0, %v1908
    %v1910 = vpop.f32.mrb[0].mxu0
    %v1911 = vadd.f32 0.0, %v1910
    %1912 = vdwg.mxu0
    %1913 = vmatprep.subr.mxu0 %v520
    %1914 = vmatpush1.msra.mxu0 %v519
    %1915 = vmatprep.subr.mxu0 %v524
    %1916 = vmatpush1.msra.mxu0 %v523
    %1917 = vmatprep.subr.mxu0 %v528
    %1918 = vmatpush1.msra.mxu0 %v527
    %1919 = vmatprep.subr.mxu0 %v532
    %1920 = vmatpush1.msra.mxu0 %v531
    %1921 = vmatprep.subr.mxu0 %v536
    %1922 = vmatpush1.msra.mxu0 %v535
    %1923 = vmatprep.subr.mxu0 %v540
    %1924 = vmatpush1.msra.mxu0 %v539
    %1925 = vmatprep.subr.mxu0 %v544
    %1926 = vmatpush1.msra.mxu0 %v543
    %1927 = vmatprep.subr.mxu0 %v548
    %1928 = vmatpush1.msra.mxu0 %v547
    %1929 = vmatprep.subr.mxu0 %v552
    %1930 = vmatpush1.msra.mxu0 %v551
    %1931 = vmatprep.subr.mxu0 %v556
    %1932 = vmatpush1.msra.mxu0 %v555
    %1933 = vmatprep.subr.mxu0 %v560
    %1934 = vmatpush1.msra.mxu0 %v559
    %1935 = vmatprep.subr.mxu0 %v564
    %1936 = vmatpush1.msra.mxu0 %v563
    %1937 = vmatprep.subr.mxu0 %v568
    %1938 = vmatpush1.msra.mxu0 %v567
    %1939 = vmatprep.subr.mxu0 %v572
    %1940 = vmatpush1.msra.mxu0 %v571
    %1941 = vmatprep.subr.mxu0 %v576
    %1942 = vmatpush1.msra.mxu0 %v575
    %1943 = vmatprep.subr.mxu0 %v580
    %1944 = vmatpush1.msra.mxu0 %v579
    %1945 = vmatprep.subr.mxu0 0.0
    %1946 = vmatpush1.msra.mxu0 0.0
    %1947 = vmatprep.subr.mxu0 0.0
    %1948 = vmatpush1.msra.mxu0 0.0
    %1949 = vmatprep.subr.mxu0 0.0
    %1950 = vmatpush1.msra.mxu0 0.0
    %1951 = vmatprep.subr.mxu0 0.0
    %1952 = vmatpush1.msra.mxu0 0.0
    %1953 = vmatprep.subr.mxu0 0.0
    %1954 = vmatpush1.msra.mxu0 0.0
    %1955 = vmatprep.subr.mxu0 0.0
    %1956 = vmatpush1.msra.mxu0 0.0
    %1957 = vmatprep.subr.mxu0 0.0
    %1958 = vmatpush1.msra.mxu0 0.0
    %1959 = vmatprep.subr.mxu0 0.0
    %1960 = vmatpush1.msra.mxu0 0.0
    %1961 = vmatprep.subr.mxu0 0.0
    %1962 = vmatpush1.msra.mxu0 0.0
    %1963 = vmatprep.subr.mxu0 0.0
    %1964 = vmatpush1.msra.mxu0 0.0
    %1965 = vmatprep.subr.mxu0 0.0
    %1966 = vmatpush1.msra.mxu0 0.0
    %1967 = vmatprep.subr.mxu0 0.0
    %1968 = vmatpush1.msra.mxu0 0.0
    %1969 = vmatprep.subr.mxu0 0.0
    %1970 = vmatpush1.msra.mxu0 0.0
    %1971 = vmatprep.subr.mxu0 0.0
    %1972 = vmatpush1.msra.mxu0 0.0
    %1973 = vmatprep.subr.mxu0 0.0
    %1974 = vmatpush1.msra.mxu0 0.0
    %1975 = vmatprep.subr.mxu0 0.0
    %1976 = vmatpush1.msra.mxu0 0.0
    %1977 = vmatprep.mubr.f32.mxu0 0.0
    %1978 = vmatmul.mubr.f32.gmra.mrb[0].mxu0 %v1832
    %v1979 = vpop.f32.mrb[0].mxu0
    %v1980 = vadd.f32 0.0, %v1979
    %v1981 = vpop.f32.mrb[0].mxu0
    %v1982 = vadd.f32 0.0, %v1981
    %1983 = vdwg.mxu0
    %v1984 = vadd.f32 %v1838, %v1909
    %v1985 = vadd.f32 %v1839, %v1911
    %v1986 = vadd.f32 %v1840, %v1980
    %v1987 = vadd.f32 %v1841, %v1982
    %v1988 = vxor.u32 %v1984, 2147483648
    %v1989 = vxor.u32 %v1985, 2147483648
    %v1990 = vxor.u32 %v1986, 2147483648
    %v1991 = vmul.f32 %v1988, 1.442695
    %v1992 = vpow.pop %v1991
    %v1993 = vmul.f32 %v1989, 1.442695
    %v1994 = vpow.pop %v1993
    %v1995 = vmul.f32 %v1990, 1.442695
    %v1996 = vpow.pop %v1995
    %v1997 = vadd.f32 %v1992, 1.0
    %v1998 = vadd.f32 %v1994, 1.0
    %v1999 = vadd.f32 %v1996, 1.0
    %v2000 = vrcp.pop %v1997
    %v2001 = vmul.f32 1.0, %v2000
    %v2002 = vrcp.pop %v1998
    %v2003 = vmul.f32 1.0, %v2002
    %v2004 = vrcp.pop %v1999
    %v2005 = vmul.f32 1.0, %v2004
    %v2006 = vtanh.pop %v1987
    %v2007 = vmul.f32 %v2003, %v1830
    %v2008 = vmul.f32 %v2001, %v2006
    %v2009 = vadd.f32 %v2007, %v2008
    %v2010 = vtanh.pop %v2009
    %v2011 = vmul.f32 %v2005, %v2010
    %s2012 = scalar_lea.vmem %s7, 56
    %2013 = vst [vmem:[%s2012] sm:$0xff] %v2011
    %2014 = vst [vmem:[#allocation2] sm:$0xff] %v2011
    %2015 = vst [vmem:[#allocation3] sm:$0xff] %v2009
    // Predicated region
    $region54: #{rnn_decoder_forward.2} parent=1 // pred_check
      _
    $region55: #{rnn_decoder_forward.2} parent=1 // pred_check_branch
      %2017 = sbr.rel (0) target = $region57
    $region56: #{rnn_decoder_forward.2} parent=1 // pred_region
      _
    $region57: #{rnn_decoder_forward.2} parent=1 // pred_fallthru
      _
    // Predicated region
    $region58: #{rnn_decoder_forward.2} parent=1 // pred_check
      _
    $region59: #{rnn_decoder_forward.2} parent=1 // pred_check_branch
      %2019 = sbr.rel (0) target = $region61
    $region60: #{rnn_decoder_forward.2} parent=1 // pred_region
      _
    $region61: #{rnn_decoder_forward.2} parent=1 // pred_fallthru
      _
    %2020 = vsyncpa [#allocation6], 1
    %2021 = vsyncpa [#allocation8], 1
    %2022 = vsyncpa [#allocation11], 1

</llo_original>
